<compile_context>
chip_gen: v7x
topology: tpu7x:2x2x1
jax: 0.10.0
libtpu: 0.0.40
codegen_flags: <defaults>
</compile_context>

<pallas_src>
import functools

import jax
import jax.numpy as jnp
from jax.experimental import pallas as pl
from jax.experimental.pallas import tpu as pltpu


_P = 16  # bf16-tile-aligned start row of the compute window inside the scratch slab


def _bnf_encoder_kernel(x_ref, w_ref, b_ref, o_ref, buf_ref, *, seq_len):
    # x_ref:   (W, C) bf16       input tile incl. +/- halo rows, W = t_tile + 2*halo
    # w_ref:   (L, K, C, C) bf16 folded conv*BN weights, one (C_in, C_out) matrix per tap
    # b_ref:   (L, 1, C) f32     folded biases
    # o_ref:   (t_tile, C) f32   output tile (centre rows of the window)
    # buf_ref: (_P + W + 8, C) bf16  activation slab; window lives at rows [_P, _P+W)
    t_tile, C = o_ref.shape
    L, K, _, _ = w_ref.shape
    pad = (K - 1) // 2
    halo = L * pad
    W = t_tile + 2 * halo
    j = pl.program_id(1)

    # Halo-only zeroing: only the pad-wide ring just outside the compute window.
    # (Its values only ever feed rows that end up in the discarded halo, but we
    # keep it zero for robustness.)  Done every step: each TensorCore owns its
    # own scratch under the parallel grid split, so no pl.when gating.
    ring = jnp.zeros((pad, C), dtype=buf_ref.dtype)
    buf_ref[pl.ds(_P - pad, pad), :] = ring
    buf_ref[pl.ds(_P + W, pad), :] = ring

    # Load the input tile into the compute window (aligned store, stays bf16).
    buf_ref[pl.ds(_P, W), :] = x_ref[...]

    # Window rows whose global time index lies outside [0, seq_len) stand in for
    # the conv's zero padding: force them back to zero after every layer.
    row_g = jax.lax.broadcasted_iota(jnp.int32, (W, C), 0) + (j * t_tile - halo)
    inside = jnp.logical_and(row_g >= 0, row_g < seq_len)

    for l in range(L):                          # static -> fully unrolled
        last = (l + 1 == L)
        rows = t_tile if last else W            # last layer: only the kept centre rows
        start = (_P + halo - pad) if last else (_P - pad)
        acc = jnp.zeros((rows, C), jnp.float32)
        for k in range(K):                      # accumulate K per-tap matmuls (no im2col)
            xk = buf_ref[pl.ds(start + k, rows), :]              # bf16 shifted window
            acc = acc + jnp.dot(xk, w_ref[l, k],
                                preferred_element_type=jnp.float32)
        y = jnp.maximum(acc + b_ref[l], 0.0)                     # bias + ReLU in f32
        # TODO(synk): training-mode dropout (p=0.5) and batch-stat BatchNorm are
        # not implemented; this is the eval/inference path (dropout == identity).
        if last:
            o_ref[...] = y.astype(o_ref.dtype)
        else:
            buf_ref[pl.ds(_P, W), :] = jnp.where(inside, y, 0.0).astype(buf_ref.dtype)


def _fold_bn_into_conv(conv_params, eps):
    wms, bfs = [], []
    for p in conv_params:
        scale = p["gamma"] / jnp.sqrt(p["var"] + eps)            # (C,)
        wf = p["w"] * scale[:, None, None]                       # (C_out, C_in, K)
        bf = (p["b"] - p["mean"]) * scale + p["beta"]            # (C,)
        # w_all[l, k, i, o] = wf[o, i, k]  so that  y[t, o] = sum_{k,i} x[t-pad+k, i] * w[l,k,i,o]
        wms.append(jnp.transpose(wf, (2, 1, 0)))                 # (K, C_in, C_out)
        bfs.append(bf.reshape(1, -1))
    w_all = jnp.stack(wms, axis=0).astype(jnp.bfloat16)          # (L, K, C, C) bf16 MXU operands
    b_all = jnp.stack(bfs, axis=0).astype(jnp.float32)           # (L, 1, C) f32
    return w_all, b_all


def bnf_encoder_forward(x_nct, input_lengths, conv_params, eps=1e-5, t_tile=512):
    """Eval-mode BNFEncoder.forward: (B, C, T) -> (B, T, C).
    input_lengths is accepted but unused, exactly like the PyTorch forward."""
    del input_lengths
    B, C, T = (int(d) for d in x_nct.shape)
    L = len(conv_params)
    K = int(conv_params[0]["w"].shape[-1])
    assert K % 2 == 1, "encoder_kernel_size must be odd for 'same' padding"
    pad = (K - 1) // 2
    halo = L * pad
    assert pad <= _P

    if t_tile >= T:
        tile, n_tiles = T, 1                        # single tile spans the full time axis
    else:
        tile = max(8, (int(t_tile) // 8) * 8)       # keep output blocks sublane-aligned
        n_tiles = pl.cdiv(T, tile)
    Tp = n_tiles * tile
    W = tile + 2 * halo

    w_all, b_all = _fold_bn_into_conv(conv_params, eps)

    # Layout glue: NCW -> channels-last bf16, zero-pad the halos + round-up tail,
    # and materialize overlapping per-tile windows (overlap-and-discard halo).
    x_btc = jnp.transpose(x_nct, (0, 2, 1)).astype(jnp.bfloat16)       # (B, T, C)
    x_pad = jnp.pad(x_btc, ((0, 0), (halo, halo + Tp - T), (0, 0)))    # (B, Tp+2*halo, C)
    win = jnp.arange(n_tiles)[:, None] * tile + jnp.arange(W)[None, :]
    x_tiles = x_pad[:, win, :]                                         # (B, n_tiles, W, C)

    kernel = functools.partial(_bnf_encoder_kernel, seq_len=T)

    def _call(single_buffer_consts):
        const_kw = {"pipeline_mode": pl.Buffered(1)} if single_buffer_consts else {}
        return pl.pallas_call(
            kernel,
            out_shape=jax.ShapeDtypeStruct((B, Tp, C), jnp.float32),
            grid=(B, n_tiles),
            in_specs=[
                pl.BlockSpec((None, None, W, C), lambda b, j: (b, j, 0, 0)),
                pl.BlockSpec((L, K, C, C), lambda b, j: (0, 0, 0, 0), **const_kw),
                pl.BlockSpec((L, 1, C), lambda b, j: (0, 0, 0), **const_kw),
            ],
            out_specs=pl.BlockSpec((None, tile, C), lambda b, j: (b, j, 0)),
            scratch_shapes=[pltpu.VMEM((_P + W + 8, C), jnp.bfloat16)],
            compiler_params=pltpu.CompilerParams(
                dimension_semantics=("parallel", "parallel"),
                vmem_limit_bytes=48 * 1024 * 1024),
        )(x_tiles, w_all, b_all)

    try:
        out = _call(True)      # single-buffer the constant-index weight/bias blocks
    except Exception:          # fallback if this Pallas build lacks pipeline_mode/Buffered(1)
        out = _call(False)

    return out[:, :T, :] if Tp != T else out


if __name__ == "__main__":
    # Small deterministic config (production Tacotron-style: C=512, K=5, L=3, T~1000).
    B, T, C, K, L = 2, 40, 128, 5, 3
    eps = 1e-5
    TILE = 16          # small tile so the test exercises multi-tile halos + boundary masking

    key = jax.random.PRNGKey(0)
    keys = jax.random.split(key, 1 + 6 * L)
    x = jax.random.normal(keys[0], (B, C, T), dtype=jnp.float32)
    input_lengths = jnp.full((B,), T, dtype=jnp.int32)      # unused by forward

    conv_params = []
    for l in range(L):
        kk = keys[1 + 6 * l: 1 + 6 * (l + 1)]
        conv_params.append(dict(
            w=0.05 * jax.random.normal(kk[0], (C, C, K), dtype=jnp.float32),
            b=0.10 * jax.random.normal(kk[1], (C,), dtype=jnp.float32),
            gamma=1.0 + 0.1 * jax.random.normal(kk[2], (C,), dtype=jnp.float32),
            beta=0.10 * jax.random.normal(kk[3], (C,), dtype=jnp.float32),
            mean=0.10 * jax.random.normal(kk[4], (C,), dtype=jnp.float32),
            var=1.0 + 0.5 * jax.random.uniform(kk[5], (C,), dtype=jnp.float32),
        ))

    out = bnf_encoder_forward(x, input_lengths, conv_params, eps=eps, t_tile=TILE)
    out = jax.block_until_ready(out)
    assert out.shape == (B, T, C)

    # ---- references --------------------------------------------------------
    pad = (K - 1) // 2

    def reference(match_kernel_precision):
        y = x
        if match_kernel_precision:              # kernel feeds the MXU bf16 operands
            y = y.astype(jnp.bfloat16).astype(jnp.float32)
        for l, p in enumerate(conv_params):
            scale = p["gamma"] / jnp.sqrt(p["var"] + eps)
            if match_kernel_precision:          # BN folded into bf16 weights, f32 accumulation
                w = (p["w"] * scale[:, None, None]).astype(jnp.bfloat16).astype(jnp.float32)
                y = jax.lax.conv_general_dilated(
                    y, w, (1,), ((pad, pad),),
                    dimension_numbers=("NCH", "OIH", "NCH"),
                    precision=jax.lax.Precision.HIGHEST)
                y = y + ((p["b"] - p["mean"]) * scale + p["beta"])[None, :, None]
            else:                               # plain f32 eval-mode module math
                y = jax.lax.conv_general_dilated(
                    y, p["w"], (1,), ((pad, pad),),
                    dimension_numbers=("NCH", "OIH", "NCH"),
                    precision=jax.lax.Precision.HIGHEST)
                y = y + p["b"][None, :, None]
                y = (y - p["mean"][None, :, None]) * scale[None, :, None] \
                    + p["beta"][None, :, None]
            y = jnp.maximum(y, 0.0)
            if match_kernel_precision and l + 1 < L:
                y = y.astype(jnp.bfloat16).astype(jnp.float32)   # bf16 inter-layer slab
        return jnp.transpose(y, (0, 2, 1))                       # (B, T, C)

    ref_matched = reference(True)    # same arithmetic as the kernel (validates mechanics)
    ref_f32 = reference(False)       # true eval-mode module math in f32 (semantic sanity)

    err_m = float(jnp.max(jnp.abs(out - ref_matched)))
    assert jnp.allclose(out, ref_matched, atol=3e-3, rtol=3e-3), err_m
    err_f = float(jnp.max(jnp.abs(out - ref_f32)))
    assert jnp.allclose(out, ref_f32, atol=1e-1, rtol=1e-1), err_f

    print("KERNEL_OK")
</pallas_src>

<mosaic_0001>
module attributes {stable_mosaic.version = 11 : i64} {
  func.func @_bnf_encoder_kernel(%arg0: i32, %arg1: i32, %arg2: memref<1x1x28x128xbf16, #tpu.memory_space<vmem>>, %arg3: memref<3x5x128x128xbf16, #tpu.memory_space<vmem>>, %arg4: memref<3x1x128xf32, #tpu.memory_space<vmem>>, %arg5: memref<1x16x128xf32, #tpu.memory_space<vmem>>, %arg6: memref<52x128xbf16, #tpu.memory_space<vmem>>) attributes {dimension_semantics = [#tpu.dimension_semantics<parallel>, #tpu.dimension_semantics<parallel>], iteration_bounds = array<i64: 2, 3>, scalar_prefetch = 0 : i64, scratch_operands = 1 : i64, tpu.core_type = #tpu.core_type<tc>, window_params = [{transform_indices = @transform_0, window_bounds = array<i64: 1, 1, 28, 128>}, {pipeline_mode = #tpu.pipeline_mode<synchronous>, transform_indices = @transform_1, window_bounds = array<i64: 3, 5, 128, 128>}, {pipeline_mode = #tpu.pipeline_mode<synchronous>, transform_indices = @transform_2, window_bounds = array<i64: 3, 1, 128>}, {transform_indices = @transform_3, window_bounds = array<i64: 1, 16, 128>}]} {
    %cst = arith.constant 0.000000e+00 : bf16
    %0 = vector.broadcast %cst : bf16 to vector<2x128xbf16>
    %c14 = arith.constant 14 : index
    %c0 = arith.constant 0 : index
    %1 = vector.load %arg6[%c14, %c0] : memref<52x128xbf16, #tpu.memory_space<vmem>>, vector<2x128xbf16>
    tpu.vector_store %arg6[%c14, %c0], %0 {strides = array<i32>} : memref<52x128xbf16, #tpu.memory_space<vmem>>, vector<2x128xbf16>,
    %c44 = arith.constant 44 : index
    %c0_0 = arith.constant 0 : index
    %2 = vector.load %arg6[%c44, %c0_0] : memref<52x128xbf16, #tpu.memory_space<vmem>>, vector<2x128xbf16>
    tpu.vector_store %arg6[%c44, %c0_0], %0 {strides = array<i32>} : memref<52x128xbf16, #tpu.memory_space<vmem>>, vector<2x128xbf16>,
    %c0_1 = arith.constant 0 : index
    %c0_2 = arith.constant 0 : index
    %c0_3 = arith.constant 0 : index
    %c0_4 = arith.constant 0 : index
    %3 = vector.load %arg2[%c0_1, %c0_2, %c0_3, %c0_4] : memref<1x1x28x128xbf16, #tpu.memory_space<vmem>>, vector<1x1x28x128xbf16>
    %4 = vector.shape_cast %3 : vector<1x1x28x128xbf16> to vector<28x128xbf16>
    %c16 = arith.constant 16 : index
    %c0_5 = arith.constant 0 : index
    %5 = vector.load %arg6[%c16, %c0_5] : memref<52x128xbf16, #tpu.memory_space<vmem>>, vector<28x128xbf16>
    tpu.vector_store %arg6[%c16, %c0_5], %4 {strides = array<i32>} : memref<52x128xbf16, #tpu.memory_space<vmem>>, vector<28x128xbf16>,
    %6 = tpu.iota {dimensions = array<i32: 0>} : vector<28x128xi32>
    %c16_i32 = arith.constant 16 : i32
    %7 = arith.muli %arg1, %c16_i32 : i32
    %c6_i32 = arith.constant 6 : i32
    %8 = arith.subi %7, %c6_i32 : i32
    %9 = vector.broadcast %8 : i32 to vector<28x128xi32>
    %10 = arith.addi %6, %9 : vector<28x128xi32>
    %c0_i32 = arith.constant 0 : i32
    %11 = vector.broadcast %c0_i32 : i32 to vector<28x128xi32>
    %12 = arith.cmpi sge, %10, %11 : vector<28x128xi32>
    %c40_i32 = arith.constant 40 : i32
    %13 = vector.broadcast %c40_i32 : i32 to vector<28x128xi32>
    %14 = arith.cmpi slt, %10, %13 : vector<28x128xi32>
    %15 = arith.andi %12, %14 : vector<28x128xi1>
    %cst_6 = arith.constant 0.000000e+00 : f32
    %16 = vector.broadcast %cst_6 : f32 to vector<28x128xf32>
    %c14_7 = arith.constant 14 : index
    %c0_8 = arith.constant 0 : index
    %17 = vector.load %arg6[%c14_7, %c0_8] : memref<52x128xbf16, #tpu.memory_space<vmem>>, vector<28x128xbf16>
    %c0_9 = arith.constant 0 : index
    %c0_10 = arith.constant 0 : index
    %c0_11 = arith.constant 0 : index
    %c0_12 = arith.constant 0 : index
    %18 = vector.load %arg3[%c0_9, %c0_10, %c0_11, %c0_12] : memref<3x5x128x128xbf16, #tpu.memory_space<vmem>>, vector<1x1x128x128xbf16>
    %19 = vector.shape_cast %18 : vector<1x1x128x128xbf16> to vector<128x128xbf16>
    %cst_13 = arith.constant dense<0.000000e+00> : vector<28x128xf32>
    %20 = tpu.matmul %17, %19, %cst_13 {dimension_numbers = #tpu.dot_dimension_numbers<[1], [0], [0], [1], [0, 0, 1, 1], [], []>} : vector<28x128xbf16>, vector<128x128xbf16>, vector<28x128xf32> -> vector<28x128xf32>
    %21 = arith.addf %16, %20 : vector<28x128xf32>
    %c15 = arith.constant 15 : index
    %c0_14 = arith.constant 0 : index
    %22 = vector.load %arg6[%c15, %c0_14] : memref<52x128xbf16, #tpu.memory_space<vmem>>, vector<28x128xbf16>
    %c0_15 = arith.constant 0 : index
    %c1 = arith.constant 1 : index
    %c0_16 = arith.constant 0 : index
    %c0_17 = arith.constant 0 : index
    %23 = vector.load %arg3[%c0_15, %c1, %c0_16, %c0_17] : memref<3x5x128x128xbf16, #tpu.memory_space<vmem>>, vector<1x1x128x128xbf16>
    %24 = vector.shape_cast %23 : vector<1x1x128x128xbf16> to vector<128x128xbf16>
    %cst_18 = arith.constant dense<0.000000e+00> : vector<28x128xf32>
    %25 = tpu.matmul %22, %24, %cst_18 {dimension_numbers = #tpu.dot_dimension_numbers<[1], [0], [0], [1], [0, 0, 1, 1], [], []>} : vector<28x128xbf16>, vector<128x128xbf16>, vector<28x128xf32> -> vector<28x128xf32>
    %26 = arith.addf %21, %25 : vector<28x128xf32>
    %c16_19 = arith.constant 16 : index
    %c0_20 = arith.constant 0 : index
    %27 = vector.load %arg6[%c16_19, %c0_20] : memref<52x128xbf16, #tpu.memory_space<vmem>>, vector<28x128xbf16>
    %c0_21 = arith.constant 0 : index
    %c2 = arith.constant 2 : index
    %c0_22 = arith.constant 0 : index
    %c0_23 = arith.constant 0 : index
    %28 = vector.load %arg3[%c0_21, %c2, %c0_22, %c0_23] : memref<3x5x128x128xbf16, #tpu.memory_space<vmem>>, vector<1x1x128x128xbf16>
    %29 = vector.shape_cast %28 : vector<1x1x128x128xbf16> to vector<128x128xbf16>
    %cst_24 = arith.constant dense<0.000000e+00> : vector<28x128xf32>
    %30 = tpu.matmul %27, %29, %cst_24 {dimension_numbers = #tpu.dot_dimension_numbers<[1], [0], [0], [1], [0, 0, 1, 1], [], []>} : vector<28x128xbf16>, vector<128x128xbf16>, vector<28x128xf32> -> vector<28x128xf32>
    %31 = arith.addf %26, %30 : vector<28x128xf32>
    %c17 = arith.constant 17 : index
    %c0_25 = arith.constant 0 : index
    %32 = vector.load %arg6[%c17, %c0_25] : memref<52x128xbf16, #tpu.memory_space<vmem>>, vector<28x128xbf16>
    %c0_26 = arith.constant 0 : index
    %c3 = arith.constant 3 : index
    %c0_27 = arith.constant 0 : index
    %c0_28 = arith.constant 0 : index
    %33 = vector.load %arg3[%c0_26, %c3, %c0_27, %c0_28] : memref<3x5x128x128xbf16, #tpu.memory_space<vmem>>, vector<1x1x128x128xbf16>
    %34 = vector.shape_cast %33 : vector<1x1x128x128xbf16> to vector<128x128xbf16>
    %cst_29 = arith.constant dense<0.000000e+00> : vector<28x128xf32>
    %35 = tpu.matmul %32, %34, %cst_29 {dimension_numbers = #tpu.dot_dimension_numbers<[1], [0], [0], [1], [0, 0, 1, 1], [], []>} : vector<28x128xbf16>, vector<128x128xbf16>, vector<28x128xf32> -> vector<28x128xf32>
    %36 = arith.addf %31, %35 : vector<28x128xf32>
    %c18 = arith.constant 18 : index
    %c0_30 = arith.constant 0 : index
    %37 = vector.load %arg6[%c18, %c0_30] : memref<52x128xbf16, #tpu.memory_space<vmem>>, vector<28x128xbf16>
    %c0_31 = arith.constant 0 : index
    %c4 = arith.constant 4 : index
    %c0_32 = arith.constant 0 : index
    %c0_33 = arith.constant 0 : index
    %38 = vector.load %arg3[%c0_31, %c4, %c0_32, %c0_33] : memref<3x5x128x128xbf16, #tpu.memory_space<vmem>>, vector<1x1x128x128xbf16>
    %39 = vector.shape_cast %38 : vector<1x1x128x128xbf16> to vector<128x128xbf16>
    %cst_34 = arith.constant dense<0.000000e+00> : vector<28x128xf32>
    %40 = tpu.matmul %37, %39, %cst_34 {dimension_numbers = #tpu.dot_dimension_numbers<[1], [0], [0], [1], [0, 0, 1, 1], [], []>} : vector<28x128xbf16>, vector<128x128xbf16>, vector<28x128xf32> -> vector<28x128xf32>
    %41 = arith.addf %36, %40 : vector<28x128xf32>
    %c0_35 = arith.constant 0 : index
    %c0_36 = arith.constant 0 : index
    %c0_37 = arith.constant 0 : index
    %42 = vector.load %arg4[%c0_35, %c0_36, %c0_37] : memref<3x1x128xf32, #tpu.memory_space<vmem>>, vector<1x1x128xf32>
    %43 = vector.shape_cast %42 : vector<1x1x128xf32> to vector<1x128xf32>
    %44 = vector.broadcast %43 : vector<1x128xf32> to vector<28x128xf32>
    %45 = arith.addf %41, %44 : vector<28x128xf32>
    %cst_38 = arith.constant 0.000000e+00 : f32
    %46 = vector.broadcast %cst_38 : f32 to vector<28x128xf32>
    %47 = arith.maximumf %45, %46 : vector<28x128xf32>
    %cst_39 = arith.constant 0.000000e+00 : f32
    %48 = vector.broadcast %cst_39 : f32 to vector<28x128xf32>
    %49 = arith.select %15, %47, %48 : vector<28x128xi1>, vector<28x128xf32>
    %50 = arith.truncf %49 : vector<28x128xf32> to vector<28x128xbf16>
    %c16_40 = arith.constant 16 : index
    %c0_41 = arith.constant 0 : index
    %51 = vector.load %arg6[%c16_40, %c0_41] : memref<52x128xbf16, #tpu.memory_space<vmem>>, vector<28x128xbf16>
    tpu.vector_store %arg6[%c16_40, %c0_41], %50 {strides = array<i32>} : memref<52x128xbf16, #tpu.memory_space<vmem>>, vector<28x128xbf16>,
    %cst_42 = arith.constant 0.000000e+00 : f32
    %52 = vector.broadcast %cst_42 : f32 to vector<28x128xf32>
    %c14_43 = arith.constant 14 : index
    %c0_44 = arith.constant 0 : index
    %53 = vector.load %arg6[%c14_43, %c0_44] : memref<52x128xbf16, #tpu.memory_space<vmem>>, vector<28x128xbf16>
    %c1_45 = arith.constant 1 : index
    %c0_46 = arith.constant 0 : index
    %c0_47 = arith.constant 0 : index
    %c0_48 = arith.constant 0 : index
    %54 = vector.load %arg3[%c1_45, %c0_46, %c0_47, %c0_48] : memref<3x5x128x128xbf16, #tpu.memory_space<vmem>>, vector<1x1x128x128xbf16>
    %55 = vector.shape_cast %54 : vector<1x1x128x128xbf16> to vector<128x128xbf16>
    %cst_49 = arith.constant dense<0.000000e+00> : vector<28x128xf32>
    %56 = tpu.matmul %53, %55, %cst_49 {dimension_numbers = #tpu.dot_dimension_numbers<[1], [0], [0], [1], [0, 0, 1, 1], [], []>} : vector<28x128xbf16>, vector<128x128xbf16>, vector<28x128xf32> -> vector<28x128xf32>
    %57 = arith.addf %52, %56 : vector<28x128xf32>
    %c15_50 = arith.constant 15 : index
    %c0_51 = arith.constant 0 : index
    %58 = vector.load %arg6[%c15_50, %c0_51] : memref<52x128xbf16, #tpu.memory_space<vmem>>, vector<28x128xbf16>
    %c1_52 = arith.constant 1 : index
    %c1_53 = arith.constant 1 : index
    %c0_54 = arith.constant 0 : index
    %c0_55 = arith.constant 0 : index
    %59 = vector.load %arg3[%c1_52, %c1_53, %c0_54, %c0_55] : memref<3x5x128x128xbf16, #tpu.memory_space<vmem>>, vector<1x1x128x128xbf16>
    %60 = vector.shape_cast %59 : vector<1x1x128x128xbf16> to vector<128x128xbf16>
    %cst_56 = arith.constant dense<0.000000e+00> : vector<28x128xf32>
    %61 = tpu.matmul %58, %60, %cst_56 {dimension_numbers = #tpu.dot_dimension_numbers<[1], [0], [0], [1], [0, 0, 1, 1], [], []>} : vector<28x128xbf16>, vector<128x128xbf16>, vector<28x128xf32> -> vector<28x128xf32>
    %62 = arith.addf %57, %61 : vector<28x128xf32>
    %c16_57 = arith.constant 16 : index
    %c0_58 = arith.constant 0 : index
    %63 = vector.load %arg6[%c16_57, %c0_58] : memref<52x128xbf16, #tpu.memory_space<vmem>>, vector<28x128xbf16>
    %c1_59 = arith.constant 1 : index
    %c2_60 = arith.constant 2 : index
    %c0_61 = arith.constant 0 : index
    %c0_62 = arith.constant 0 : index
    %64 = vector.load %arg3[%c1_59, %c2_60, %c0_61, %c0_62] : memref<3x5x128x128xbf16, #tpu.memory_space<vmem>>, vector<1x1x128x128xbf16>
    %65 = vector.shape_cast %64 : vector<1x1x128x128xbf16> to vector<128x128xbf16>
    %cst_63 = arith.constant dense<0.000000e+00> : vector<28x128xf32>
    %66 = tpu.matmul %63, %65, %cst_63 {dimension_numbers = #tpu.dot_dimension_numbers<[1], [0], [0], [1], [0, 0, 1, 1], [], []>} : vector<28x128xbf16>, vector<128x128xbf16>, vector<28x128xf32> -> vector<28x128xf32>
    %67 = arith.addf %62, %66 : vector<28x128xf32>
    %c17_64 = arith.constant 17 : index
    %c0_65 = arith.constant 0 : index
    %68 = vector.load %arg6[%c17_64, %c0_65] : memref<52x128xbf16, #tpu.memory_space<vmem>>, vector<28x128xbf16>
    %c1_66 = arith.constant 1 : index
    %c3_67 = arith.constant 3 : index
    %c0_68 = arith.constant 0 : index
    %c0_69 = arith.constant 0 : index
    %69 = vector.load %arg3[%c1_66, %c3_67, %c0_68, %c0_69] : memref<3x5x128x128xbf16, #tpu.memory_space<vmem>>, vector<1x1x128x128xbf16>
    %70 = vector.shape_cast %69 : vector<1x1x128x128xbf16> to vector<128x128xbf16>
    %cst_70 = arith.constant dense<0.000000e+00> : vector<28x128xf32>
    %71 = tpu.matmul %68, %70, %cst_70 {dimension_numbers = #tpu.dot_dimension_numbers<[1], [0], [0], [1], [0, 0, 1, 1], [], []>} : vector<28x128xbf16>, vector<128x128xbf16>, vector<28x128xf32> -> vector<28x128xf32>
    %72 = arith.addf %67, %71 : vector<28x128xf32>
    %c18_71 = arith.constant 18 : index
    %c0_72 = arith.constant 0 : index
    %73 = vector.load %arg6[%c18_71, %c0_72] : memref<52x128xbf16, #tpu.memory_space<vmem>>, vector<28x128xbf16>
    %c1_73 = arith.constant 1 : index
    %c4_74 = arith.constant 4 : index
    %c0_75 = arith.constant 0 : index
    %c0_76 = arith.constant 0 : index
    %74 = vector.load %arg3[%c1_73, %c4_74, %c0_75, %c0_76] : memref<3x5x128x128xbf16, #tpu.memory_space<vmem>>, vector<1x1x128x128xbf16>
    %75 = vector.shape_cast %74 : vector<1x1x128x128xbf16> to vector<128x128xbf16>
    %cst_77 = arith.constant dense<0.000000e+00> : vector<28x128xf32>
    %76 = tpu.matmul %73, %75, %cst_77 {dimension_numbers = #tpu.dot_dimension_numbers<[1], [0], [0], [1], [0, 0, 1, 1], [], []>} : vector<28x128xbf16>, vector<128x128xbf16>, vector<28x128xf32> -> vector<28x128xf32>
    %77 = arith.addf %72, %76 : vector<28x128xf32>
    %c1_78 = arith.constant 1 : index
    %c0_79 = arith.constant 0 : index
    %c0_80 = arith.constant 0 : index
    %78 = vector.load %arg4[%c1_78, %c0_79, %c0_80] : memref<3x1x128xf32, #tpu.memory_space<vmem>>, vector<1x1x128xf32>
    %79 = vector.shape_cast %78 : vector<1x1x128xf32> to vector<1x128xf32>
    %80 = vector.broadcast %79 : vector<1x128xf32> to vector<28x128xf32>
    %81 = arith.addf %77, %80 : vector<28x128xf32>
    %cst_81 = arith.constant 0.000000e+00 : f32
    %82 = vector.broadcast %cst_81 : f32 to vector<28x128xf32>
    %83 = arith.maximumf %81, %82 : vector<28x128xf32>
    %cst_82 = arith.constant 0.000000e+00 : f32
    %84 = vector.broadcast %cst_82 : f32 to vector<28x128xf32>
    %85 = arith.select %15, %83, %84 : vector<28x128xi1>, vector<28x128xf32>
    %86 = arith.truncf %85 : vector<28x128xf32> to vector<28x128xbf16>
    %c16_83 = arith.constant 16 : index
    %c0_84 = arith.constant 0 : index
    %87 = vector.load %arg6[%c16_83, %c0_84] : memref<52x128xbf16, #tpu.memory_space<vmem>>, vector<28x128xbf16>
    tpu.vector_store %arg6[%c16_83, %c0_84], %86 {strides = array<i32>} : memref<52x128xbf16, #tpu.memory_space<vmem>>, vector<28x128xbf16>,
    %cst_85 = arith.constant 0.000000e+00 : f32
    %88 = vector.broadcast %cst_85 : f32 to vector<16x128xf32>
    %c20 = arith.constant 20 : index
    %c0_86 = arith.constant 0 : index
    %89 = vector.load %arg6[%c20, %c0_86] : memref<52x128xbf16, #tpu.memory_space<vmem>>, vector<16x128xbf16>
    %c2_87 = arith.constant 2 : index
    %c0_88 = arith.constant 0 : index
    %c0_89 = arith.constant 0 : index
    %c0_90 = arith.constant 0 : index
    %90 = vector.load %arg3[%c2_87, %c0_88, %c0_89, %c0_90] : memref<3x5x128x128xbf16, #tpu.memory_space<vmem>>, vector<1x1x128x128xbf16>
    %91 = vector.shape_cast %90 : vector<1x1x128x128xbf16> to vector<128x128xbf16>
    %cst_91 = arith.constant dense<0.000000e+00> : vector<16x128xf32>
    %92 = tpu.matmul %89, %91, %cst_91 {dimension_numbers = #tpu.dot_dimension_numbers<[1], [0], [0], [1], [0, 0, 1, 1], [], []>} : vector<16x128xbf16>, vector<128x128xbf16>, vector<16x128xf32> -> vector<16x128xf32>
    %93 = arith.addf %88, %92 : vector<16x128xf32>
    %c21 = arith.constant 21 : index
    %c0_92 = arith.constant 0 : index
    %94 = vector.load %arg6[%c21, %c0_92] : memref<52x128xbf16, #tpu.memory_space<vmem>>, vector<16x128xbf16>
    %c2_93 = arith.constant 2 : index
    %c1_94 = arith.constant 1 : index
    %c0_95 = arith.constant 0 : index
    %c0_96 = arith.constant 0 : index
    %95 = vector.load %arg3[%c2_93, %c1_94, %c0_95, %c0_96] : memref<3x5x128x128xbf16, #tpu.memory_space<vmem>>, vector<1x1x128x128xbf16>
    %96 = vector.shape_cast %95 : vector<1x1x128x128xbf16> to vector<128x128xbf16>
    %cst_97 = arith.constant dense<0.000000e+00> : vector<16x128xf32>
    %97 = tpu.matmul %94, %96, %cst_97 {dimension_numbers = #tpu.dot_dimension_numbers<[1], [0], [0], [1], [0, 0, 1, 1], [], []>} : vector<16x128xbf16>, vector<128x128xbf16>, vector<16x128xf32> -> vector<16x128xf32>
    %98 = arith.addf %93, %97 : vector<16x128xf32>
    %c22 = arith.constant 22 : index
    %c0_98 = arith.constant 0 : index
    %99 = vector.load %arg6[%c22, %c0_98] : memref<52x128xbf16, #tpu.memory_space<vmem>>, vector<16x128xbf16>
    %c2_99 = arith.constant 2 : index
    %c2_100 = arith.constant 2 : index
    %c0_101 = arith.constant 0 : index
    %c0_102 = arith.constant 0 : index
    %100 = vector.load %arg3[%c2_99, %c2_100, %c0_101, %c0_102] : memref<3x5x128x128xbf16, #tpu.memory_space<vmem>>, vector<1x1x128x128xbf16>
    %101 = vector.shape_cast %100 : vector<1x1x128x128xbf16> to vector<128x128xbf16>
    %cst_103 = arith.constant dense<0.000000e+00> : vector<16x128xf32>
    %102 = tpu.matmul %99, %101, %cst_103 {dimension_numbers = #tpu.dot_dimension_numbers<[1], [0], [0], [1], [0, 0, 1, 1], [], []>} : vector<16x128xbf16>, vector<128x128xbf16>, vector<16x128xf32> -> vector<16x128xf32>
    %103 = arith.addf %98, %102 : vector<16x128xf32>
    %c23 = arith.constant 23 : index
    %c0_104 = arith.constant 0 : index
    %104 = vector.load %arg6[%c23, %c0_104] : memref<52x128xbf16, #tpu.memory_space<vmem>>, vector<16x128xbf16>
    %c2_105 = arith.constant 2 : index
    %c3_106 = arith.constant 3 : index
    %c0_107 = arith.constant 0 : index
    %c0_108 = arith.constant 0 : index
    %105 = vector.load %arg3[%c2_105, %c3_106, %c0_107, %c0_108] : memref<3x5x128x128xbf16, #tpu.memory_space<vmem>>, vector<1x1x128x128xbf16>
    %106 = vector.shape_cast %105 : vector<1x1x128x128xbf16> to vector<128x128xbf16>
    %cst_109 = arith.constant dense<0.000000e+00> : vector<16x128xf32>
    %107 = tpu.matmul %104, %106, %cst_109 {dimension_numbers = #tpu.dot_dimension_numbers<[1], [0], [0], [1], [0, 0, 1, 1], [], []>} : vector<16x128xbf16>, vector<128x128xbf16>, vector<16x128xf32> -> vector<16x128xf32>
    %108 = arith.addf %103, %107 : vector<16x128xf32>
    %c24 = arith.constant 24 : index
    %c0_110 = arith.constant 0 : index
    %109 = vector.load %arg6[%c24, %c0_110] : memref<52x128xbf16, #tpu.memory_space<vmem>>, vector<16x128xbf16>
    %c2_111 = arith.constant 2 : index
    %c4_112 = arith.constant 4 : index
    %c0_113 = arith.constant 0 : index
    %c0_114 = arith.constant 0 : index
    %110 = vector.load %arg3[%c2_111, %c4_112, %c0_113, %c0_114] : memref<3x5x128x128xbf16, #tpu.memory_space<vmem>>, vector<1x1x128x128xbf16>
    %111 = vector.shape_cast %110 : vector<1x1x128x128xbf16> to vector<128x128xbf16>
    %cst_115 = arith.constant dense<0.000000e+00> : vector<16x128xf32>
    %112 = tpu.matmul %109, %111, %cst_115 {dimension_numbers = #tpu.dot_dimension_numbers<[1], [0], [0], [1], [0, 0, 1, 1], [], []>} : vector<16x128xbf16>, vector<128x128xbf16>, vector<16x128xf32> -> vector<16x128xf32>
    %113 = arith.addf %108, %112 : vector<16x128xf32>
    %c2_116 = arith.constant 2 : index
    %c0_117 = arith.constant 0 : index
    %c0_118 = arith.constant 0 : index
    %114 = vector.load %arg4[%c2_116, %c0_117, %c0_118] : memref<3x1x128xf32, #tpu.memory_space<vmem>>, vector<1x1x128xf32>
    %115 = vector.shape_cast %114 : vector<1x1x128xf32> to vector<1x128xf32>
    %116 = vector.broadcast %115 : vector<1x128xf32> to vector<16x128xf32>
    %117 = arith.addf %113, %116 : vector<16x128xf32>
    %cst_119 = arith.constant 0.000000e+00 : f32
    %118 = vector.broadcast %cst_119 : f32 to vector<16x128xf32>
    %119 = arith.maximumf %117, %118 : vector<16x128xf32>
    %c0_120 = arith.constant 0 : index
    %c0_121 = arith.constant 0 : index
    %c0_122 = arith.constant 0 : index
    %120 = vector.load %arg5[%c0_120, %c0_121, %c0_122] : memref<1x16x128xf32, #tpu.memory_space<vmem>>, vector<1x16x128xf32>
    %121 = vector.shape_cast %120 : vector<1x16x128xf32> to vector<16x128xf32>
    %122 = vector.shape_cast %119 : vector<16x128xf32> to vector<1x16x128xf32>
    tpu.vector_store %arg5[%c0_120, %c0_121, %c0_122], %122 {strides = array<i32>} : memref<1x16x128xf32, #tpu.memory_space<vmem>>, vector<1x16x128xf32>,
    return
  }
  func.func @transform_0(%arg0: i32, %arg1: i32) -> (i32, i32, i32, i32) {
    %c0_i32 = arith.constant 0 : i32
    %c0_i32_0 = arith.constant 0 : i32
    %c0_i32_1 = arith.constant 0 : i32
    return %arg0, %arg1, %c0_i32, %c0_i32_0 : i32, i32, i32, i32
  }
  func.func @transform_1(%arg0: i32, %arg1: i32) -> (i32, i32, i32, i32) {
    %c0_i32 = arith.constant 0 : i32
    %c0_i32_0 = arith.constant 0 : i32
    %c0_i32_1 = arith.constant 0 : i32
    %c0_i32_2 = arith.constant 0 : i32
    %c0_i32_3 = arith.constant 0 : i32
    return %c0_i32, %c0_i32_0, %c0_i32_1, %c0_i32_2 : i32, i32, i32, i32
  }
  func.func @transform_2(%arg0: i32, %arg1: i32) -> (i32, i32, i32) {
    %c0_i32 = arith.constant 0 : i32
    %c0_i32_0 = arith.constant 0 : i32
    %c0_i32_1 = arith.constant 0 : i32
    %c0_i32_2 = arith.constant 0 : i32
    return %c0_i32, %c0_i32_0, %c0_i32_1 : i32, i32, i32
  }
  func.func @transform_3(%arg0: i32, %arg1: i32) -> (i32, i32, i32) {
    %c0_i32 = arith.constant 0 : i32
    %c0_i32_0 = arith.constant 0 : i32
    return %arg0, %arg1, %c0_i32 : i32, i32, i32
  }
}

module attributes {stable_mosaic.version = 11 : i64} {
  func.func @_bnf_encoder_kernel(%arg0: i32, %arg1: i32, %arg2: memref<1x1x28x128xbf16, #tpu.memory_space<vmem>>, %arg3: memref<3x5x128x128xbf16, #tpu.memory_space<vmem>>, %arg4: memref<3x1x128xf32, #tpu.memory_space<vmem>>, %arg5: memref<1x16x128xf32, #tpu.memory_space<vmem>>, %arg6: memref<52x128xbf16, #tpu.memory_space<vmem>>) attributes {dimension_semantics = [#tpu.dimension_semantics<parallel>, #tpu.dimension_semantics<parallel>], iteration_bounds = array<i64: 2, 3>, scalar_prefetch = 0 : i64, scratch_operands = 1 : i64, tpu.core_type = #tpu.core_type<tc>, window_params = [{transform_indices = @transform_0, window_bounds = array<i64: 1, 1, 28, 128>}, {pipeline_mode = #tpu.pipeline_mode<synchronous>, transform_indices = @transform_1, window_bounds = array<i64: 3, 5, 128, 128>}, {pipeline_mode = #tpu.pipeline_mode<synchronous>, transform_indices = @transform_2, window_bounds = array<i64: 3, 1, 128>}, {transform_indices = @transform_3, window_bounds = array<i64: 1, 16, 128>}]} {
    %cst = arith.constant 0.000000e+00 : bf16
    %0 = vector.broadcast %cst : bf16 to vector<2x128xbf16>
    %c14 = arith.constant 14 : index
    %c0 = arith.constant 0 : index
    %1 = vector.load %arg6[%c14, %c0] : memref<52x128xbf16, #tpu.memory_space<vmem>>, vector<2x128xbf16>
    tpu.vector_store %arg6[%c14, %c0], %0 {strides = array<i32>} : memref<52x128xbf16, #tpu.memory_space<vmem>>, vector<2x128xbf16>,
    %c44 = arith.constant 44 : index
    %c0_0 = arith.constant 0 : index
    %2 = vector.load %arg6[%c44, %c0_0] : memref<52x128xbf16, #tpu.memory_space<vmem>>, vector<2x128xbf16>
    tpu.vector_store %arg6[%c44, %c0_0], %0 {strides = array<i32>} : memref<52x128xbf16, #tpu.memory_space<vmem>>, vector<2x128xbf16>,
    %c0_1 = arith.constant 0 : index
    %c0_2 = arith.constant 0 : index
    %c0_3 = arith.constant 0 : index
    %c0_4 = arith.constant 0 : index
    %3 = vector.load %arg2[%c0_1, %c0_2, %c0_3, %c0_4] : memref<1x1x28x128xbf16, #tpu.memory_space<vmem>>, vector<1x1x28x128xbf16>
    %4 = vector.shape_cast %3 : vector<1x1x28x128xbf16> to vector<28x128xbf16>
    %c16 = arith.constant 16 : index
    %c0_5 = arith.constant 0 : index
    %5 = vector.load %arg6[%c16, %c0_5] : memref<52x128xbf16, #tpu.memory_space<vmem>>, vector<28x128xbf16>
    tpu.vector_store %arg6[%c16, %c0_5], %4 {strides = array<i32>} : memref<52x128xbf16, #tpu.memory_space<vmem>>, vector<28x128xbf16>,
    %6 = tpu.iota {dimensions = array<i32: 0>} : vector<28x128xi32>
    %c16_i32 = arith.constant 16 : i32
    %7 = arith.muli %arg1, %c16_i32 : i32
    %c6_i32 = arith.constant 6 : i32
    %8 = arith.subi %7, %c6_i32 : i32
    %9 = vector.broadcast %8 : i32 to vector<28x128xi32>
    %10 = arith.addi %6, %9 : vector<28x128xi32>
    %c0_i32 = arith.constant 0 : i32
    %11 = vector.broadcast %c0_i32 : i32 to vector<28x128xi32>
    %12 = arith.cmpi sge, %10, %11 : vector<28x128xi32>
    %c40_i32 = arith.constant 40 : i32
    %13 = vector.broadcast %c40_i32 : i32 to vector<28x128xi32>
    %14 = arith.cmpi slt, %10, %13 : vector<28x128xi32>
    %15 = arith.andi %12, %14 : vector<28x128xi1>
    %cst_6 = arith.constant 0.000000e+00 : f32
    %16 = vector.broadcast %cst_6 : f32 to vector<28x128xf32>
    %c14_7 = arith.constant 14 : index
    %c0_8 = arith.constant 0 : index
    %17 = vector.load %arg6[%c14_7, %c0_8] : memref<52x128xbf16, #tpu.memory_space<vmem>>, vector<28x128xbf16>
    %c0_9 = arith.constant 0 : index
    %c0_10 = arith.constant 0 : index
    %c0_11 = arith.constant 0 : index
    %c0_12 = arith.constant 0 : index
    %18 = vector.load %arg3[%c0_9, %c0_10, %c0_11, %c0_12] : memref<3x5x128x128xbf16, #tpu.memory_space<vmem>>, vector<1x1x128x128xbf16>
    %19 = vector.shape_cast %18 : vector<1x1x128x128xbf16> to vector<128x128xbf16>
    %cst_13 = arith.constant dense<0.000000e+00> : vector<28x128xf32>
    %20 = tpu.matmul %17, %19, %cst_13 {dimension_numbers = #tpu.dot_dimension_numbers<[1], [0], [0], [1], [0, 0, 1, 1], [], []>} : vector<28x128xbf16>, vector<128x128xbf16>, vector<28x128xf32> -> vector<28x128xf32>
    %21 = arith.addf %16, %20 : vector<28x128xf32>
    %c15 = arith.constant 15 : index
    %c0_14 = arith.constant 0 : index
    %22 = vector.load %arg6[%c15, %c0_14] : memref<52x128xbf16, #tpu.memory_space<vmem>>, vector<28x128xbf16>
    %c0_15 = arith.constant 0 : index
    %c1 = arith.constant 1 : index
    %c0_16 = arith.constant 0 : index
    %c0_17 = arith.constant 0 : index
    %23 = vector.load %arg3[%c0_15, %c1, %c0_16, %c0_17] : memref<3x5x128x128xbf16, #tpu.memory_space<vmem>>, vector<1x1x128x128xbf16>
    %24 = vector.shape_cast %23 : vector<1x1x128x128xbf16> to vector<128x128xbf16>
    %cst_18 = arith.constant dense<0.000000e+00> : vector<28x128xf32>
    %25 = tpu.matmul %22, %24, %cst_18 {dimension_numbers = #tpu.dot_dimension_numbers<[1], [0], [0], [1], [0, 0, 1, 1], [], []>} : vector<28x128xbf16>, vector<128x128xbf16>, vector<28x128xf32> -> vector<28x128xf32>
    %26 = arith.addf %21, %25 : vector<28x128xf32>
    %c16_19 = arith.constant 16 : index
    %c0_20 = arith.constant 0 : index
    %27 = vector.load %arg6[%c16_19, %c0_20] : memref<52x128xbf16, #tpu.memory_space<vmem>>, vector<28x128xbf16>
    %c0_21 = arith.constant 0 : index
    %c2 = arith.constant 2 : index
    %c0_22 = arith.constant 0 : index
    %c0_23 = arith.constant 0 : index
    %28 = vector.load %arg3[%c0_21, %c2, %c0_22, %c0_23] : memref<3x5x128x128xbf16, #tpu.memory_space<vmem>>, vector<1x1x128x128xbf16>
    %29 = vector.shape_cast %28 : vector<1x1x128x128xbf16> to vector<128x128xbf16>
    %cst_24 = arith.constant dense<0.000000e+00> : vector<28x128xf32>
    %30 = tpu.matmul %27, %29, %cst_24 {dimension_numbers = #tpu.dot_dimension_numbers<[1], [0], [0], [1], [0, 0, 1, 1], [], []>} : vector<28x128xbf16>, vector<128x128xbf16>, vector<28x128xf32> -> vector<28x128xf32>
    %31 = arith.addf %26, %30 : vector<28x128xf32>
    %c17 = arith.constant 17 : index
    %c0_25 = arith.constant 0 : index
    %32 = vector.load %arg6[%c17, %c0_25] : memref<52x128xbf16, #tpu.memory_space<vmem>>, vector<28x128xbf16>
    %c0_26 = arith.constant 0 : index
    %c3 = arith.constant 3 : index
    %c0_27 = arith.constant 0 : index
    %c0_28 = arith.constant 0 : index
    %33 = vector.load %arg3[%c0_26, %c3, %c0_27, %c0_28] : memref<3x5x128x128xbf16, #tpu.memory_space<vmem>>, vector<1x1x128x128xbf16>
    %34 = vector.shape_cast %33 : vector<1x1x128x128xbf16> to vector<128x128xbf16>
    %cst_29 = arith.constant dense<0.000000e+00> : vector<28x128xf32>
    %35 = tpu.matmul %32, %34, %cst_29 {dimension_numbers = #tpu.dot_dimension_numbers<[1], [0], [0], [1], [0, 0, 1, 1], [], []>} : vector<28x128xbf16>, vector<128x128xbf16>, vector<28x128xf32> -> vector<28x128xf32>
    %36 = arith.addf %31, %35 : vector<28x128xf32>
    %c18 = arith.constant 18 : index
    %c0_30 = arith.constant 0 : index
    %37 = vector.load %arg6[%c18, %c0_30] : memref<52x128xbf16, #tpu.memory_space<vmem>>, vector<28x128xbf16>
    %c0_31 = arith.constant 0 : index
    %c4 = arith.constant 4 : index
    %c0_32 = arith.constant 0 : index
    %c0_33 = arith.constant 0 : index
    %38 = vector.load %arg3[%c0_31, %c4, %c0_32, %c0_33] : memref<3x5x128x128xbf16, #tpu.memory_space<vmem>>, vector<1x1x128x128xbf16>
    %39 = vector.shape_cast %38 : vector<1x1x128x128xbf16> to vector<128x128xbf16>
    %cst_34 = arith.constant dense<0.000000e+00> : vector<28x128xf32>
    %40 = tpu.matmul %37, %39, %cst_34 {dimension_numbers = #tpu.dot_dimension_numbers<[1], [0], [0], [1], [0, 0, 1, 1], [], []>} : vector<28x128xbf16>, vector<128x128xbf16>, vector<28x128xf32> -> vector<28x128xf32>
    %41 = arith.addf %36, %40 : vector<28x128xf32>
    %c0_35 = arith.constant 0 : index
    %c0_36 = arith.constant 0 : index
    %c0_37 = arith.constant 0 : index
    %42 = vector.load %arg4[%c0_35, %c0_36, %c0_37] : memref<3x1x128xf32, #tpu.memory_space<vmem>>, vector<1x1x128xf32>
    %43 = vector.shape_cast %42 : vector<1x1x128xf32> to vector<1x128xf32>
    %44 = vector.broadcast %43 : vector<1x128xf32> to vector<28x128xf32>
    %45 = arith.addf %41, %44 : vector<28x128xf32>
    %cst_38 = arith.constant 0.000000e+00 : f32
    %46 = vector.broadcast %cst_38 : f32 to vector<28x128xf32>
    %47 = arith.maximumf %45, %46 : vector<28x128xf32>
    %cst_39 = arith.constant 0.000000e+00 : f32
    %48 = vector.broadcast %cst_39 : f32 to vector<28x128xf32>
    %49 = arith.select %15, %47, %48 : vector<28x128xi1>, vector<28x128xf32>
    %50 = arith.truncf %49 : vector<28x128xf32> to vector<28x128xbf16>
    %c16_40 = arith.constant 16 : index
    %c0_41 = arith.constant 0 : index
    %51 = vector.load %arg6[%c16_40, %c0_41] : memref<52x128xbf16, #tpu.memory_space<vmem>>, vector<28x128xbf16>
    tpu.vector_store %arg6[%c16_40, %c0_41], %50 {strides = array<i32>} : memref<52x128xbf16, #tpu.memory_space<vmem>>, vector<28x128xbf16>,
    %cst_42 = arith.constant 0.000000e+00 : f32
    %52 = vector.broadcast %cst_42 : f32 to vector<28x128xf32>
    %c14_43 = arith.constant 14 : index
    %c0_44 = arith.constant 0 : index
    %53 = vector.load %arg6[%c14_43, %c0_44] : memref<52x128xbf16, #tpu.memory_space<vmem>>, vector<28x128xbf16>
    %c1_45 = arith.constant 1 : index
    %c0_46 = arith.constant 0 : index
    %c0_47 = arith.constant 0 : index
    %c0_48 = arith.constant 0 : index
    %54 = vector.load %arg3[%c1_45, %c0_46, %c0_47, %c0_48] : memref<3x5x128x128xbf16, #tpu.memory_space<vmem>>, vector<1x1x128x128xbf16>
    %55 = vector.shape_cast %54 : vector<1x1x128x128xbf16> to vector<128x128xbf16>
    %cst_49 = arith.constant dense<0.000000e+00> : vector<28x128xf32>
    %56 = tpu.matmul %53, %55, %cst_49 {dimension_numbers = #tpu.dot_dimension_numbers<[1], [0], [0], [1], [0, 0, 1, 1], [], []>} : vector<28x128xbf16>, vector<128x128xbf16>, vector<28x128xf32> -> vector<28x128xf32>
    %57 = arith.addf %52, %56 : vector<28x128xf32>
    %c15_50 = arith.constant 15 : index
    %c0_51 = arith.constant 0 : index
    %58 = vector.load %arg6[%c15_50, %c0_51] : memref<52x128xbf16, #tpu.memory_space<vmem>>, vector<28x128xbf16>
    %c1_52 = arith.constant 1 : index
    %c1_53 = arith.constant 1 : index
    %c0_54 = arith.constant 0 : index
    %c0_55 = arith.constant 0 : index
    %59 = vector.load %arg3[%c1_52, %c1_53, %c0_54, %c0_55] : memref<3x5x128x128xbf16, #tpu.memory_space<vmem>>, vector<1x1x128x128xbf16>
    %60 = vector.shape_cast %59 : vector<1x1x128x128xbf16> to vector<128x128xbf16>
    %cst_56 = arith.constant dense<0.000000e+00> : vector<28x128xf32>
    %61 = tpu.matmul %58, %60, %cst_56 {dimension_numbers = #tpu.dot_dimension_numbers<[1], [0], [0], [1], [0, 0, 1, 1], [], []>} : vector<28x128xbf16>, vector<128x128xbf16>, vector<28x128xf32> -> vector<28x128xf32>
    %62 = arith.addf %57, %61 : vector<28x128xf32>
    %c16_57 = arith.constant 16 : index
    %c0_58 = arith.constant 0 : index
    %63 = vector.load %arg6[%c16_57, %c0_58] : memref<52x128xbf16, #tpu.memory_space<vmem>>, vector<28x128xbf16>
    %c1_59 = arith.constant 1 : index
    %c2_60 = arith.constant 2 : index
    %c0_61 = arith.constant 0 : index
    %c0_62 = arith.constant 0 : index
    %64 = vector.load %arg3[%c1_59, %c2_60, %c0_61, %c0_62] : memref<3x5x128x128xbf16, #tpu.memory_space<vmem>>, vector<1x1x128x128xbf16>
    %65 = vector.shape_cast %64 : vector<1x1x128x128xbf16> to vector<128x128xbf16>
    %cst_63 = arith.constant dense<0.000000e+00> : vector<28x128xf32>
    %66 = tpu.matmul %63, %65, %cst_63 {dimension_numbers = #tpu.dot_dimension_numbers<[1], [0], [0], [1], [0, 0, 1, 1], [], []>} : vector<28x128xbf16>, vector<128x128xbf16>, vector<28x128xf32> -> vector<28x128xf32>
    %67 = arith.addf %62, %66 : vector<28x128xf32>
    %c17_64 = arith.constant 17 : index
    %c0_65 = arith.constant 0 : index
    %68 = vector.load %arg6[%c17_64, %c0_65] : memref<52x128xbf16, #tpu.memory_space<vmem>>, vector<28x128xbf16>
    %c1_66 = arith.constant 1 : index
    %c3_67 = arith.constant 3 : index
    %c0_68 = arith.constant 0 : index
    %c0_69 = arith.constant 0 : index
    %69 = vector.load %arg3[%c1_66, %c3_67, %c0_68, %c0_69] : memref<3x5x128x128xbf16, #tpu.memory_space<vmem>>, vector<1x1x128x128xbf16>
    %70 = vector.shape_cast %69 : vector<1x1x128x128xbf16> to vector<128x128xbf16>
    %cst_70 = arith.constant dense<0.000000e+00> : vector<28x128xf32>
    %71 = tpu.matmul %68, %70, %cst_70 {dimension_numbers = #tpu.dot_dimension_numbers<[1], [0], [0], [1], [0, 0, 1, 1], [], []>} : vector<28x128xbf16>, vector<128x128xbf16>, vector<28x128xf32> -> vector<28x128xf32>
    %72 = arith.addf %67, %71 : vector<28x128xf32>
    %c18_71 = arith.constant 18 : index
    %c0_72 = arith.constant 0 : index
    %73 = vector.load %arg6[%c18_71, %c0_72] : memref<52x128xbf16, #tpu.memory_space<vmem>>, vector<28x128xbf16>
    %c1_73 = arith.constant 1 : index
    %c4_74 = arith.constant 4 : index
    %c0_75 = arith.constant 0 : index
    %c0_76 = arith.constant 0 : index
    %74 = vector.load %arg3[%c1_73, %c4_74, %c0_75, %c0_76] : memref<3x5x128x128xbf16, #tpu.memory_space<vmem>>, vector<1x1x128x128xbf16>
    %75 = vector.shape_cast %74 : vector<1x1x128x128xbf16> to vector<128x128xbf16>
    %cst_77 = arith.constant dense<0.000000e+00> : vector<28x128xf32>
    %76 = tpu.matmul %73, %75, %cst_77 {dimension_numbers = #tpu.dot_dimension_numbers<[1], [0], [0], [1], [0, 0, 1, 1], [], []>} : vector<28x128xbf16>, vector<128x128xbf16>, vector<28x128xf32> -> vector<28x128xf32>
    %77 = arith.addf %72, %76 : vector<28x128xf32>
    %c1_78 = arith.constant 1 : index
    %c0_79 = arith.constant 0 : index
    %c0_80 = arith.constant 0 : index
    %78 = vector.load %arg4[%c1_78, %c0_79, %c0_80] : memref<3x1x128xf32, #tpu.memory_space<vmem>>, vector<1x1x128xf32>
    %79 = vector.shape_cast %78 : vector<1x1x128xf32> to vector<1x128xf32>
    %80 = vector.broadcast %79 : vector<1x128xf32> to vector<28x128xf32>
    %81 = arith.addf %77, %80 : vector<28x128xf32>
    %cst_81 = arith.constant 0.000000e+00 : f32
    %82 = vector.broadcast %cst_81 : f32 to vector<28x128xf32>
    %83 = arith.maximumf %81, %82 : vector<28x128xf32>
    %cst_82 = arith.constant 0.000000e+00 : f32
    %84 = vector.broadcast %cst_82 : f32 to vector<28x128xf32>
    %85 = arith.select %15, %83, %84 : vector<28x128xi1>, vector<28x128xf32>
    %86 = arith.truncf %85 : vector<28x128xf32> to vector<28x128xbf16>
    %c16_83 = arith.constant 16 : index
    %c0_84 = arith.constant 0 : index
    %87 = vector.load %arg6[%c16_83, %c0_84] : memref<52x128xbf16, #tpu.memory_space<vmem>>, vector<28x128xbf16>
    tpu.vector_store %arg6[%c16_83, %c0_84], %86 {strides = array<i32>} : memref<52x128xbf16, #tpu.memory_space<vmem>>, vector<28x128xbf16>,
    %cst_85 = arith.constant 0.000000e+00 : f32
    %88 = vector.broadcast %cst_85 : f32 to vector<16x128xf32>
    %c20 = arith.constant 20 : index
    %c0_86 = arith.constant 0 : index
    %89 = vector.load %arg6[%c20, %c0_86] : memref<52x128xbf16, #tpu.memory_space<vmem>>, vector<16x128xbf16>
    %c2_87 = arith.constant 2 : index
    %c0_88 = arith.constant 0 : index
    %c0_89 = arith.constant 0 : index
    %c0_90 = arith.constant 0 : index
    %90 = vector.load %arg3[%c2_87, %c0_88, %c0_89, %c0_90] : memref<3x5x128x128xbf16, #tpu.memory_space<vmem>>, vector<1x1x128x128xbf16>
    %91 = vector.shape_cast %90 : vector<1x1x128x128xbf16> to vector<128x128xbf16>
    %cst_91 = arith.constant dense<0.000000e+00> : vector<16x128xf32>
    %92 = tpu.matmul %89, %91, %cst_91 {dimension_numbers = #tpu.dot_dimension_numbers<[1], [0], [0], [1], [0, 0, 1, 1], [], []>} : vector<16x128xbf16>, vector<128x128xbf16>, vector<16x128xf32> -> vector<16x128xf32>
    %93 = arith.addf %88, %92 : vector<16x128xf32>
    %c21 = arith.constant 21 : index
    %c0_92 = arith.constant 0 : index
    %94 = vector.load %arg6[%c21, %c0_92] : memref<52x128xbf16, #tpu.memory_space<vmem>>, vector<16x128xbf16>
    %c2_93 = arith.constant 2 : index
    %c1_94 = arith.constant 1 : index
    %c0_95 = arith.constant 0 : index
    %c0_96 = arith.constant 0 : index
    %95 = vector.load %arg3[%c2_93, %c1_94, %c0_95, %c0_96] : memref<3x5x128x128xbf16, #tpu.memory_space<vmem>>, vector<1x1x128x128xbf16>
    %96 = vector.shape_cast %95 : vector<1x1x128x128xbf16> to vector<128x128xbf16>
    %cst_97 = arith.constant dense<0.000000e+00> : vector<16x128xf32>
    %97 = tpu.matmul %94, %96, %cst_97 {dimension_numbers = #tpu.dot_dimension_numbers<[1], [0], [0], [1], [0, 0, 1, 1], [], []>} : vector<16x128xbf16>, vector<128x128xbf16>, vector<16x128xf32> -> vector<16x128xf32>
    %98 = arith.addf %93, %97 : vector<16x128xf32>
    %c22 = arith.constant 22 : index
    %c0_98 = arith.constant 0 : index
    %99 = vector.load %arg6[%c22, %c0_98] : memref<52x128xbf16, #tpu.memory_space<vmem>>, vector<16x128xbf16>
    %c2_99 = arith.constant 2 : index
    %c2_100 = arith.constant 2 : index
    %c0_101 = arith.constant 0 : index
    %c0_102 = arith.constant 0 : index
    %100 = vector.load %arg3[%c2_99, %c2_100, %c0_101, %c0_102] : memref<3x5x128x128xbf16, #tpu.memory_space<vmem>>, vector<1x1x128x128xbf16>
    %101 = vector.shape_cast %100 : vector<1x1x128x128xbf16> to vector<128x128xbf16>
    %cst_103 = arith.constant dense<0.000000e+00> : vector<16x128xf32>
    %102 = tpu.matmul %99, %101, %cst_103 {dimension_numbers = #tpu.dot_dimension_numbers<[1], [0], [0], [1], [0, 0, 1, 1], [], []>} : vector<16x128xbf16>, vector<128x128xbf16>, vector<16x128xf32> -> vector<16x128xf32>
    %103 = arith.addf %98, %102 : vector<16x128xf32>
    %c23 = arith.constant 23 : index
    %c0_104 = arith.constant 0 : index
    %104 = vector.load %arg6[%c23, %c0_104] : memref<52x128xbf16, #tpu.memory_space<vmem>>, vector<16x128xbf16>
    %c2_105 = arith.constant 2 : index
    %c3_106 = arith.constant 3 : index
    %c0_107 = arith.constant 0 : index
    %c0_108 = arith.constant 0 : index
    %105 = vector.load %arg3[%c2_105, %c3_106, %c0_107, %c0_108] : memref<3x5x128x128xbf16, #tpu.memory_space<vmem>>, vector<1x1x128x128xbf16>
    %106 = vector.shape_cast %105 : vector<1x1x128x128xbf16> to vector<128x128xbf16>
    %cst_109 = arith.constant dense<0.000000e+00> : vector<16x128xf32>
    %107 = tpu.matmul %104, %106, %cst_109 {dimension_numbers = #tpu.dot_dimension_numbers<[1], [0], [0], [1], [0, 0, 1, 1], [], []>} : vector<16x128xbf16>, vector<128x128xbf16>, vector<16x128xf32> -> vector<16x128xf32>
    %108 = arith.addf %103, %107 : vector<16x128xf32>
    %c24 = arith.constant 24 : index
    %c0_110 = arith.constant 0 : index
    %109 = vector.load %arg6[%c24, %c0_110] : memref<52x128xbf16, #tpu.memory_space<vmem>>, vector<16x128xbf16>
    %c2_111 = arith.constant 2 : index
    %c4_112 = arith.constant 4 : index
    %c0_113 = arith.constant 0 : index
    %c0_114 = arith.constant 0 : index
    %110 = vector.load %arg3[%c2_111, %c4_112, %c0_113, %c0_114] : memref<3x5x128x128xbf16, #tpu.memory_space<vmem>>, vector<1x1x128x128xbf16>
    %111 = vector.shape_cast %110 : vector<1x1x128x128xbf16> to vector<128x128xbf16>
    %cst_115 = arith.constant dense<0.000000e+00> : vector<16x128xf32>
    %112 = tpu.matmul %109, %111, %cst_115 {dimension_numbers = #tpu.dot_dimension_numbers<[1], [0], [0], [1], [0, 0, 1, 1], [], []>} : vector<16x128xbf16>, vector<128x128xbf16>, vector<16x128xf32> -> vector<16x128xf32>
    %113 = arith.addf %108, %112 : vector<16x128xf32>
    %c2_116 = arith.constant 2 : index
    %c0_117 = arith.constant 0 : index
    %c0_118 = arith.constant 0 : index
    %114 = vector.load %arg4[%c2_116, %c0_117, %c0_118] : memref<3x1x128xf32, #tpu.memory_space<vmem>>, vector<1x1x128xf32>
    %115 = vector.shape_cast %114 : vector<1x1x128xf32> to vector<1x128xf32>
    %116 = vector.broadcast %115 : vector<1x128xf32> to vector<16x128xf32>
    %117 = arith.addf %113, %116 : vector<16x128xf32>
    %cst_119 = arith.constant 0.000000e+00 : f32
    %118 = vector.broadcast %cst_119 : f32 to vector<16x128xf32>
    %119 = arith.maximumf %117, %118 : vector<16x128xf32>
    %c0_120 = arith.constant 0 : index
    %c0_121 = arith.constant 0 : index
    %c0_122 = arith.constant 0 : index
    %120 = vector.load %arg5[%c0_120, %c0_121, %c0_122] : memref<1x16x128xf32, #tpu.memory_space<vmem>>, vector<1x16x128xf32>
    %121 = vector.shape_cast %120 : vector<1x16x128xf32> to vector<16x128xf32>
    %122 = vector.shape_cast %119 : vector<16x128xf32> to vector<1x16x128xf32>
    tpu.vector_store %arg5[%c0_120, %c0_121, %c0_122], %122 {strides = array<i32>} : memref<1x16x128xf32, #tpu.memory_space<vmem>>, vector<1x16x128xf32>,
    return
  }
  func.func @transform_0(%arg0: i32, %arg1: i32) -> (i32, i32, i32, i32) {
    %c0_i32 = arith.constant 0 : i32
    %c0_i32_0 = arith.constant 0 : i32
    %c0_i32_1 = arith.constant 0 : i32
    return %arg0, %arg1, %c0_i32, %c0_i32_0 : i32, i32, i32, i32
  }
  func.func @transform_1(%arg0: i32, %arg1: i32) -> (i32, i32, i32, i32) {
    %c0_i32 = arith.constant 0 : i32
    %c0_i32_0 = arith.constant 0 : i32
    %c0_i32_1 = arith.constant 0 : i32
    %c0_i32_2 = arith.constant 0 : i32
    %c0_i32_3 = arith.constant 0 : i32
    return %c0_i32, %c0_i32_0, %c0_i32_1, %c0_i32_2 : i32, i32, i32, i32
  }
  func.func @transform_2(%arg0: i32, %arg1: i32) -> (i32, i32, i32) {
    %c0_i32 = arith.constant 0 : i32
    %c0_i32_0 = arith.constant 0 : i32
    %c0_i32_1 = arith.constant 0 : i32
    %c0_i32_2 = arith.constant 0 : i32
    return %c0_i32, %c0_i32_0, %c0_i32_1 : i32, i32, i32
  }
  func.func @transform_3(%arg0: i32, %arg1: i32) -> (i32, i32, i32) {
    %c0_i32 = arith.constant 0 : i32
    %c0_i32_0 = arith.constant 0 : i32
    return %arg0, %arg1, %c0_i32 : i32, i32, i32
  }
}

</mosaic_0001>

<llo_original>
// kernel: tpu_custom_call.1
$region0: #{tpu_custom_call.1}
  #allocation0 [shape = 'u32[]', space=smem, size = 0x4, offset = 0x4, fixed_abs, tag = 'smem constant byte address 0x4 - core index']
  #allocation1 [shape = 'u32[144,128]{1,0:T(1,128)}', space=vmem, size = 0x12000, scoped, tag = 'internal scratch']
  #allocation2 [shape = 'bf16[52,128]{1,0:T(8,128)(2,1)}', space=vmem, size = 0x3800, scoped, tag = 'scratch operand']
  %s0 = inlined_call_operand.vmem [shape: bf16[2,3,28,128], index: 0, kind: input, shape index: {}]
  %s1 = inlined_call_operand.hbm [shape: bf16[3,5,128,128], index: 1, kind: input, shape index: {}]
  %s2 = inlined_call_operand.vmem [shape: f32[3,1,128], index: 2, kind: input, shape index: {}]
  %s3 = inlined_call_operand.hbm [shape: f32[2,48,128], index: 3, kind: output, shape index: {}]
  %s4 = sld [smem:[#allocation0]]
  $region49: #{tpu_custom_call.1} parent=0
    _
  %s6 = ssub.s32 1, %s4
  %s7 = scalar_select 0, %s6, %s4
  $region1: #{tpu_custom_call.1} parent=0
    #allocation3 [shape = 'u8[491520]{0}', space=vmem, size = 0x78000, scoped, tag = 'input window, operand 1, single buffered']
    #allocation4 [shape = 's32[2]{0}', space=sflag, size = 0x8, scoped, tag = 'scoped memory for tpu_custom_call.1']
    #allocation5 [shape = 's32[2]{0}', space=sflag, size = 0x8, scoped, tag = 'scoped memory for tpu_custom_call.1']
    #allocation6 [shape = 'u8[16384]{0}', space=vmem, size = 0x4000, scoped, tag = 'output window, operand 0']
    %8 = vsyncpa [#allocation4], 0
    %9 = vsyncpa [#allocation5], 0
    %s10 = scalar_lea.sflag [#allocation5], 1
    %11 = vsyncpa %s10, 0
    loop: start=0, step=1, limit=8
    $region2: #{tpu_custom_call.1} parent=1 // loop_pre_header
      _
    $region3: #{tpu_custom_call.1} parent=1 // loop_header
      %s13 = sphi 0, %s17
      %p14 = scmp.ge.s32.totalorder %s13, 8
      %s20 = sphi 0, %s32
      %s21 = sphi 0, %s28
      %s22 = sphi 0, %s20
      %s23 = sphi 0, %s21
      %s24 = sphi 0, %s22
      %s25 = sphi 0, %s23
      %s37 = sphi 0, %s39
      %s40 = sphi 0, %s37
      %s41 = sphi 0, %s40
      %s57 = sphi 0, %s41
      %s61 = sphi 0, %s61
      %s63 = sphi 0, %s61
      %s64 = sphi 0, %s63
      %s78 = sphi 0, %s64
      %s82 = sphi 0, %s82
      %s84 = sphi 0, %s82
      %s85 = sphi 0, %s84
      %s99 = sphi 0, %s85
      %s107 = sphi 0, %s109
      %s110 = sphi 0, %s107
      %s111 = sphi 0, %s110
      %s127 = sphi 0, %s111
    $region4: #{tpu_custom_call.1} parent=1 // loop_header_branch
      %16 = sbr.rel (%p14) target = $region8
    $region5: #{tpu_custom_call.1} parent=1 // loop_body
      %s18 = ssub.s32 %s13, 1
      %s19 = ssub.s32 %s13, 2
      %s26 = sadd.s32 1, %s21
      %p27 = scmp.ge.s32.totalorder %s26, 3
      %s28 = scalar_select %p27, 0, %s26
      %s29 = sadd.s32 1, %s20
      %s30 = scalar_select %p27, %s29, %s20
      %p31 = scmp.ge.s32.totalorder %s30, 2
      %s32 = scalar_select %p31, 0, %s30
      %s33 = ssub.s32 %s20, %s32
      %s34 = ssub.s32 %s21, %s28
      %s35 = sor.u32 %s33, %s34
      %p36 = scmp.eq.s32.totalorder %s35, 0
      %s38 = sadd.s32 %s37, 1
      %s39 = scalar_select %p36, %s37, %s38
      %p42 = pneg %p36
      %p43 = scmp.eq.s32.totalorder %s13, 5
      %p44 = por %p42, %p43
      %p45 = scmp.ne.s32.totalorder %s37, %s40
      %p46 = scmp.eq.s32.totalorder %s13, 0
      %p47 = por %p45, %p46
      %p48 = scmp.ne.s32.totalorder %s37, %s40
      %p49 = scmp.eq.s32.totalorder %s18, 5
      %p50 = por %p48, %p49
      %p51 = scmp.ne.s32.totalorder %s40, %s41
      %p52 = scmp.eq.s32.totalorder %s18, 0
      %p53 = por %p51, %p52
      %p54 = scmp.ne.s32.totalorder %s40, %s41
      %p55 = scmp.eq.s32.totalorder %s19, 5
      %p56 = por %p54, %p55
      %p58 = scmp.ne.s32.totalorder %s41, %s57
      %p59 = scmp.eq.s32.totalorder %s19, 0
      %p60 = por %p58, %p59
      %s62 = sadd.s32 %s61, 1
      %p65 = scmp.eq.s32.totalorder %s13, 5
      %p66 = scmp.ne.s32.totalorder %s61, %s63
      %p67 = scmp.eq.s32.totalorder %s13, 0
      %p68 = por %p66, %p67
      %p69 = scmp.ne.s32.totalorder %s61, %s63
      %p70 = scmp.eq.s32.totalorder %s18, 5
      %p71 = por %p69, %p70
      %p72 = scmp.ne.s32.totalorder %s63, %s64
      %p73 = scmp.eq.s32.totalorder %s18, 0
      %p74 = por %p72, %p73
      %p75 = scmp.ne.s32.totalorder %s63, %s64
      %p76 = scmp.eq.s32.totalorder %s19, 5
      %p77 = por %p75, %p76
      %p79 = scmp.ne.s32.totalorder %s64, %s78
      %p80 = scmp.eq.s32.totalorder %s19, 0
      %p81 = por %p79, %p80
      %s83 = sadd.s32 %s82, 1
      %p86 = scmp.eq.s32.totalorder %s13, 5
      %p87 = scmp.ne.s32.totalorder %s82, %s84
      %p88 = scmp.eq.s32.totalorder %s13, 0
      %p89 = por %p87, %p88
      %p90 = scmp.ne.s32.totalorder %s82, %s84
      %p91 = scmp.eq.s32.totalorder %s18, 5
      %p92 = por %p90, %p91
      %p93 = scmp.ne.s32.totalorder %s84, %s85
      %p94 = scmp.eq.s32.totalorder %s18, 0
      %p95 = por %p93, %p94
      %p96 = scmp.ne.s32.totalorder %s84, %s85
      %p97 = scmp.eq.s32.totalorder %s19, 5
      %p98 = por %p96, %p97
      %p100 = scmp.ne.s32.totalorder %s85, %s99
      %p101 = scmp.eq.s32.totalorder %s19, 0
      %p102 = por %p100, %p101
      %s103 = ssub.s32 %s20, %s32
      %s104 = ssub.s32 %s21, %s28
      %s105 = sor.u32 %s103, %s104
      %p106 = scmp.eq.s32.totalorder %s105, 0
      %s108 = sadd.s32 %s107, 1
      %s109 = scalar_select %p106, %s107, %s108
      %p112 = pneg %p106
      %p113 = scmp.eq.s32.totalorder %s13, 5
      %p114 = por %p112, %p113
      %p115 = scmp.ne.s32.totalorder %s107, %s110
      %p116 = scmp.eq.s32.totalorder %s13, 0
      %p117 = por %p115, %p116
      %p118 = scmp.ne.s32.totalorder %s107, %s110
      %p119 = scmp.eq.s32.totalorder %s18, 5
      %p120 = por %p118, %p119
      %p121 = scmp.ne.s32.totalorder %s110, %s111
      %p122 = scmp.eq.s32.totalorder %s18, 0
      %p123 = por %p121, %p122
      %p124 = scmp.ne.s32.totalorder %s110, %s111
      %p125 = scmp.eq.s32.totalorder %s19, 5
      %p126 = por %p124, %p125
      %p128 = scmp.ne.s32.totalorder %s111, %s127
      %p129 = scmp.eq.s32.totalorder %s19, 0
      %p130 = por %p128, %p129
      %p131 = scmp.le.s32.totalorder 1, %s13
      %p132 = scmp.lt.s32.totalorder %s13, 7
      %p133 = pnand %p131, %p132
      %p134 = pneg %p133
      // Predicated region
      $region9: #{tpu_custom_call.1} parent=5 // pred_check
        _
      $region10: #{tpu_custom_call.1} parent=5 // pred_check_branch
        %136 = sbr.rel (%p133) target = $region12
      $region11: #{tpu_custom_call.1} parent=5 // pred_region
        %s137 = ssub.s32 %s13, 1
        // Predicated region
        $region13: #{tpu_custom_call.1} parent=11 // pred_check
          %p138 = pneg %p74
        $region14: #{tpu_custom_call.1} parent=11 // pred_check_branch
          %140 = sbr.rel (%p138) target = $region16
        $region15: #{tpu_custom_call.1} parent=11 // pred_region
          %s142 = ssub.s32 15360, 15360
          %143 = vsyncadd [#allocation4], %s142
          %s144 = sshll.u32 [#allocation3], 4
          %s145 = int_to_ptr.vmem [resolvable:$true] %s144
          %150 = dma.hbm_to_vmem [thread:$0]  %s1, 15360, %s145, [#allocation4], 64, 64, 4
        $region16: #{tpu_custom_call.1} parent=11 // pred_fallthru
          _
        // Predicated region
        $region17: #{tpu_custom_call.1} parent=11 // pred_check
          %p151 = pneg %p95
        $region18: #{tpu_custom_call.1} parent=11 // pred_check_branch
          %153 = sbr.rel (%p151) target = $region20
        $region19: #{tpu_custom_call.1} parent=11 // pred_region
          _
        $region20: #{tpu_custom_call.1} parent=11 // pred_fallthru
          _
      $region12: #{tpu_custom_call.1} parent=5 // pred_fallthru
        _
      %p154 = scmp.lt.s32.totalorder %s13, 6
      // Predicated region
      $region21: #{tpu_custom_call.1} parent=5 // pred_check
        %p155 = pneg %p154
      $region22: #{tpu_custom_call.1} parent=5 // pred_check_branch
        %157 = sbr.rel (%p155) target = $region24
      $region23: #{tpu_custom_call.1} parent=5 // pred_region
        // Predicated region
        $region25: #{tpu_custom_call.1} parent=23 // pred_check
          %p158 = pneg %p47
        $region26: #{tpu_custom_call.1} parent=23 // pred_check_branch
          %160 = sbr.rel (%p158) target = $region28
        $region27: #{tpu_custom_call.1} parent=23 // pred_region
          %p161 = scmp.lt.s32.totalorder %s20, 1
          %s162 = scalar_select %p161, %s20, 1
          %p163 = scmp.lt.s32.totalorder %s21, 2
          %s164 = scalar_select %p163, %s21, 2
          %s165 = smul.addr %s164, 4
          %s166 = smul.addr %s162, 12
          %s167 = sadd.s32 %s165, %s166
          %s168 = smul.addr %s167, 4
          %s169 = scalar_lea.vmem %s0, %s168
        $region28: #{tpu_custom_call.1} parent=23 // pred_fallthru
          _
      $region24: #{tpu_custom_call.1} parent=5 // pred_fallthru
        _
      %p170 = scmp.le.s32.totalorder 1, %s13
      %p171 = scmp.lt.s32.totalorder %s13, 7
      %p172 = pnand %p170, %p171
      %p173 = pneg %p172
      // Predicated region
      $region29: #{tpu_custom_call.1} parent=5 // pred_check
        _
      $region30: #{tpu_custom_call.1} parent=5 // pred_check_branch
        %175 = sbr.rel (%p172) target = $region32
      $region31: #{tpu_custom_call.1} parent=5 // pred_region
        %s176 = ssub.s32 %s13, 1
        // Predicated region
        $region33: #{tpu_custom_call.1} parent=31 // pred_check
          %p177 = pneg %p74
        $region34: #{tpu_custom_call.1} parent=31 // pred_check_branch
          %179 = sbr.rel (%p177) target = $region36
        $region35: #{tpu_custom_call.1} parent=31 // pred_region
          %180 = dma.done [#allocation4], 15360
        $region36: #{tpu_custom_call.1} parent=31 // pred_fallthru
          _
        %p181 = scmp.lt.s32.totalorder %s22, 1
        %s182 = scalar_select %p181, %s22, 1
        %p183 = scmp.lt.s32.totalorder %s23, 2
        %s184 = scalar_select %p183, %s23, 2
        %s185 = smul.addr %s184, 4
        %s186 = smul.addr %s182, 12
        %s187 = sadd.s32 %s185, %s186
        %s188 = smul.addr %s187, 4
        %s189 = scalar_lea.vmem %s0, %s188
        %p190 = pneg %p53
        %p191 = pneg %p50
        %p192 = pneg %p74
        %p193 = pneg %p71
        %p194 = pneg %p95
        %p195 = pneg %p92
        %p196 = pneg %p123
        %p197 = pneg %p120
        %s198 = sand.u32 %s110, 1
        %s199 = scalar_lea.sflag [#allocation5], %s198
        %s200 = sand.u32 %s110, 1
        %s201 = smul.addr %s200, 16
        %s202 = scalar_lea.vmem [#allocation6], %s201
        %p203 = scmp.lt.s32.totalorder %s22, 1
        %s204 = scalar_select %p203, %s22, 1
        %p205 = scmp.lt.s32.totalorder %s23, 2
        %s206 = scalar_select %p205, %s23, 2
        %s207 = smul.addr %s206, 4
        %s208 = smul.addr %s204, 12
        %s209 = sadd.s32 %s207, %s208
        %s210 = smul.addr %s209, 4
        %s211 = scalar_lea.vmem %s0, %s210
        %s212 = smul.u32 2, %s23
        %214 = vst [vmem:[#allocation2 + $0x4] sm:$0x8] 0
        %215 = vst [vmem:[#allocation2 + $0x14] sm:$0x4] 0
        %v216 = vld [vmem:[%s211] sm:$0xf]
        %v217 = vld [vmem:[%s211 + $0x4] sm:$0xf]
        %v218 = vld [vmem:[%s211 + $0x8] sm:$0xf]
        %v219 = vld [vmem:[%s211 + $0xc] sm:$0x3]
        %220 = vst [vmem:[#allocation2 + $0x8] sm:$0xf] %v216
        %221 = vst [vmem:[#allocation2 + $0xc] sm:$0xf] %v217
        %222 = vst [vmem:[#allocation2 + $0x10] sm:$0xf] %v218
        %223 = vst [vmem:[#allocation2 + $0x14] sm:$0x3] %v219
        %v224 = vlaneseq
        %v225 = vshrl.u32 %v224, 7
        %v226 = vadd.s32 %v225, 8
        %v227 = vadd.s32 %v225, 16
        %v228 = vadd.s32 %v225, 24
        %s229 = smul.u32 %s23, 16
        %s230 = ssub.s32 %s229, 6
        %v231 = vstv %s230
        %v232 = vadd.s32 %v225, %v231
        %v233 = vadd.s32 %v226, %v231
        %v234 = vadd.s32 %v227, %v231
        %v235 = vadd.s32 %v228, %v231
        %vm236 = vcmp.ge.s32.totalorder %v232, 0
        %vm237 = vcmp.ge.s32.totalorder %v233, 0
        %vm238 = vcmp.ge.s32.totalorder %v234, 0
        %vm239 = vcmp.ge.s32.totalorder %v235, 0
        %vm240 = vcmp.lt.s32.totalorder %v232, 40
        %vm241 = vcmp.lt.s32.totalorder %v233, 40
        %vm242 = vcmp.lt.s32.totalorder %v234, 40
        %vm243 = vcmp.lt.s32.totalorder %v235, 40
        %vm244 = vmand %vm236, %vm240
        %vm245 = vmand %vm237, %vm241
        %vm246 = vmand %vm238, %vm242
        %vm247 = vmand %vm239, %vm243
        %v248 = vld [vmem:[#allocation2 + $0x4] sm:$0x8]
        %v249 = vld [vmem:[#allocation2 + $0x8] sm:$0xf]
        %v250 = vld [vmem:[#allocation2 + $0xc] sm:$0xf]
        %v251 = vld [vmem:[#allocation2 + $0x10] sm:$0xf]
        %v252 = vld [vmem:[#allocation2 + $0x14] sm:$0x1]
        %v253 = vld [vmem:[#allocation3] sm:$0xf]
        %v254 = vld [vmem:[#allocation3 + $0x4] sm:$0xf]
        %v255 = vld [vmem:[#allocation3 + $0x8] sm:$0xf]
        %v256 = vld [vmem:[#allocation3 + $0xc] sm:$0xf]
        %v257 = vld [vmem:[#allocation3 + $0x10] sm:$0xf]
        %v258 = vld [vmem:[#allocation3 + $0x14] sm:$0xf]
        %v259 = vld [vmem:[#allocation3 + $0x18] sm:$0xf]
        %v260 = vld [vmem:[#allocation3 + $0x1c] sm:$0xf]
        %v261 = vld [vmem:[#allocation3 + $0x20] sm:$0xf]
        %v262 = vld [vmem:[#allocation3 + $0x24] sm:$0xf]
        %v263 = vld [vmem:[#allocation3 + $0x28] sm:$0xf]
        %v264 = vld [vmem:[#allocation3 + $0x2c] sm:$0xf]
        %v265 = vld [vmem:[#allocation3 + $0x30] sm:$0xf]
        %v266 = vld [vmem:[#allocation3 + $0x34] sm:$0xf]
        %v267 = vld [vmem:[#allocation3 + $0x38] sm:$0xf]
        %v268 = vld [vmem:[#allocation3 + $0x3c] sm:$0xf]
        %v269 = vld [vmem:[#allocation2 + $0x14] sm:$0x3]
        %s270 = scalar_lea.vmem [#allocation3], 64
        %v271 = vld [vmem:[%s270] sm:$0xf]
        %v272 = vld [vmem:[%s270 + $0x4] sm:$0xf]
        %v273 = vld [vmem:[%s270 + $0x8] sm:$0xf]
        %v274 = vld [vmem:[%s270 + $0xc] sm:$0xf]
        %v275 = vld [vmem:[%s270 + $0x10] sm:$0xf]
        %v276 = vld [vmem:[%s270 + $0x14] sm:$0xf]
        %v277 = vld [vmem:[%s270 + $0x18] sm:$0xf]
        %v278 = vld [vmem:[%s270 + $0x1c] sm:$0xf]
        %v279 = vld [vmem:[%s270 + $0x20] sm:$0xf]
        %v280 = vld [vmem:[%s270 + $0x24] sm:$0xf]
        %v281 = vld [vmem:[%s270 + $0x28] sm:$0xf]
        %v282 = vld [vmem:[%s270 + $0x2c] sm:$0xf]
        %v283 = vld [vmem:[%s270 + $0x30] sm:$0xf]
        %v284 = vld [vmem:[%s270 + $0x34] sm:$0xf]
        %v285 = vld [vmem:[%s270 + $0x38] sm:$0xf]
        %v286 = vld [vmem:[%s270 + $0x3c] sm:$0xf]
        %v292 = vunpack.c.l.b16 %v248
        %v293 = vunpack.c.l.b16 %v249
        %v294 = vunpack.c.l.b16 %v250
        %v295 = vunpack.c.l.b16 %v251
        %v296 = vunpack.c.l.b16 %v269
        %v297 = vpack.c.b16 %v293, %v292
        %v298 = vpack.c.b16 %v295, %v294
        %v299 = vpack.c.b16 %v296, %v296
        %vm300 = vsmask.f32 4352
        %v302 = vshrl.u32 %v297, 16
        %v304 = vrot.slane %v302, 3
        %v305 = vshll.u32 %v297, 16
        %v307 = vrot.slane %v305, 4
        %v308 = vor.u32 %v304, %v307
        %v310 = vshrl.u32 %v298, 16
        %v312 = vrot.slane %v310, 3
        %v313 = vshll.u32 %v298, 16
        %v315 = vrot.slane %v313, 4
        %v316 = vor.u32 %v312, %v315
        %v317 = vsel %vm300, %v308, %v316
        %v319 = vshrl.u32 %v299, 16
        %v321 = vrot.slane %v319, 3
        %v322 = vshll.u32 %v299, 16
        %v324 = vrot.slane %v322, 4
        %v325 = vor.u32 %v321, %v324
        %v326 = vsel %vm300, %v316, %v325
        %v345 = vunpack.c.l.b16 %v271
        %v346 = vunpack.c.l.b16 %v272
        %v347 = vunpack.c.l.b16 %v273
        %v348 = vunpack.c.l.b16 %v274
        %v349 = vunpack.c.l.b16 %v275
        %v350 = vunpack.c.l.b16 %v276
        %v351 = vunpack.c.l.b16 %v277
        %v352 = vunpack.c.l.b16 %v278
        %v353 = vunpack.c.l.b16 %v279
        %v354 = vunpack.c.l.b16 %v280
        %v355 = vunpack.c.l.b16 %v281
        %v356 = vunpack.c.l.b16 %v282
        %v357 = vunpack.c.l.b16 %v283
        %v358 = vunpack.c.l.b16 %v284
        %v359 = vunpack.c.l.b16 %v285
        %v360 = vunpack.c.l.b16 %v286
        %v361 = vpack.c.b16 %v346, %v345
        %v362 = vpack.c.b16 %v348, %v347
        %v363 = vpack.c.b16 %v350, %v349
        %v364 = vpack.c.b16 %v352, %v351
        %v365 = vpack.c.b16 %v354, %v353
        %v366 = vpack.c.b16 %v356, %v355
        %v367 = vpack.c.b16 %v358, %v357
        %v368 = vpack.c.b16 %v360, %v359
        %377 = vmatprep.subr.bf16.mxu0 0
        %378 = vmatpush1.bf16.msra.mxu0 %v361
        %379 = vmatprep.subr.bf16.mxu0 0
        %380 = vmatpush1.bf16.msra.mxu0 %v362
        %381 = vmatprep.subr.bf16.mxu0 0
        %382 = vmatpush1.bf16.msra.mxu0 %v363
        %383 = vmatprep.subr.bf16.mxu0 0
        %384 = vmatpush1.bf16.msra.mxu0 %v364
        %385 = vmatprep.subr.bf16.mxu0 0
        %386 = vmatpush1.bf16.msra.mxu0 %v365
        %387 = vmatprep.subr.bf16.mxu0 0
        %388 = vmatpush1.bf16.msra.mxu0 %v366
        %389 = vmatprep.subr.bf16.mxu0 0
        %390 = vmatpush1.bf16.msra.mxu0 %v367
        %391 = vmatprep.subr.bf16.mxu0 0
        %392 = vmatpush1.bf16.msra.mxu0 %v368
        %393 = vmatprep.subr.bf16.mxu0 0
        %394 = vmatpush1.bf16.msra.mxu0 0
        %395 = vmatprep.subr.bf16.mxu0 0
        %396 = vmatpush1.bf16.msra.mxu0 0
        %397 = vmatprep.subr.bf16.mxu0 0
        %398 = vmatpush1.bf16.msra.mxu0 0
        %399 = vmatprep.subr.bf16.mxu0 0
        %400 = vmatpush1.bf16.msra.mxu0 0
        %401 = vmatprep.subr.bf16.mxu0 0
        %402 = vmatpush1.bf16.msra.mxu0 0
        %403 = vmatprep.subr.bf16.mxu0 0
        %404 = vmatpush1.bf16.msra.mxu0 0
        %405 = vmatprep.subr.bf16.mxu0 0
        %406 = vmatpush1.bf16.msra.mxu0 0
        %407 = vmatprep.subr.bf16.mxu0 0
        %408 = vmatpush1.bf16.msra.mxu0 0
        %409 = vmatprep.mubr.bf16.mxu0 0
        %410 = vmatmul.mubr.bf16.gmra.mrb[0].mxu0 %v317
        %v411 = vpop.f32.mrb[0].mxu0
        %v412 = vadd.f32 0.0, %v411
        %v413 = vpop.f32.mrb[0].mxu0
        %v414 = vpop.f32.mrb[0].mxu0
        %v415 = vadd.f32 0.0, %v414
        %v416 = vpop.f32.mrb[0].mxu0
        %417 = vmatprep.mubr.bf16.mxu0 0
        %418 = vmatmul.mubr.bf16.gmra.mrb[0].mxu0 %v326
        %v419 = vpop.f32.mrb[0].mxu0
        %v420 = vadd.f32 0.0, %v419
        %v421 = vpop.f32.mrb[0].mxu0
        %v422 = vpop.f32.mrb[0].mxu0
        %v423 = vadd.f32 0.0, %v422
        %v424 = vpop.f32.mrb[0].mxu0
        %425 = vdwg.mxu0
        %v427 = vunpack.c.l.b16 %v252
        %v428 = vpack.c.b16 %v427, %v427
        %vm429 = vcmask 1044480
        %v430 = vrot.slane %v297, 3
        %v431 = vrot.slane %v298, 3
        %v432 = vsel %vm429, %v430, %v431
        %v433 = vrot.slane %v428, 3
        %v434 = vsel %vm429, %v431, %v433
        %v453 = vunpack.c.l.b16 %v253
        %v454 = vunpack.c.l.b16 %v254
        %v455 = vunpack.c.l.b16 %v255
        %v456 = vunpack.c.l.b16 %v256
        %v457 = vunpack.c.l.b16 %v257
        %v458 = vunpack.c.l.b16 %v258
        %v459 = vunpack.c.l.b16 %v259
        %v460 = vunpack.c.l.b16 %v260
        %v461 = vunpack.c.l.b16 %v261
        %v462 = vunpack.c.l.b16 %v262
        %v463 = vunpack.c.l.b16 %v263
        %v464 = vunpack.c.l.b16 %v264
        %v465 = vunpack.c.l.b16 %v265
        %v466 = vunpack.c.l.b16 %v266
        %v467 = vunpack.c.l.b16 %v267
        %v468 = vunpack.c.l.b16 %v268
        %v469 = vpack.c.b16 %v454, %v453
        %v470 = vpack.c.b16 %v456, %v455
        %v471 = vpack.c.b16 %v458, %v457
        %v472 = vpack.c.b16 %v460, %v459
        %v473 = vpack.c.b16 %v462, %v461
        %v474 = vpack.c.b16 %v464, %v463
        %v475 = vpack.c.b16 %v466, %v465
        %v476 = vpack.c.b16 %v468, %v467
        %485 = vmatprep.subr.bf16.mxu0 0
        %486 = vmatpush1.bf16.msra.mxu0 %v469
        %487 = vmatprep.subr.bf16.mxu0 0
        %488 = vmatpush1.bf16.msra.mxu0 %v470
        %489 = vmatprep.subr.bf16.mxu0 0
        %490 = vmatpush1.bf16.msra.mxu0 %v471
        %491 = vmatprep.subr.bf16.mxu0 0
        %492 = vmatpush1.bf16.msra.mxu0 %v472
        %493 = vmatprep.subr.bf16.mxu0 0
        %494 = vmatpush1.bf16.msra.mxu0 %v473
        %495 = vmatprep.subr.bf16.mxu0 0
        %496 = vmatpush1.bf16.msra.mxu0 %v474
        %497 = vmatprep.subr.bf16.mxu0 0
        %498 = vmatpush1.bf16.msra.mxu0 %v475
        %499 = vmatprep.subr.bf16.mxu0 0
        %500 = vmatpush1.bf16.msra.mxu0 %v476
        %501 = vmatprep.subr.bf16.mxu0 0
        %502 = vmatpush1.bf16.msra.mxu0 0
        %503 = vmatprep.subr.bf16.mxu0 0
        %504 = vmatpush1.bf16.msra.mxu0 0
        %505 = vmatprep.subr.bf16.mxu0 0
        %506 = vmatpush1.bf16.msra.mxu0 0
        %507 = vmatprep.subr.bf16.mxu0 0
        %508 = vmatpush1.bf16.msra.mxu0 0
        %509 = vmatprep.subr.bf16.mxu0 0
        %510 = vmatpush1.bf16.msra.mxu0 0
        %511 = vmatprep.subr.bf16.mxu0 0
        %512 = vmatpush1.bf16.msra.mxu0 0
        %513 = vmatprep.subr.bf16.mxu0 0
        %514 = vmatpush1.bf16.msra.mxu0 0
        %515 = vmatprep.subr.bf16.mxu0 0
        %516 = vmatpush1.bf16.msra.mxu0 0
        %517 = vmatprep.mubr.bf16.mxu0 0
        %518 = vmatmul.mubr.bf16.gmra.mrb[0].mxu0 %v432
        %v519 = vpop.f32.mrb[0].mxu0
        %v520 = vadd.f32 %v412, %v519
        %v521 = vpop.f32.mrb[0].mxu0
        %v522 = vpop.f32.mrb[0].mxu0
        %v523 = vadd.f32 %v415, %v522
        %v524 = vpop.f32.mrb[0].mxu0
        %525 = vmatprep.mubr.bf16.mxu0 0
        %526 = vmatmul.mubr.bf16.gmra.mrb[0].mxu0 %v434
        %v527 = vpop.f32.mrb[0].mxu0
        %v528 = vadd.f32 %v420, %v527
        %v529 = vpop.f32.mrb[0].mxu0
        %v530 = vpop.f32.mrb[0].mxu0
        %v531 = vadd.f32 %v423, %v530
        %v532 = vpop.f32.mrb[0].mxu0
        %533 = vdwg.mxu0
        %s534 = scalar_lea.vmem [#allocation3], 128
        %v535 = vld [vmem:[%s534] sm:$0xf]
        %v536 = vld [vmem:[%s534 + $0x4] sm:$0xf]
        %v537 = vld [vmem:[%s534 + $0x8] sm:$0xf]
        %v538 = vld [vmem:[%s534 + $0xc] sm:$0xf]
        %v539 = vld [vmem:[%s534 + $0x10] sm:$0xf]
        %v540 = vld [vmem:[%s534 + $0x14] sm:$0xf]
        %v541 = vld [vmem:[%s534 + $0x18] sm:$0xf]
        %v542 = vld [vmem:[%s534 + $0x1c] sm:$0xf]
        %v543 = vld [vmem:[%s534 + $0x20] sm:$0xf]
        %v544 = vld [vmem:[%s534 + $0x24] sm:$0xf]
        %v545 = vld [vmem:[%s534 + $0x28] sm:$0xf]
        %v546 = vld [vmem:[%s534 + $0x2c] sm:$0xf]
        %v547 = vld [vmem:[%s534 + $0x30] sm:$0xf]
        %v548 = vld [vmem:[%s534 + $0x34] sm:$0xf]
        %v549 = vld [vmem:[%s534 + $0x38] sm:$0xf]
        %v550 = vld [vmem:[%s534 + $0x3c] sm:$0xf]
        %v551 = vpack.c.b16 %v294, %v293
        %v552 = vpack.c.b16 %v296, %v295
        %v571 = vunpack.c.l.b16 %v535
        %v572 = vunpack.c.l.b16 %v536
        %v573 = vunpack.c.l.b16 %v537
        %v574 = vunpack.c.l.b16 %v538
        %v575 = vunpack.c.l.b16 %v539
        %v576 = vunpack.c.l.b16 %v540
        %v577 = vunpack.c.l.b16 %v541
        %v578 = vunpack.c.l.b16 %v542
        %v579 = vunpack.c.l.b16 %v543
        %v580 = vunpack.c.l.b16 %v544
        %v581 = vunpack.c.l.b16 %v545
        %v582 = vunpack.c.l.b16 %v546
        %v583 = vunpack.c.l.b16 %v547
        %v584 = vunpack.c.l.b16 %v548
        %v585 = vunpack.c.l.b16 %v549
        %v586 = vunpack.c.l.b16 %v550
        %v587 = vpack.c.b16 %v572, %v571
        %v588 = vpack.c.b16 %v574, %v573
        %v589 = vpack.c.b16 %v576, %v575
        %v590 = vpack.c.b16 %v578, %v577
        %v591 = vpack.c.b16 %v580, %v579
        %v592 = vpack.c.b16 %v582, %v581
        %v593 = vpack.c.b16 %v584, %v583
        %v594 = vpack.c.b16 %v586, %v585
        %603 = vmatprep.subr.bf16.mxu0 0
        %604 = vmatpush1.bf16.msra.mxu0 %v587
        %605 = vmatprep.subr.bf16.mxu0 0
        %606 = vmatpush1.bf16.msra.mxu0 %v588
        %607 = vmatprep.subr.bf16.mxu0 0
        %608 = vmatpush1.bf16.msra.mxu0 %v589
        %609 = vmatprep.subr.bf16.mxu0 0
        %610 = vmatpush1.bf16.msra.mxu0 %v590
        %611 = vmatprep.subr.bf16.mxu0 0
        %612 = vmatpush1.bf16.msra.mxu0 %v591
        %613 = vmatprep.subr.bf16.mxu0 0
        %614 = vmatpush1.bf16.msra.mxu0 %v592
        %615 = vmatprep.subr.bf16.mxu0 0
        %616 = vmatpush1.bf16.msra.mxu0 %v593
        %617 = vmatprep.subr.bf16.mxu0 0
        %618 = vmatpush1.bf16.msra.mxu0 %v594
        %619 = vmatprep.subr.bf16.mxu0 0
        %620 = vmatpush1.bf16.msra.mxu0 0
        %621 = vmatprep.subr.bf16.mxu0 0
        %622 = vmatpush1.bf16.msra.mxu0 0
        %623 = vmatprep.subr.bf16.mxu0 0
        %624 = vmatpush1.bf16.msra.mxu0 0
        %625 = vmatprep.subr.bf16.mxu0 0
        %626 = vmatpush1.bf16.msra.mxu0 0
        %627 = vmatprep.subr.bf16.mxu0 0
        %628 = vmatpush1.bf16.msra.mxu0 0
        %629 = vmatprep.subr.bf16.mxu0 0
        %630 = vmatpush1.bf16.msra.mxu0 0
        %631 = vmatprep.subr.bf16.mxu0 0
        %632 = vmatpush1.bf16.msra.mxu0 0
        %633 = vmatprep.subr.bf16.mxu0 0
        %634 = vmatpush1.bf16.msra.mxu0 0
        %635 = vmatprep.mubr.bf16.mxu0 0
        %636 = vmatmul.mubr.bf16.gmra.mrb[0].mxu0 %v551
        %v637 = vpop.f32.mrb[0].mxu0
        %v638 = vadd.f32 0.0, %v637
        %v639 = vpop.f32.mrb[0].mxu0
        %v640 = vpop.f32.mrb[0].mxu0
        %v641 = vadd.f32 0.0, %v640
        %v642 = vpop.f32.mrb[0].mxu0
        %643 = vmatprep.mubr.bf16.mxu0 0
        %644 = vmatmul.mubr.bf16.gmra.mrb[0].mxu0 %v552
        %v645 = vpop.f32.mrb[0].mxu0
        %v646 = vadd.f32 0.0, %v645
        %v647 = vpop.f32.mrb[0].mxu0
        %v648 = vpop.f32.mrb[0].mxu0
        %v649 = vadd.f32 0.0, %v648
        %v650 = vpop.f32.mrb[0].mxu0
        %651 = vdwg.mxu0
        %v652 = vadd.f32 %v520, %v638
        %v653 = vadd.f32 %v523, %v641
        %v654 = vadd.f32 %v528, %v646
        %v655 = vadd.f32 %v531, %v649
        %v656 = vld [vmem:[#allocation2 + $0x14] sm:$0x7]
        %s657 = scalar_lea.vmem [#allocation3], 192
        %v658 = vld [vmem:[%s657] sm:$0xf]
        %v659 = vld [vmem:[%s657 + $0x4] sm:$0xf]
        %v660 = vld [vmem:[%s657 + $0x8] sm:$0xf]
        %v661 = vld [vmem:[%s657 + $0xc] sm:$0xf]
        %v662 = vld [vmem:[%s657 + $0x10] sm:$0xf]
        %v663 = vld [vmem:[%s657 + $0x14] sm:$0xf]
        %v664 = vld [vmem:[%s657 + $0x18] sm:$0xf]
        %v665 = vld [vmem:[%s657 + $0x1c] sm:$0xf]
        %v666 = vld [vmem:[%s657 + $0x20] sm:$0xf]
        %v667 = vld [vmem:[%s657 + $0x24] sm:$0xf]
        %v668 = vld [vmem:[%s657 + $0x28] sm:$0xf]
        %v669 = vld [vmem:[%s657 + $0x2c] sm:$0xf]
        %v670 = vld [vmem:[%s657 + $0x30] sm:$0xf]
        %v671 = vld [vmem:[%s657 + $0x34] sm:$0xf]
        %v672 = vld [vmem:[%s657 + $0x38] sm:$0xf]
        %v673 = vld [vmem:[%s657 + $0x3c] sm:$0xf]
        %v675 = vunpack.c.l.b16 %v656
        %v676 = vpack.c.b16 %v675, %v295
        %vm677 = vsmask.f32 7424
        %v679 = vshrl.u32 %v551, 16
        %v681 = vshll.u32 %v551, 16
        %v683 = vrot.slane %v681, 1
        %v684 = vor.u32 %v679, %v683
        %v686 = vshll.u32 %v676, 16
        %v688 = vrot.slane %v686, 1
        %v689 = vsel %vm677, %v684, %v688
        %v690 = vshrl.u32 %v676, 16
        %v692 = vor.u32 %v690, %v688
        %v711 = vunpack.c.l.b16 %v658
        %v712 = vunpack.c.l.b16 %v659
        %v713 = vunpack.c.l.b16 %v660
        %v714 = vunpack.c.l.b16 %v661
        %v715 = vunpack.c.l.b16 %v662
        %v716 = vunpack.c.l.b16 %v663
        %v717 = vunpack.c.l.b16 %v664
        %v718 = vunpack.c.l.b16 %v665
        %v719 = vunpack.c.l.b16 %v666
        %v720 = vunpack.c.l.b16 %v667
        %v721 = vunpack.c.l.b16 %v668
        %v722 = vunpack.c.l.b16 %v669
        %v723 = vunpack.c.l.b16 %v670
        %v724 = vunpack.c.l.b16 %v671
        %v725 = vunpack.c.l.b16 %v672
        %v726 = vunpack.c.l.b16 %v673
        %v727 = vpack.c.b16 %v712, %v711
        %v728 = vpack.c.b16 %v714, %v713
        %v729 = vpack.c.b16 %v716, %v715
        %v730 = vpack.c.b16 %v718, %v717
        %v731 = vpack.c.b16 %v720, %v719
        %v732 = vpack.c.b16 %v722, %v721
        %v733 = vpack.c.b16 %v724, %v723
        %v734 = vpack.c.b16 %v726, %v725
        %743 = vmatprep.subr.bf16.mxu0 0
        %744 = vmatpush1.bf16.msra.mxu0 %v727
        %745 = vmatprep.subr.bf16.mxu0 0
        %746 = vmatpush1.bf16.msra.mxu0 %v728
        %747 = vmatprep.subr.bf16.mxu0 0
        %748 = vmatpush1.bf16.msra.mxu0 %v729
        %749 = vmatprep.subr.bf16.mxu0 0
        %750 = vmatpush1.bf16.msra.mxu0 %v730
        %751 = vmatprep.subr.bf16.mxu0 0
        %752 = vmatpush1.bf16.msra.mxu0 %v731
        %753 = vmatprep.subr.bf16.mxu0 0
        %754 = vmatpush1.bf16.msra.mxu0 %v732
        %755 = vmatprep.subr.bf16.mxu0 0
        %756 = vmatpush1.bf16.msra.mxu0 %v733
        %757 = vmatprep.subr.bf16.mxu0 0
        %758 = vmatpush1.bf16.msra.mxu0 %v734
        %759 = vmatprep.subr.bf16.mxu0 0
        %760 = vmatpush1.bf16.msra.mxu0 0
        %761 = vmatprep.subr.bf16.mxu0 0
        %762 = vmatpush1.bf16.msra.mxu0 0
        %763 = vmatprep.subr.bf16.mxu0 0
        %764 = vmatpush1.bf16.msra.mxu0 0
        %765 = vmatprep.subr.bf16.mxu0 0
        %766 = vmatpush1.bf16.msra.mxu0 0
        %767 = vmatprep.subr.bf16.mxu0 0
        %768 = vmatpush1.bf16.msra.mxu0 0
        %769 = vmatprep.subr.bf16.mxu0 0
        %770 = vmatpush1.bf16.msra.mxu0 0
        %771 = vmatprep.subr.bf16.mxu0 0
        %772 = vmatpush1.bf16.msra.mxu0 0
        %773 = vmatprep.subr.bf16.mxu0 0
        %774 = vmatpush1.bf16.msra.mxu0 0
        %775 = vmatprep.mubr.bf16.mxu0 0
        %776 = vmatmul.mubr.bf16.gmra.mrb[0].mxu0 %v689
        %v777 = vpop.f32.mrb[0].mxu0
        %v778 = vadd.f32 0.0, %v777
        %v779 = vpop.f32.mrb[0].mxu0
        %v780 = vpop.f32.mrb[0].mxu0
        %v781 = vadd.f32 0.0, %v780
        %v782 = vpop.f32.mrb[0].mxu0
        %783 = vmatprep.mubr.bf16.mxu0 0
        %784 = vmatmul.mubr.bf16.gmra.mrb[0].mxu0 %v692
        %v785 = vpop.f32.mrb[0].mxu0
        %v786 = vadd.f32 0.0, %v785
        %v787 = vpop.f32.mrb[0].mxu0
        %v788 = vpop.f32.mrb[0].mxu0
        %v789 = vadd.f32 0.0, %v788
        %v790 = vpop.f32.mrb[0].mxu0
        %791 = vdwg.mxu0
        %v792 = vadd.f32 %v652, %v778
        %v793 = vadd.f32 %v653, %v781
        %v794 = vadd.f32 %v654, %v786
        %v795 = vadd.f32 %v655, %v789
        %v796 = vld [vmem:[#allocation2 + $0x8] sm:$0xe]
        %s797 = scalar_lea.vmem [#allocation3], 256
        %v798 = vld [vmem:[%s797] sm:$0xf]
        %v799 = vld [vmem:[%s797 + $0x4] sm:$0xf]
        %v800 = vld [vmem:[%s797 + $0x8] sm:$0xf]
        %v801 = vld [vmem:[%s797 + $0xc] sm:$0xf]
        %v802 = vld [vmem:[%s797 + $0x10] sm:$0xf]
        %v803 = vld [vmem:[%s797 + $0x14] sm:$0xf]
        %v804 = vld [vmem:[%s797 + $0x18] sm:$0xf]
        %v805 = vld [vmem:[%s797 + $0x1c] sm:$0xf]
        %v806 = vld [vmem:[%s797 + $0x20] sm:$0xf]
        %v807 = vld [vmem:[%s797 + $0x24] sm:$0xf]
        %v808 = vld [vmem:[%s797 + $0x28] sm:$0xf]
        %v809 = vld [vmem:[%s797 + $0x2c] sm:$0xf]
        %v810 = vld [vmem:[%s797 + $0x30] sm:$0xf]
        %v811 = vld [vmem:[%s797 + $0x34] sm:$0xf]
        %v812 = vld [vmem:[%s797 + $0x38] sm:$0xf]
        %v813 = vld [vmem:[%s797 + $0x3c] sm:$0xf]
        %v815 = vunpack.c.l.b16 %v796
        %v816 = vpack.c.b16 %v294, %v815
        %vm817 = vcmask 1046528
        %v818 = vrot.slane %v816, 1
        %v819 = vrot.slane %v676, 1
        %v820 = vsel %vm817, %v818, %v819
        %v839 = vunpack.c.l.b16 %v798
        %v840 = vunpack.c.l.b16 %v799
        %v841 = vunpack.c.l.b16 %v800
        %v842 = vunpack.c.l.b16 %v801
        %v843 = vunpack.c.l.b16 %v802
        %v844 = vunpack.c.l.b16 %v803
        %v845 = vunpack.c.l.b16 %v804
        %v846 = vunpack.c.l.b16 %v805
        %v847 = vunpack.c.l.b16 %v806
        %v848 = vunpack.c.l.b16 %v807
        %v849 = vunpack.c.l.b16 %v808
        %v850 = vunpack.c.l.b16 %v809
        %v851 = vunpack.c.l.b16 %v810
        %v852 = vunpack.c.l.b16 %v811
        %v853 = vunpack.c.l.b16 %v812
        %v854 = vunpack.c.l.b16 %v813
        %v855 = vpack.c.b16 %v840, %v839
        %v856 = vpack.c.b16 %v842, %v841
        %v857 = vpack.c.b16 %v844, %v843
        %v858 = vpack.c.b16 %v846, %v845
        %v859 = vpack.c.b16 %v848, %v847
        %v860 = vpack.c.b16 %v850, %v849
        %v861 = vpack.c.b16 %v852, %v851
        %v862 = vpack.c.b16 %v854, %v853
        %871 = vmatprep.subr.bf16.mxu0 0
        %872 = vmatpush1.bf16.msra.mxu0 %v855
        %873 = vmatprep.subr.bf16.mxu0 0
        %874 = vmatpush1.bf16.msra.mxu0 %v856
        %875 = vmatprep.subr.bf16.mxu0 0
        %876 = vmatpush1.bf16.msra.mxu0 %v857
        %877 = vmatprep.subr.bf16.mxu0 0
        %878 = vmatpush1.bf16.msra.mxu0 %v858
        %879 = vmatprep.subr.bf16.mxu0 0
        %880 = vmatpush1.bf16.msra.mxu0 %v859
        %881 = vmatprep.subr.bf16.mxu0 0
        %882 = vmatpush1.bf16.msra.mxu0 %v860
        %883 = vmatprep.subr.bf16.mxu0 0
        %884 = vmatpush1.bf16.msra.mxu0 %v861
        %885 = vmatprep.subr.bf16.mxu0 0
        %886 = vmatpush1.bf16.msra.mxu0 %v862
        %887 = vmatprep.subr.bf16.mxu0 0
        %888 = vmatpush1.bf16.msra.mxu0 0
        %889 = vmatprep.subr.bf16.mxu0 0
        %890 = vmatpush1.bf16.msra.mxu0 0
        %891 = vmatprep.subr.bf16.mxu0 0
        %892 = vmatpush1.bf16.msra.mxu0 0
        %893 = vmatprep.subr.bf16.mxu0 0
        %894 = vmatpush1.bf16.msra.mxu0 0
        %895 = vmatprep.subr.bf16.mxu0 0
        %896 = vmatpush1.bf16.msra.mxu0 0
        %897 = vmatprep.subr.bf16.mxu0 0
        %898 = vmatpush1.bf16.msra.mxu0 0
        %899 = vmatprep.subr.bf16.mxu0 0
        %900 = vmatpush1.bf16.msra.mxu0 0
        %901 = vmatprep.subr.bf16.mxu0 0
        %902 = vmatpush1.bf16.msra.mxu0 0
        %903 = vmatprep.mubr.bf16.mxu0 0
        %904 = vmatmul.mubr.bf16.gmra.mrb[0].mxu0 %v820
        %v905 = vpop.f32.mrb[0].mxu0
        %v906 = vadd.f32 0.0, %v905
        %v907 = vpop.f32.mrb[0].mxu0
        %v908 = vpop.f32.mrb[0].mxu0
        %v909 = vadd.f32 0.0, %v908
        %v910 = vpop.f32.mrb[0].mxu0
        %911 = vmatprep.mubr.bf16.mxu0 0
        %912 = vmatmul.mubr.bf16.gmra.mrb[0].mxu0 %v819
        %v913 = vpop.f32.mrb[0].mxu0
        %v914 = vadd.f32 0.0, %v913
        %v915 = vpop.f32.mrb[0].mxu0
        %v916 = vpop.f32.mrb[0].mxu0
        %v917 = vadd.f32 0.0, %v916
        %v918 = vpop.f32.mrb[0].mxu0
        %919 = vdwg.mxu0
        %v920 = vadd.f32 %v792, %v906
        %v921 = vadd.f32 %v793, %v909
        %v922 = vadd.f32 %v794, %v914
        %v923 = vadd.f32 %v795, %v917
        %v924 = vld [vmem:[%s2] sm:$0x1]
        %v926 = vlaneseq
        %v927 = vshrl.u32 %v926, 7
        %v928 = vsub.s32 0, %v927
        %v929 = vrot.slane %v924, %v928
        %v931 = vadd.f32 %v920, %v929
        %v932 = vadd.f32 %v921, %v929
        %v933 = vadd.f32 %v922, %v929
        %v934 = vadd.f32 %v923, %v929
        %v935 = vmax.f32 %v931, 0.0
        %v936 = vmax.f32 %v932, 0.0
        %v937 = vmax.f32 %v933, 0.0
        %v938 = vmax.f32 %v934, 0.0
        %v939 = vsel %vm244, %v935, 0.0
        %v940 = vsel %vm245, %v936, 0.0
        %v941 = vsel %vm246, %v937, 0.0
        %v942 = vsel %vm247, %v938, 0.0
        %v943 = vpack.c.bf16 %v940, %v939
        %v944 = vpack.c.bf16 %v942, %v941
        %v947 = vunpack.c.l.b16 %v943
        %v948 = vunpack.c.h.b16 %v943
        %v949 = vunpack.c.l.b16 %v944
        %v950 = vunpack.c.h.b16 %v944
        %v951 = vpack.c.b16 %v947, %v947
        %v952 = vpack.c.b16 %v948, %v948
        %v953 = vpack.c.b16 %v949, %v949
        %v954 = vpack.c.b16 %v950, %v950
        %959 = vst [vmem:[#allocation2 + $0x8] sm:$0xf] %v951
        %960 = vst [vmem:[#allocation2 + $0xc] sm:$0xf] %v952
        %961 = vst [vmem:[#allocation2 + $0x10] sm:$0xf] %v953
        %962 = vst [vmem:[#allocation2 + $0x14] sm:$0x3] %v954
        %v963 = vld [vmem:[#allocation2 + $0x4] sm:$0x8]
        %v964 = vld [vmem:[#allocation2 + $0x8] sm:$0xf]
        %v965 = vld [vmem:[#allocation2 + $0xc] sm:$0xf]
        %v966 = vld [vmem:[#allocation2 + $0x10] sm:$0xf]
        %v967 = vld [vmem:[#allocation2 + $0x14] sm:$0x1]
        %s968 = scalar_lea.vmem [#allocation3], 320
        %v969 = vld [vmem:[%s968] sm:$0xf]
        %v970 = vld [vmem:[%s968 + $0x4] sm:$0xf]
        %v971 = vld [vmem:[%s968 + $0x8] sm:$0xf]
        %v972 = vld [vmem:[%s968 + $0xc] sm:$0xf]
        %v973 = vld [vmem:[%s968 + $0x10] sm:$0xf]
        %v974 = vld [vmem:[%s968 + $0x14] sm:$0xf]
        %v975 = vld [vmem:[%s968 + $0x18] sm:$0xf]
        %v976 = vld [vmem:[%s968 + $0x1c] sm:$0xf]
        %v977 = vld [vmem:[%s968 + $0x20] sm:$0xf]
        %v978 = vld [vmem:[%s968 + $0x24] sm:$0xf]
        %v979 = vld [vmem:[%s968 + $0x28] sm:$0xf]
        %v980 = vld [vmem:[%s968 + $0x2c] sm:$0xf]
        %v981 = vld [vmem:[%s968 + $0x30] sm:$0xf]
        %v982 = vld [vmem:[%s968 + $0x34] sm:$0xf]
        %v983 = vld [vmem:[%s968 + $0x38] sm:$0xf]
        %v984 = vld [vmem:[%s968 + $0x3c] sm:$0xf]
        %v985 = vld [vmem:[#allocation2 + $0x14] sm:$0x3]
        %s986 = scalar_lea.vmem [#allocation3], 384
        %v987 = vld [vmem:[%s986] sm:$0xf]
        %v988 = vld [vmem:[%s986 + $0x4] sm:$0xf]
        %v989 = vld [vmem:[%s986 + $0x8] sm:$0xf]
        %v990 = vld [vmem:[%s986 + $0xc] sm:$0xf]
        %v991 = vld [vmem:[%s986 + $0x10] sm:$0xf]
        %v992 = vld [vmem:[%s986 + $0x14] sm:$0xf]
        %v993 = vld [vmem:[%s986 + $0x18] sm:$0xf]
        %v994 = vld [vmem:[%s986 + $0x1c] sm:$0xf]
        %v995 = vld [vmem:[%s986 + $0x20] sm:$0xf]
        %v996 = vld [vmem:[%s986 + $0x24] sm:$0xf]
        %v997 = vld [vmem:[%s986 + $0x28] sm:$0xf]
        %v998 = vld [vmem:[%s986 + $0x2c] sm:$0xf]
        %v999 = vld [vmem:[%s986 + $0x30] sm:$0xf]
        %v1000 = vld [vmem:[%s986 + $0x34] sm:$0xf]
        %v1001 = vld [vmem:[%s986 + $0x38] sm:$0xf]
        %v1002 = vld [vmem:[%s986 + $0x3c] sm:$0xf]
        %v1008 = vunpack.c.l.b16 %v963
        %v1009 = vunpack.c.l.b16 %v964
        %v1010 = vunpack.c.l.b16 %v965
        %v1011 = vunpack.c.l.b16 %v966
        %v1012 = vunpack.c.l.b16 %v985
        %v1013 = vpack.c.b16 %v1009, %v1008
        %v1014 = vpack.c.b16 %v1011, %v1010
        %v1015 = vpack.c.b16 %v1012, %v1012
        %v1017 = vshrl.u32 %v1013, 16
        %v1019 = vrot.slane %v1017, 3
        %v1020 = vshll.u32 %v1013, 16
        %v1022 = vrot.slane %v1020, 4
        %v1023 = vor.u32 %v1019, %v1022
        %v1025 = vshrl.u32 %v1014, 16
        %v1027 = vrot.slane %v1025, 3
        %v1028 = vshll.u32 %v1014, 16
        %v1030 = vrot.slane %v1028, 4
        %v1031 = vor.u32 %v1027, %v1030
        %v1032 = vsel %vm300, %v1023, %v1031
        %v1034 = vshrl.u32 %v1015, 16
        %v1036 = vrot.slane %v1034, 3
        %v1037 = vshll.u32 %v1015, 16
        %v1039 = vrot.slane %v1037, 4
        %v1040 = vor.u32 %v1036, %v1039
        %v1041 = vsel %vm300, %v1031, %v1040
        %v1060 = vunpack.c.l.b16 %v987
        %v1061 = vunpack.c.l.b16 %v988
        %v1062 = vunpack.c.l.b16 %v989
        %v1063 = vunpack.c.l.b16 %v990
        %v1064 = vunpack.c.l.b16 %v991
        %v1065 = vunpack.c.l.b16 %v992
        %v1066 = vunpack.c.l.b16 %v993
        %v1067 = vunpack.c.l.b16 %v994
        %v1068 = vunpack.c.l.b16 %v995
        %v1069 = vunpack.c.l.b16 %v996
        %v1070 = vunpack.c.l.b16 %v997
        %v1071 = vunpack.c.l.b16 %v998
        %v1072 = vunpack.c.l.b16 %v999
        %v1073 = vunpack.c.l.b16 %v1000
        %v1074 = vunpack.c.l.b16 %v1001
        %v1075 = vunpack.c.l.b16 %v1002
        %v1076 = vpack.c.b16 %v1061, %v1060
        %v1077 = vpack.c.b16 %v1063, %v1062
        %v1078 = vpack.c.b16 %v1065, %v1064
        %v1079 = vpack.c.b16 %v1067, %v1066
        %v1080 = vpack.c.b16 %v1069, %v1068
        %v1081 = vpack.c.b16 %v1071, %v1070
        %v1082 = vpack.c.b16 %v1073, %v1072
        %v1083 = vpack.c.b16 %v1075, %v1074
        %1092 = vmatprep.subr.bf16.mxu0 0
        %1093 = vmatpush1.bf16.msra.mxu0 %v1076
        %1094 = vmatprep.subr.bf16.mxu0 0
        %1095 = vmatpush1.bf16.msra.mxu0 %v1077
        %1096 = vmatprep.subr.bf16.mxu0 0
        %1097 = vmatpush1.bf16.msra.mxu0 %v1078
        %1098 = vmatprep.subr.bf16.mxu0 0
        %1099 = vmatpush1.bf16.msra.mxu0 %v1079
        %1100 = vmatprep.subr.bf16.mxu0 0
        %1101 = vmatpush1.bf16.msra.mxu0 %v1080
        %1102 = vmatprep.subr.bf16.mxu0 0
        %1103 = vmatpush1.bf16.msra.mxu0 %v1081
        %1104 = vmatprep.subr.bf16.mxu0 0
        %1105 = vmatpush1.bf16.msra.mxu0 %v1082
        %1106 = vmatprep.subr.bf16.mxu0 0
        %1107 = vmatpush1.bf16.msra.mxu0 %v1083
        %1108 = vmatprep.subr.bf16.mxu0 0
        %1109 = vmatpush1.bf16.msra.mxu0 0
        %1110 = vmatprep.subr.bf16.mxu0 0
        %1111 = vmatpush1.bf16.msra.mxu0 0
        %1112 = vmatprep.subr.bf16.mxu0 0
        %1113 = vmatpush1.bf16.msra.mxu0 0
        %1114 = vmatprep.subr.bf16.mxu0 0
        %1115 = vmatpush1.bf16.msra.mxu0 0
        %1116 = vmatprep.subr.bf16.mxu0 0
        %1117 = vmatpush1.bf16.msra.mxu0 0
        %1118 = vmatprep.subr.bf16.mxu0 0
        %1119 = vmatpush1.bf16.msra.mxu0 0
        %1120 = vmatprep.subr.bf16.mxu0 0
        %1121 = vmatpush1.bf16.msra.mxu0 0
        %1122 = vmatprep.subr.bf16.mxu0 0
        %1123 = vmatpush1.bf16.msra.mxu0 0
        %1124 = vmatprep.mubr.bf16.mxu0 0
        %1125 = vmatmul.mubr.bf16.gmra.mrb[0].mxu0 %v1032
        %v1126 = vpop.f32.mrb[0].mxu0
        %v1127 = vadd.f32 0.0, %v1126
        %v1128 = vpop.f32.mrb[0].mxu0
        %v1129 = vpop.f32.mrb[0].mxu0
        %v1130 = vadd.f32 0.0, %v1129
        %v1131 = vpop.f32.mrb[0].mxu0
        %1132 = vmatprep.mubr.bf16.mxu0 0
        %1133 = vmatmul.mubr.bf16.gmra.mrb[0].mxu0 %v1041
        %v1134 = vpop.f32.mrb[0].mxu0
        %v1135 = vadd.f32 0.0, %v1134
        %v1136 = vpop.f32.mrb[0].mxu0
        %v1137 = vpop.f32.mrb[0].mxu0
        %v1138 = vadd.f32 0.0, %v1137
        %v1139 = vpop.f32.mrb[0].mxu0
        %1140 = vdwg.mxu0
        %v1142 = vunpack.c.l.b16 %v967
        %v1143 = vpack.c.b16 %v1142, %v1142
        %v1144 = vrot.slane %v1013, 3
        %v1145 = vrot.slane %v1014, 3
        %v1146 = vsel %vm429, %v1144, %v1145
        %v1147 = vrot.slane %v1143, 3
        %v1148 = vsel %vm429, %v1145, %v1147
        %v1167 = vunpack.c.l.b16 %v969
        %v1168 = vunpack.c.l.b16 %v970
        %v1169 = vunpack.c.l.b16 %v971
        %v1170 = vunpack.c.l.b16 %v972
        %v1171 = vunpack.c.l.b16 %v973
        %v1172 = vunpack.c.l.b16 %v974
        %v1173 = vunpack.c.l.b16 %v975
        %v1174 = vunpack.c.l.b16 %v976
        %v1175 = vunpack.c.l.b16 %v977
        %v1176 = vunpack.c.l.b16 %v978
        %v1177 = vunpack.c.l.b16 %v979
        %v1178 = vunpack.c.l.b16 %v980
        %v1179 = vunpack.c.l.b16 %v981
        %v1180 = vunpack.c.l.b16 %v982
        %v1181 = vunpack.c.l.b16 %v983
        %v1182 = vunpack.c.l.b16 %v984
        %v1183 = vpack.c.b16 %v1168, %v1167
        %v1184 = vpack.c.b16 %v1170, %v1169
        %v1185 = vpack.c.b16 %v1172, %v1171
        %v1186 = vpack.c.b16 %v1174, %v1173
        %v1187 = vpack.c.b16 %v1176, %v1175
        %v1188 = vpack.c.b16 %v1178, %v1177
        %v1189 = vpack.c.b16 %v1180, %v1179
        %v1190 = vpack.c.b16 %v1182, %v1181
        %1199 = vmatprep.subr.bf16.mxu0 0
        %1200 = vmatpush1.bf16.msra.mxu0 %v1183
        %1201 = vmatprep.subr.bf16.mxu0 0
        %1202 = vmatpush1.bf16.msra.mxu0 %v1184
        %1203 = vmatprep.subr.bf16.mxu0 0
        %1204 = vmatpush1.bf16.msra.mxu0 %v1185
        %1205 = vmatprep.subr.bf16.mxu0 0
        %1206 = vmatpush1.bf16.msra.mxu0 %v1186
        %1207 = vmatprep.subr.bf16.mxu0 0
        %1208 = vmatpush1.bf16.msra.mxu0 %v1187
        %1209 = vmatprep.subr.bf16.mxu0 0
        %1210 = vmatpush1.bf16.msra.mxu0 %v1188
        %1211 = vmatprep.subr.bf16.mxu0 0
        %1212 = vmatpush1.bf16.msra.mxu0 %v1189
        %1213 = vmatprep.subr.bf16.mxu0 0
        %1214 = vmatpush1.bf16.msra.mxu0 %v1190
        %1215 = vmatprep.subr.bf16.mxu0 0
        %1216 = vmatpush1.bf16.msra.mxu0 0
        %1217 = vmatprep.subr.bf16.mxu0 0
        %1218 = vmatpush1.bf16.msra.mxu0 0
        %1219 = vmatprep.subr.bf16.mxu0 0
        %1220 = vmatpush1.bf16.msra.mxu0 0
        %1221 = vmatprep.subr.bf16.mxu0 0
        %1222 = vmatpush1.bf16.msra.mxu0 0
        %1223 = vmatprep.subr.bf16.mxu0 0
        %1224 = vmatpush1.bf16.msra.mxu0 0
        %1225 = vmatprep.subr.bf16.mxu0 0
        %1226 = vmatpush1.bf16.msra.mxu0 0
        %1227 = vmatprep.subr.bf16.mxu0 0
        %1228 = vmatpush1.bf16.msra.mxu0 0
        %1229 = vmatprep.subr.bf16.mxu0 0
        %1230 = vmatpush1.bf16.msra.mxu0 0
        %1231 = vmatprep.mubr.bf16.mxu0 0
        %1232 = vmatmul.mubr.bf16.gmra.mrb[0].mxu0 %v1146
        %v1233 = vpop.f32.mrb[0].mxu0
        %v1234 = vadd.f32 %v1127, %v1233
        %v1235 = vpop.f32.mrb[0].mxu0
        %v1236 = vpop.f32.mrb[0].mxu0
        %v1237 = vadd.f32 %v1130, %v1236
        %v1238 = vpop.f32.mrb[0].mxu0
        %1239 = vmatprep.mubr.bf16.mxu0 0
        %1240 = vmatmul.mubr.bf16.gmra.mrb[0].mxu0 %v1148
        %v1241 = vpop.f32.mrb[0].mxu0
        %v1242 = vadd.f32 %v1135, %v1241
        %v1243 = vpop.f32.mrb[0].mxu0
        %v1244 = vpop.f32.mrb[0].mxu0
        %v1245 = vadd.f32 %v1138, %v1244
        %v1246 = vpop.f32.mrb[0].mxu0
        %1247 = vdwg.mxu0
        %s1248 = scalar_lea.vmem [#allocation3], 448
        %v1249 = vld [vmem:[%s1248] sm:$0xf]
        %v1250 = vld [vmem:[%s1248 + $0x4] sm:$0xf]
        %v1251 = vld [vmem:[%s1248 + $0x8] sm:$0xf]
        %v1252 = vld [vmem:[%s1248 + $0xc] sm:$0xf]
        %v1253 = vld [vmem:[%s1248 + $0x10] sm:$0xf]
        %v1254 = vld [vmem:[%s1248 + $0x14] sm:$0xf]
        %v1255 = vld [vmem:[%s1248 + $0x18] sm:$0xf]
        %v1256 = vld [vmem:[%s1248 + $0x1c] sm:$0xf]
        %v1257 = vld [vmem:[%s1248 + $0x20] sm:$0xf]
        %v1258 = vld [vmem:[%s1248 + $0x24] sm:$0xf]
        %v1259 = vld [vmem:[%s1248 + $0x28] sm:$0xf]
        %v1260 = vld [vmem:[%s1248 + $0x2c] sm:$0xf]
        %v1261 = vld [vmem:[%s1248 + $0x30] sm:$0xf]
        %v1262 = vld [vmem:[%s1248 + $0x34] sm:$0xf]
        %v1263 = vld [vmem:[%s1248 + $0x38] sm:$0xf]
        %v1264 = vld [vmem:[%s1248 + $0x3c] sm:$0xf]
        %v1265 = vpack.c.b16 %v1010, %v1009
        %v1266 = vpack.c.b16 %v1012, %v1011
        %v1285 = vunpack.c.l.b16 %v1249
        %v1286 = vunpack.c.l.b16 %v1250
        %v1287 = vunpack.c.l.b16 %v1251
        %v1288 = vunpack.c.l.b16 %v1252
        %v1289 = vunpack.c.l.b16 %v1253
        %v1290 = vunpack.c.l.b16 %v1254
        %v1291 = vunpack.c.l.b16 %v1255
        %v1292 = vunpack.c.l.b16 %v1256
        %v1293 = vunpack.c.l.b16 %v1257
        %v1294 = vunpack.c.l.b16 %v1258
        %v1295 = vunpack.c.l.b16 %v1259
        %v1296 = vunpack.c.l.b16 %v1260
        %v1297 = vunpack.c.l.b16 %v1261
        %v1298 = vunpack.c.l.b16 %v1262
        %v1299 = vunpack.c.l.b16 %v1263
        %v1300 = vunpack.c.l.b16 %v1264
        %v1301 = vpack.c.b16 %v1286, %v1285
        %v1302 = vpack.c.b16 %v1288, %v1287
        %v1303 = vpack.c.b16 %v1290, %v1289
        %v1304 = vpack.c.b16 %v1292, %v1291
        %v1305 = vpack.c.b16 %v1294, %v1293
        %v1306 = vpack.c.b16 %v1296, %v1295
        %v1307 = vpack.c.b16 %v1298, %v1297
        %v1308 = vpack.c.b16 %v1300, %v1299
        %1317 = vmatprep.subr.bf16.mxu0 0
        %1318 = vmatpush1.bf16.msra.mxu0 %v1301
        %1319 = vmatprep.subr.bf16.mxu0 0
        %1320 = vmatpush1.bf16.msra.mxu0 %v1302
        %1321 = vmatprep.subr.bf16.mxu0 0
        %1322 = vmatpush1.bf16.msra.mxu0 %v1303
        %1323 = vmatprep.subr.bf16.mxu0 0
        %1324 = vmatpush1.bf16.msra.mxu0 %v1304
        %1325 = vmatprep.subr.bf16.mxu0 0
        %1326 = vmatpush1.bf16.msra.mxu0 %v1305
        %1327 = vmatprep.subr.bf16.mxu0 0
        %1328 = vmatpush1.bf16.msra.mxu0 %v1306
        %1329 = vmatprep.subr.bf16.mxu0 0
        %1330 = vmatpush1.bf16.msra.mxu0 %v1307
        %1331 = vmatprep.subr.bf16.mxu0 0
        %1332 = vmatpush1.bf16.msra.mxu0 %v1308
        %1333 = vmatprep.subr.bf16.mxu0 0
        %1334 = vmatpush1.bf16.msra.mxu0 0
        %1335 = vmatprep.subr.bf16.mxu0 0
        %1336 = vmatpush1.bf16.msra.mxu0 0
        %1337 = vmatprep.subr.bf16.mxu0 0
        %1338 = vmatpush1.bf16.msra.mxu0 0
        %1339 = vmatprep.subr.bf16.mxu0 0
        %1340 = vmatpush1.bf16.msra.mxu0 0
        %1341 = vmatprep.subr.bf16.mxu0 0
        %1342 = vmatpush1.bf16.msra.mxu0 0
        %1343 = vmatprep.subr.bf16.mxu0 0
        %1344 = vmatpush1.bf16.msra.mxu0 0
        %1345 = vmatprep.subr.bf16.mxu0 0
        %1346 = vmatpush1.bf16.msra.mxu0 0
        %1347 = vmatprep.subr.bf16.mxu0 0
        %1348 = vmatpush1.bf16.msra.mxu0 0
        %1349 = vmatprep.mubr.bf16.mxu0 0
        %1350 = vmatmul.mubr.bf16.gmra.mrb[0].mxu0 %v1265
        %v1351 = vpop.f32.mrb[0].mxu0
        %v1352 = vadd.f32 0.0, %v1351
        %v1353 = vpop.f32.mrb[0].mxu0
        %v1354 = vpop.f32.mrb[0].mxu0
        %v1355 = vadd.f32 0.0, %v1354
        %v1356 = vpop.f32.mrb[0].mxu0
        %1357 = vmatprep.mubr.bf16.mxu0 0
        %1358 = vmatmul.mubr.bf16.gmra.mrb[0].mxu0 %v1266
        %v1359 = vpop.f32.mrb[0].mxu0
        %v1360 = vadd.f32 0.0, %v1359
        %v1361 = vpop.f32.mrb[0].mxu0
        %v1362 = vpop.f32.mrb[0].mxu0
        %v1363 = vadd.f32 0.0, %v1362
        %v1364 = vpop.f32.mrb[0].mxu0
        %1365 = vdwg.mxu0
        %v1366 = vadd.f32 %v1234, %v1352
        %v1367 = vadd.f32 %v1237, %v1355
        %v1368 = vadd.f32 %v1242, %v1360
        %v1369 = vadd.f32 %v1245, %v1363
        %v1370 = vld [vmem:[#allocation2 + $0x14] sm:$0x7]
        %s1371 = scalar_lea.vmem [#allocation3], 512
        %v1372 = vld [vmem:[%s1371] sm:$0xf]
        %v1373 = vld [vmem:[%s1371 + $0x4] sm:$0xf]
        %v1374 = vld [vmem:[%s1371 + $0x8] sm:$0xf]
        %v1375 = vld [vmem:[%s1371 + $0xc] sm:$0xf]
        %v1376 = vld [vmem:[%s1371 + $0x10] sm:$0xf]
        %v1377 = vld [vmem:[%s1371 + $0x14] sm:$0xf]
        %v1378 = vld [vmem:[%s1371 + $0x18] sm:$0xf]
        %v1379 = vld [vmem:[%s1371 + $0x1c] sm:$0xf]
        %v1380 = vld [vmem:[%s1371 + $0x20] sm:$0xf]
        %v1381 = vld [vmem:[%s1371 + $0x24] sm:$0xf]
        %v1382 = vld [vmem:[%s1371 + $0x28] sm:$0xf]
        %v1383 = vld [vmem:[%s1371 + $0x2c] sm:$0xf]
        %v1384 = vld [vmem:[%s1371 + $0x30] sm:$0xf]
        %v1385 = vld [vmem:[%s1371 + $0x34] sm:$0xf]
        %v1386 = vld [vmem:[%s1371 + $0x38] sm:$0xf]
        %v1387 = vld [vmem:[%s1371 + $0x3c] sm:$0xf]
        %v1389 = vunpack.c.l.b16 %v1370
        %v1390 = vpack.c.b16 %v1389, %v1011
        %v1392 = vshrl.u32 %v1265, 16
        %v1394 = vshll.u32 %v1265, 16
        %v1396 = vrot.slane %v1394, 1
        %v1397 = vor.u32 %v1392, %v1396
        %v1399 = vshll.u32 %v1390, 16
        %v1401 = vrot.slane %v1399, 1
        %v1402 = vsel %vm677, %v1397, %v1401
        %v1403 = vshrl.u32 %v1390, 16
        %v1405 = vor.u32 %v1403, %v1401
        %v1424 = vunpack.c.l.b16 %v1372
        %v1425 = vunpack.c.l.b16 %v1373
        %v1426 = vunpack.c.l.b16 %v1374
        %v1427 = vunpack.c.l.b16 %v1375
        %v1428 = vunpack.c.l.b16 %v1376
        %v1429 = vunpack.c.l.b16 %v1377
        %v1430 = vunpack.c.l.b16 %v1378
        %v1431 = vunpack.c.l.b16 %v1379
        %v1432 = vunpack.c.l.b16 %v1380
        %v1433 = vunpack.c.l.b16 %v1381
        %v1434 = vunpack.c.l.b16 %v1382
        %v1435 = vunpack.c.l.b16 %v1383
        %v1436 = vunpack.c.l.b16 %v1384
        %v1437 = vunpack.c.l.b16 %v1385
        %v1438 = vunpack.c.l.b16 %v1386
        %v1439 = vunpack.c.l.b16 %v1387
        %v1440 = vpack.c.b16 %v1425, %v1424
        %v1441 = vpack.c.b16 %v1427, %v1426
        %v1442 = vpack.c.b16 %v1429, %v1428
        %v1443 = vpack.c.b16 %v1431, %v1430
        %v1444 = vpack.c.b16 %v1433, %v1432
        %v1445 = vpack.c.b16 %v1435, %v1434
        %v1446 = vpack.c.b16 %v1437, %v1436
        %v1447 = vpack.c.b16 %v1439, %v1438
        %1456 = vmatprep.subr.bf16.mxu0 0
        %1457 = vmatpush1.bf16.msra.mxu0 %v1440
        %1458 = vmatprep.subr.bf16.mxu0 0
        %1459 = vmatpush1.bf16.msra.mxu0 %v1441
        %1460 = vmatprep.subr.bf16.mxu0 0
        %1461 = vmatpush1.bf16.msra.mxu0 %v1442
        %1462 = vmatprep.subr.bf16.mxu0 0
        %1463 = vmatpush1.bf16.msra.mxu0 %v1443
        %1464 = vmatprep.subr.bf16.mxu0 0
        %1465 = vmatpush1.bf16.msra.mxu0 %v1444
        %1466 = vmatprep.subr.bf16.mxu0 0
        %1467 = vmatpush1.bf16.msra.mxu0 %v1445
        %1468 = vmatprep.subr.bf16.mxu0 0
        %1469 = vmatpush1.bf16.msra.mxu0 %v1446
        %1470 = vmatprep.subr.bf16.mxu0 0
        %1471 = vmatpush1.bf16.msra.mxu0 %v1447
        %1472 = vmatprep.subr.bf16.mxu0 0
        %1473 = vmatpush1.bf16.msra.mxu0 0
        %1474 = vmatprep.subr.bf16.mxu0 0
        %1475 = vmatpush1.bf16.msra.mxu0 0
        %1476 = vmatprep.subr.bf16.mxu0 0
        %1477 = vmatpush1.bf16.msra.mxu0 0
        %1478 = vmatprep.subr.bf16.mxu0 0
        %1479 = vmatpush1.bf16.msra.mxu0 0
        %1480 = vmatprep.subr.bf16.mxu0 0
        %1481 = vmatpush1.bf16.msra.mxu0 0
        %1482 = vmatprep.subr.bf16.mxu0 0
        %1483 = vmatpush1.bf16.msra.mxu0 0
        %1484 = vmatprep.subr.bf16.mxu0 0
        %1485 = vmatpush1.bf16.msra.mxu0 0
        %1486 = vmatprep.subr.bf16.mxu0 0
        %1487 = vmatpush1.bf16.msra.mxu0 0
        %1488 = vmatprep.mubr.bf16.mxu0 0
        %1489 = vmatmul.mubr.bf16.gmra.mrb[0].mxu0 %v1402
        %v1490 = vpop.f32.mrb[0].mxu0
        %v1491 = vadd.f32 0.0, %v1490
        %v1492 = vpop.f32.mrb[0].mxu0
        %v1493 = vpop.f32.mrb[0].mxu0
        %v1494 = vadd.f32 0.0, %v1493
        %v1495 = vpop.f32.mrb[0].mxu0
        %1496 = vmatprep.mubr.bf16.mxu0 0
        %1497 = vmatmul.mubr.bf16.gmra.mrb[0].mxu0 %v1405
        %v1498 = vpop.f32.mrb[0].mxu0
        %v1499 = vadd.f32 0.0, %v1498
        %v1500 = vpop.f32.mrb[0].mxu0
        %v1501 = vpop.f32.mrb[0].mxu0
        %v1502 = vadd.f32 0.0, %v1501
        %v1503 = vpop.f32.mrb[0].mxu0
        %1504 = vdwg.mxu0
        %v1505 = vadd.f32 %v1366, %v1491
        %v1506 = vadd.f32 %v1367, %v1494
        %v1507 = vadd.f32 %v1368, %v1499
        %v1508 = vadd.f32 %v1369, %v1502
        %v1509 = vld [vmem:[#allocation2 + $0x8] sm:$0xe]
        %s1510 = scalar_lea.vmem [#allocation3], 576
        %v1511 = vld [vmem:[%s1510] sm:$0xf]
        %v1512 = vld [vmem:[%s1510 + $0x4] sm:$0xf]
        %v1513 = vld [vmem:[%s1510 + $0x8] sm:$0xf]
        %v1514 = vld [vmem:[%s1510 + $0xc] sm:$0xf]
        %v1515 = vld [vmem:[%s1510 + $0x10] sm:$0xf]
        %v1516 = vld [vmem:[%s1510 + $0x14] sm:$0xf]
        %v1517 = vld [vmem:[%s1510 + $0x18] sm:$0xf]
        %v1518 = vld [vmem:[%s1510 + $0x1c] sm:$0xf]
        %v1519 = vld [vmem:[%s1510 + $0x20] sm:$0xf]
        %v1520 = vld [vmem:[%s1510 + $0x24] sm:$0xf]
        %v1521 = vld [vmem:[%s1510 + $0x28] sm:$0xf]
        %v1522 = vld [vmem:[%s1510 + $0x2c] sm:$0xf]
        %v1523 = vld [vmem:[%s1510 + $0x30] sm:$0xf]
        %v1524 = vld [vmem:[%s1510 + $0x34] sm:$0xf]
        %v1525 = vld [vmem:[%s1510 + $0x38] sm:$0xf]
        %v1526 = vld [vmem:[%s1510 + $0x3c] sm:$0xf]
        %v1528 = vunpack.c.l.b16 %v1509
        %v1529 = vpack.c.b16 %v1010, %v1528
        %v1530 = vrot.slane %v1529, 1
        %v1531 = vrot.slane %v1390, 1
        %v1532 = vsel %vm817, %v1530, %v1531
        %v1551 = vunpack.c.l.b16 %v1511
        %v1552 = vunpack.c.l.b16 %v1512
        %v1553 = vunpack.c.l.b16 %v1513
        %v1554 = vunpack.c.l.b16 %v1514
        %v1555 = vunpack.c.l.b16 %v1515
        %v1556 = vunpack.c.l.b16 %v1516
        %v1557 = vunpack.c.l.b16 %v1517
        %v1558 = vunpack.c.l.b16 %v1518
        %v1559 = vunpack.c.l.b16 %v1519
        %v1560 = vunpack.c.l.b16 %v1520
        %v1561 = vunpack.c.l.b16 %v1521
        %v1562 = vunpack.c.l.b16 %v1522
        %v1563 = vunpack.c.l.b16 %v1523
        %v1564 = vunpack.c.l.b16 %v1524
        %v1565 = vunpack.c.l.b16 %v1525
        %v1566 = vunpack.c.l.b16 %v1526
        %v1567 = vpack.c.b16 %v1552, %v1551
        %v1568 = vpack.c.b16 %v1554, %v1553
        %v1569 = vpack.c.b16 %v1556, %v1555
        %v1570 = vpack.c.b16 %v1558, %v1557
        %v1571 = vpack.c.b16 %v1560, %v1559
        %v1572 = vpack.c.b16 %v1562, %v1561
        %v1573 = vpack.c.b16 %v1564, %v1563
        %v1574 = vpack.c.b16 %v1566, %v1565
        %1583 = vmatprep.subr.bf16.mxu0 0
        %1584 = vmatpush1.bf16.msra.mxu0 %v1567
        %1585 = vmatprep.subr.bf16.mxu0 0
        %1586 = vmatpush1.bf16.msra.mxu0 %v1568
        %1587 = vmatprep.subr.bf16.mxu0 0
        %1588 = vmatpush1.bf16.msra.mxu0 %v1569
        %1589 = vmatprep.subr.bf16.mxu0 0
        %1590 = vmatpush1.bf16.msra.mxu0 %v1570
        %1591 = vmatprep.subr.bf16.mxu0 0
        %1592 = vmatpush1.bf16.msra.mxu0 %v1571
        %1593 = vmatprep.subr.bf16.mxu0 0
        %1594 = vmatpush1.bf16.msra.mxu0 %v1572
        %1595 = vmatprep.subr.bf16.mxu0 0
        %1596 = vmatpush1.bf16.msra.mxu0 %v1573
        %1597 = vmatprep.subr.bf16.mxu0 0
        %1598 = vmatpush1.bf16.msra.mxu0 %v1574
        %1599 = vmatprep.subr.bf16.mxu0 0
        %1600 = vmatpush1.bf16.msra.mxu0 0
        %1601 = vmatprep.subr.bf16.mxu0 0
        %1602 = vmatpush1.bf16.msra.mxu0 0
        %1603 = vmatprep.subr.bf16.mxu0 0
        %1604 = vmatpush1.bf16.msra.mxu0 0
        %1605 = vmatprep.subr.bf16.mxu0 0
        %1606 = vmatpush1.bf16.msra.mxu0 0
        %1607 = vmatprep.subr.bf16.mxu0 0
        %1608 = vmatpush1.bf16.msra.mxu0 0
        %1609 = vmatprep.subr.bf16.mxu0 0
        %1610 = vmatpush1.bf16.msra.mxu0 0
        %1611 = vmatprep.subr.bf16.mxu0 0
        %1612 = vmatpush1.bf16.msra.mxu0 0
        %1613 = vmatprep.subr.bf16.mxu0 0
        %1614 = vmatpush1.bf16.msra.mxu0 0
        %1615 = vmatprep.mubr.bf16.mxu0 0
        %1616 = vmatmul.mubr.bf16.gmra.mrb[0].mxu0 %v1532
        %v1617 = vpop.f32.mrb[0].mxu0
        %v1618 = vadd.f32 0.0, %v1617
        %v1619 = vpop.f32.mrb[0].mxu0
        %v1620 = vpop.f32.mrb[0].mxu0
        %v1621 = vadd.f32 0.0, %v1620
        %v1622 = vpop.f32.mrb[0].mxu0
        %1623 = vmatprep.mubr.bf16.mxu0 0
        %1624 = vmatmul.mubr.bf16.gmra.mrb[0].mxu0 %v1531
        %v1625 = vpop.f32.mrb[0].mxu0
        %v1626 = vadd.f32 0.0, %v1625
        %v1627 = vpop.f32.mrb[0].mxu0
        %v1628 = vpop.f32.mrb[0].mxu0
        %v1629 = vadd.f32 0.0, %v1628
        %v1630 = vpop.f32.mrb[0].mxu0
        %1631 = vdwg.mxu0
        %v1632 = vadd.f32 %v1505, %v1618
        %v1633 = vadd.f32 %v1506, %v1621
        %v1634 = vadd.f32 %v1507, %v1626
        %v1635 = vadd.f32 %v1508, %v1629
        %s1636 = scalar_lea.vmem %s2, 1
        %v1637 = vld [vmem:[%s1636] sm:$0x1]
        %v1639 = vlaneseq
        %v1640 = vshrl.u32 %v1639, 7
        %v1641 = vsub.s32 0, %v1640
        %v1642 = vrot.slane %v1637, %v1641
        %v1644 = vadd.f32 %v1632, %v1642
        %v1645 = vadd.f32 %v1633, %v1642
        %v1646 = vadd.f32 %v1634, %v1642
        %v1647 = vadd.f32 %v1635, %v1642
        %v1648 = vmax.f32 %v1644, 0.0
        %v1649 = vmax.f32 %v1645, 0.0
        %v1650 = vmax.f32 %v1646, 0.0
        %v1651 = vmax.f32 %v1647, 0.0
        %v1652 = vsel %vm244, %v1648, 0.0
        %v1653 = vsel %vm245, %v1649, 0.0
        %v1654 = vsel %vm246, %v1650, 0.0
        %v1655 = vsel %vm247, %v1651, 0.0
        %v1656 = vpack.c.bf16 %v1653, %v1652
        %v1657 = vpack.c.bf16 %v1655, %v1654
        %v1660 = vunpack.c.l.b16 %v1656
        %v1661 = vunpack.c.h.b16 %v1656
        %v1662 = vunpack.c.l.b16 %v1657
        %v1663 = vunpack.c.h.b16 %v1657
        %v1664 = vpack.c.b16 %v1660, %v1660
        %v1665 = vpack.c.b16 %v1661, %v1661
        %v1666 = vpack.c.b16 %v1662, %v1662
        %v1667 = vpack.c.b16 %v1663, %v1663
        %1672 = vst [vmem:[#allocation2 + $0x8] sm:$0xf] %v1664
        %1673 = vst [vmem:[#allocation2 + $0xc] sm:$0xf] %v1665
        %1674 = vst [vmem:[#allocation2 + $0x10] sm:$0xf] %v1666
        %1675 = vst [vmem:[#allocation2 + $0x14] sm:$0x3] %v1667
        %v1676 = vld [vmem:[#allocation2 + $0x8] sm:$0xc]
        %v1677 = vld [vmem:[#allocation2 + $0xc] sm:$0xf]
        %v1678 = vld [vmem:[#allocation2 + $0x10] sm:$0x3]
        %s1679 = scalar_lea.vmem [#allocation3], 640
        %v1680 = vld [vmem:[%s1679] sm:$0xf]
        %v1681 = vld [vmem:[%s1679 + $0x4] sm:$0xf]
        %v1682 = vld [vmem:[%s1679 + $0x8] sm:$0xf]
        %v1683 = vld [vmem:[%s1679 + $0xc] sm:$0xf]
        %v1684 = vld [vmem:[%s1679 + $0x10] sm:$0xf]
        %v1685 = vld [vmem:[%s1679 + $0x14] sm:$0xf]
        %v1686 = vld [vmem:[%s1679 + $0x18] sm:$0xf]
        %v1687 = vld [vmem:[%s1679 + $0x1c] sm:$0xf]
        %v1688 = vld [vmem:[%s1679 + $0x20] sm:$0xf]
        %v1689 = vld [vmem:[%s1679 + $0x24] sm:$0xf]
        %v1690 = vld [vmem:[%s1679 + $0x28] sm:$0xf]
        %v1691 = vld [vmem:[%s1679 + $0x2c] sm:$0xf]
        %v1692 = vld [vmem:[%s1679 + $0x30] sm:$0xf]
        %v1693 = vld [vmem:[%s1679 + $0x34] sm:$0xf]
        %v1694 = vld [vmem:[%s1679 + $0x38] sm:$0xf]
        %v1695 = vld [vmem:[%s1679 + $0x3c] sm:$0xf]
        %v1696 = vld [vmem:[#allocation2 + $0x10] sm:$0x7]
        %s1697 = scalar_lea.vmem [#allocation3], 704
        %v1698 = vld [vmem:[%s1697] sm:$0xf]
        %v1699 = vld [vmem:[%s1697 + $0x4] sm:$0xf]
        %v1700 = vld [vmem:[%s1697 + $0x8] sm:$0xf]
        %v1701 = vld [vmem:[%s1697 + $0xc] sm:$0xf]
        %v1702 = vld [vmem:[%s1697 + $0x10] sm:$0xf]
        %v1703 = vld [vmem:[%s1697 + $0x14] sm:$0xf]
        %v1704 = vld [vmem:[%s1697 + $0x18] sm:$0xf]
        %v1705 = vld [vmem:[%s1697 + $0x1c] sm:$0xf]
        %v1706 = vld [vmem:[%s1697 + $0x20] sm:$0xf]
        %v1707 = vld [vmem:[%s1697 + $0x24] sm:$0xf]
        %v1708 = vld [vmem:[%s1697 + $0x28] sm:$0xf]
        %v1709 = vld [vmem:[%s1697 + $0x2c] sm:$0xf]
        %v1710 = vld [vmem:[%s1697 + $0x30] sm:$0xf]
        %v1711 = vld [vmem:[%s1697 + $0x34] sm:$0xf]
        %v1712 = vld [vmem:[%s1697 + $0x38] sm:$0xf]
        %v1713 = vld [vmem:[%s1697 + $0x3c] sm:$0xf]
        %v1717 = vunpack.c.l.b16 %v1676
        %v1718 = vunpack.c.l.b16 %v1677
        %v1719 = vunpack.c.l.b16 %v1696
        %v1720 = vpack.c.b16 %v1718, %v1717
        %v1721 = vpack.c.b16 %v1719, %v1719
        %vm1722 = vsmask.f32 5376
        %v1724 = vshrl.u32 %v1720, 16
        %v1726 = vrot.slane %v1724, 2
        %v1727 = vshll.u32 %v1720, 16
        %v1729 = vrot.slane %v1727, 3
        %v1730 = vor.u32 %v1726, %v1729
        %v1732 = vshrl.u32 %v1721, 16
        %v1734 = vrot.slane %v1732, 2
        %v1735 = vshll.u32 %v1721, 16
        %v1737 = vrot.slane %v1735, 3
        %v1738 = vor.u32 %v1734, %v1737
        %v1739 = vsel %vm1722, %v1730, %v1738
        %v1757 = vunpack.c.l.b16 %v1698
        %v1758 = vunpack.c.l.b16 %v1699
        %v1759 = vunpack.c.l.b16 %v1700
        %v1760 = vunpack.c.l.b16 %v1701
        %v1761 = vunpack.c.l.b16 %v1702
        %v1762 = vunpack.c.l.b16 %v1703
        %v1763 = vunpack.c.l.b16 %v1704
        %v1764 = vunpack.c.l.b16 %v1705
        %v1765 = vunpack.c.l.b16 %v1706
        %v1766 = vunpack.c.l.b16 %v1707
        %v1767 = vunpack.c.l.b16 %v1708
        %v1768 = vunpack.c.l.b16 %v1709
        %v1769 = vunpack.c.l.b16 %v1710
        %v1770 = vunpack.c.l.b16 %v1711
        %v1771 = vunpack.c.l.b16 %v1712
        %v1772 = vunpack.c.l.b16 %v1713
        %v1773 = vpack.c.b16 %v1758, %v1757
        %v1774 = vpack.c.b16 %v1760, %v1759
        %v1775 = vpack.c.b16 %v1762, %v1761
        %v1776 = vpack.c.b16 %v1764, %v1763
        %v1777 = vpack.c.b16 %v1766, %v1765
        %v1778 = vpack.c.b16 %v1768, %v1767
        %v1779 = vpack.c.b16 %v1770, %v1769
        %v1780 = vpack.c.b16 %v1772, %v1771
        %1789 = vmatprep.subr.bf16.mxu0 0
        %1790 = vmatpush1.bf16.msra.mxu0 %v1773
        %1791 = vmatprep.subr.bf16.mxu0 0
        %1792 = vmatpush1.bf16.msra.mxu0 %v1774
        %1793 = vmatprep.subr.bf16.mxu0 0
        %1794 = vmatpush1.bf16.msra.mxu0 %v1775
        %1795 = vmatprep.subr.bf16.mxu0 0
        %1796 = vmatpush1.bf16.msra.mxu0 %v1776
        %1797 = vmatprep.subr.bf16.mxu0 0
        %1798 = vmatpush1.bf16.msra.mxu0 %v1777
        %1799 = vmatprep.subr.bf16.mxu0 0
        %1800 = vmatpush1.bf16.msra.mxu0 %v1778
        %1801 = vmatprep.subr.bf16.mxu0 0
        %1802 = vmatpush1.bf16.msra.mxu0 %v1779
        %1803 = vmatprep.subr.bf16.mxu0 0
        %1804 = vmatpush1.bf16.msra.mxu0 %v1780
        %1805 = vmatprep.subr.bf16.mxu0 0
        %1806 = vmatpush1.bf16.msra.mxu0 0
        %1807 = vmatprep.subr.bf16.mxu0 0
        %1808 = vmatpush1.bf16.msra.mxu0 0
        %1809 = vmatprep.subr.bf16.mxu0 0
        %1810 = vmatpush1.bf16.msra.mxu0 0
        %1811 = vmatprep.subr.bf16.mxu0 0
        %1812 = vmatpush1.bf16.msra.mxu0 0
        %1813 = vmatprep.subr.bf16.mxu0 0
        %1814 = vmatpush1.bf16.msra.mxu0 0
        %1815 = vmatprep.subr.bf16.mxu0 0
        %1816 = vmatpush1.bf16.msra.mxu0 0
        %1817 = vmatprep.subr.bf16.mxu0 0
        %1818 = vmatpush1.bf16.msra.mxu0 0
        %1819 = vmatprep.subr.bf16.mxu0 0
        %1820 = vmatpush1.bf16.msra.mxu0 0
        %1821 = vmatprep.mubr.bf16.mxu0 0
        %1822 = vmatmul.mubr.bf16.gmra.mrb[0].mxu0 %v1739
        %v1823 = vpop.f32.mrb[0].mxu0
        %v1824 = vadd.f32 0.0, %v1823
        %v1825 = vpop.f32.mrb[0].mxu0
        %v1826 = vpop.f32.mrb[0].mxu0
        %v1827 = vadd.f32 0.0, %v1826
        %v1828 = vpop.f32.mrb[0].mxu0
        %1829 = vdwg.mxu0
        %v1831 = vunpack.c.l.b16 %v1678
        %v1832 = vpack.c.b16 %v1831, %v1831
        %vm1833 = vcmask 1045504
        %v1834 = vrot.slane %v1720, 2
        %v1835 = vrot.slane %v1832, 2
        %v1836 = vsel %vm1833, %v1834, %v1835
        %v1854 = vunpack.c.l.b16 %v1680
        %v1855 = vunpack.c.l.b16 %v1681
        %v1856 = vunpack.c.l.b16 %v1682
        %v1857 = vunpack.c.l.b16 %v1683
        %v1858 = vunpack.c.l.b16 %v1684
        %v1859 = vunpack.c.l.b16 %v1685
        %v1860 = vunpack.c.l.b16 %v1686
        %v1861 = vunpack.c.l.b16 %v1687
        %v1862 = vunpack.c.l.b16 %v1688
        %v1863 = vunpack.c.l.b16 %v1689
        %v1864 = vunpack.c.l.b16 %v1690
        %v1865 = vunpack.c.l.b16 %v1691
        %v1866 = vunpack.c.l.b16 %v1692
        %v1867 = vunpack.c.l.b16 %v1693
        %v1868 = vunpack.c.l.b16 %v1694
        %v1869 = vunpack.c.l.b16 %v1695
        %v1870 = vpack.c.b16 %v1855, %v1854
        %v1871 = vpack.c.b16 %v1857, %v1856
        %v1872 = vpack.c.b16 %v1859, %v1858
        %v1873 = vpack.c.b16 %v1861, %v1860
        %v1874 = vpack.c.b16 %v1863, %v1862
        %v1875 = vpack.c.b16 %v1865, %v1864
        %v1876 = vpack.c.b16 %v1867, %v1866
        %v1877 = vpack.c.b16 %v1869, %v1868
        %1886 = vmatprep.subr.bf16.mxu0 0
        %1887 = vmatpush1.bf16.msra.mxu0 %v1870
        %1888 = vmatprep.subr.bf16.mxu0 0
        %1889 = vmatpush1.bf16.msra.mxu0 %v1871
        %1890 = vmatprep.subr.bf16.mxu0 0
        %1891 = vmatpush1.bf16.msra.mxu0 %v1872
        %1892 = vmatprep.subr.bf16.mxu0 0
        %1893 = vmatpush1.bf16.msra.mxu0 %v1873
        %1894 = vmatprep.subr.bf16.mxu0 0
        %1895 = vmatpush1.bf16.msra.mxu0 %v1874
        %1896 = vmatprep.subr.bf16.mxu0 0
        %1897 = vmatpush1.bf16.msra.mxu0 %v1875
        %1898 = vmatprep.subr.bf16.mxu0 0
        %1899 = vmatpush1.bf16.msra.mxu0 %v1876
        %1900 = vmatprep.subr.bf16.mxu0 0
        %1901 = vmatpush1.bf16.msra.mxu0 %v1877
        %1902 = vmatprep.subr.bf16.mxu0 0
        %1903 = vmatpush1.bf16.msra.mxu0 0
        %1904 = vmatprep.subr.bf16.mxu0 0
        %1905 = vmatpush1.bf16.msra.mxu0 0
        %1906 = vmatprep.subr.bf16.mxu0 0
        %1907 = vmatpush1.bf16.msra.mxu0 0
        %1908 = vmatprep.subr.bf16.mxu0 0
        %1909 = vmatpush1.bf16.msra.mxu0 0
        %1910 = vmatprep.subr.bf16.mxu0 0
        %1911 = vmatpush1.bf16.msra.mxu0 0
        %1912 = vmatprep.subr.bf16.mxu0 0
        %1913 = vmatpush1.bf16.msra.mxu0 0
        %1914 = vmatprep.subr.bf16.mxu0 0
        %1915 = vmatpush1.bf16.msra.mxu0 0
        %1916 = vmatprep.subr.bf16.mxu0 0
        %1917 = vmatpush1.bf16.msra.mxu0 0
        %1918 = vmatprep.mubr.bf16.mxu0 0
        %1919 = vmatmul.mubr.bf16.gmra.mrb[0].mxu0 %v1836
        %v1920 = vpop.f32.mrb[0].mxu0
        %v1921 = vadd.f32 %v1824, %v1920
        %v1922 = vpop.f32.mrb[0].mxu0
        %v1923 = vpop.f32.mrb[0].mxu0
        %v1924 = vadd.f32 %v1827, %v1923
        %v1925 = vpop.f32.mrb[0].mxu0
        %1926 = vdwg.mxu0
        %v1927 = vld [vmem:[#allocation2 + $0x8] sm:$0x8]
        %s1928 = scalar_lea.vmem [#allocation3], 768
        %v1929 = vld [vmem:[%s1928] sm:$0xf]
        %v1930 = vld [vmem:[%s1928 + $0x4] sm:$0xf]
        %v1931 = vld [vmem:[%s1928 + $0x8] sm:$0xf]
        %v1932 = vld [vmem:[%s1928 + $0xc] sm:$0xf]
        %v1933 = vld [vmem:[%s1928 + $0x10] sm:$0xf]
        %v1934 = vld [vmem:[%s1928 + $0x14] sm:$0xf]
        %v1935 = vld [vmem:[%s1928 + $0x18] sm:$0xf]
        %v1936 = vld [vmem:[%s1928 + $0x1c] sm:$0xf]
        %v1937 = vld [vmem:[%s1928 + $0x20] sm:$0xf]
        %v1938 = vld [vmem:[%s1928 + $0x24] sm:$0xf]
        %v1939 = vld [vmem:[%s1928 + $0x28] sm:$0xf]
        %v1940 = vld [vmem:[%s1928 + $0x2c] sm:$0xf]
        %v1941 = vld [vmem:[%s1928 + $0x30] sm:$0xf]
        %v1942 = vld [vmem:[%s1928 + $0x34] sm:$0xf]
        %v1943 = vld [vmem:[%s1928 + $0x38] sm:$0xf]
        %v1944 = vld [vmem:[%s1928 + $0x3c] sm:$0xf]
        %v1946 = vunpack.c.l.b16 %v1927
        %v1947 = vpack.c.b16 %v1718, %v1946
        %v1948 = vrot.slane %v1947, 3
        %v1949 = vrot.slane %v1721, 3
        %v1950 = vsel %vm429, %v1948, %v1949
        %v1968 = vunpack.c.l.b16 %v1929
        %v1969 = vunpack.c.l.b16 %v1930
        %v1970 = vunpack.c.l.b16 %v1931
        %v1971 = vunpack.c.l.b16 %v1932
        %v1972 = vunpack.c.l.b16 %v1933
        %v1973 = vunpack.c.l.b16 %v1934
        %v1974 = vunpack.c.l.b16 %v1935
        %v1975 = vunpack.c.l.b16 %v1936
        %v1976 = vunpack.c.l.b16 %v1937
        %v1977 = vunpack.c.l.b16 %v1938
        %v1978 = vunpack.c.l.b16 %v1939
        %v1979 = vunpack.c.l.b16 %v1940
        %v1980 = vunpack.c.l.b16 %v1941
        %v1981 = vunpack.c.l.b16 %v1942
        %v1982 = vunpack.c.l.b16 %v1943
        %v1983 = vunpack.c.l.b16 %v1944
        %v1984 = vpack.c.b16 %v1969, %v1968
        %v1985 = vpack.c.b16 %v1971, %v1970
        %v1986 = vpack.c.b16 %v1973, %v1972
        %v1987 = vpack.c.b16 %v1975, %v1974
        %v1988 = vpack.c.b16 %v1977, %v1976
        %v1989 = vpack.c.b16 %v1979, %v1978
        %v1990 = vpack.c.b16 %v1981, %v1980
        %v1991 = vpack.c.b16 %v1983, %v1982
        %2000 = vmatprep.subr.bf16.mxu0 0
        %2001 = vmatpush1.bf16.msra.mxu0 %v1984
        %2002 = vmatprep.subr.bf16.mxu0 0
        %2003 = vmatpush1.bf16.msra.mxu0 %v1985
        %2004 = vmatprep.subr.bf16.mxu0 0
        %2005 = vmatpush1.bf16.msra.mxu0 %v1986
        %2006 = vmatprep.subr.bf16.mxu0 0
        %2007 = vmatpush1.bf16.msra.mxu0 %v1987
        %2008 = vmatprep.subr.bf16.mxu0 0
        %2009 = vmatpush1.bf16.msra.mxu0 %v1988
        %2010 = vmatprep.subr.bf16.mxu0 0
        %2011 = vmatpush1.bf16.msra.mxu0 %v1989
        %2012 = vmatprep.subr.bf16.mxu0 0
        %2013 = vmatpush1.bf16.msra.mxu0 %v1990
        %2014 = vmatprep.subr.bf16.mxu0 0
        %2015 = vmatpush1.bf16.msra.mxu0 %v1991
        %2016 = vmatprep.subr.bf16.mxu0 0
        %2017 = vmatpush1.bf16.msra.mxu0 0
        %2018 = vmatprep.subr.bf16.mxu0 0
        %2019 = vmatpush1.bf16.msra.mxu0 0
        %2020 = vmatprep.subr.bf16.mxu0 0
        %2021 = vmatpush1.bf16.msra.mxu0 0
        %2022 = vmatprep.subr.bf16.mxu0 0
        %2023 = vmatpush1.bf16.msra.mxu0 0
        %2024 = vmatprep.subr.bf16.mxu0 0
        %2025 = vmatpush1.bf16.msra.mxu0 0
        %2026 = vmatprep.subr.bf16.mxu0 0
        %2027 = vmatpush1.bf16.msra.mxu0 0
        %2028 = vmatprep.subr.bf16.mxu0 0
        %2029 = vmatpush1.bf16.msra.mxu0 0
        %2030 = vmatprep.subr.bf16.mxu0 0
        %2031 = vmatpush1.bf16.msra.mxu0 0
        %2032 = vmatprep.mubr.bf16.mxu0 0
        %2033 = vmatmul.mubr.bf16.gmra.mrb[0].mxu0 %v1950
        %v2034 = vpop.f32.mrb[0].mxu0
        %v2035 = vadd.f32 0.0, %v2034
        %v2036 = vpop.f32.mrb[0].mxu0
        %v2037 = vpop.f32.mrb[0].mxu0
        %v2038 = vadd.f32 0.0, %v2037
        %v2039 = vpop.f32.mrb[0].mxu0
        %2040 = vdwg.mxu0
        %v2041 = vadd.f32 %v1921, %v2035
        %v2042 = vadd.f32 %v1924, %v2038
        %v2043 = vld [vmem:[#allocation2 + $0x10] sm:$0xf]
        %s2044 = scalar_lea.vmem [#allocation3], 832
        %v2045 = vld [vmem:[%s2044] sm:$0xf]
        %v2046 = vld [vmem:[%s2044 + $0x4] sm:$0xf]
        %v2047 = vld [vmem:[%s2044 + $0x8] sm:$0xf]
        %v2048 = vld [vmem:[%s2044 + $0xc] sm:$0xf]
        %v2049 = vld [vmem:[%s2044 + $0x10] sm:$0xf]
        %v2050 = vld [vmem:[%s2044 + $0x14] sm:$0xf]
        %v2051 = vld [vmem:[%s2044 + $0x18] sm:$0xf]
        %v2052 = vld [vmem:[%s2044 + $0x1c] sm:$0xf]
        %v2053 = vld [vmem:[%s2044 + $0x20] sm:$0xf]
        %v2054 = vld [vmem:[%s2044 + $0x24] sm:$0xf]
        %v2055 = vld [vmem:[%s2044 + $0x28] sm:$0xf]
        %v2056 = vld [vmem:[%s2044 + $0x2c] sm:$0xf]
        %v2057 = vld [vmem:[%s2044 + $0x30] sm:$0xf]
        %v2058 = vld [vmem:[%s2044 + $0x34] sm:$0xf]
        %v2059 = vld [vmem:[%s2044 + $0x38] sm:$0xf]
        %v2060 = vld [vmem:[%s2044 + $0x3c] sm:$0xf]
        %v2062 = vunpack.c.l.b16 %v2043
        %v2063 = vpack.c.b16 %v2062, %v2062
        %v2065 = vshrl.u32 %v1947, 16
        %v2067 = vrot.slane %v2065, 3
        %v2068 = vshll.u32 %v1947, 16
        %v2070 = vrot.slane %v2068, 4
        %v2071 = vor.u32 %v2067, %v2070
        %v2073 = vshrl.u32 %v2063, 16
        %v2075 = vrot.slane %v2073, 3
        %v2076 = vshll.u32 %v2063, 16
        %v2078 = vrot.slane %v2076, 4
        %v2079 = vor.u32 %v2075, %v2078
        %v2080 = vsel %vm300, %v2071, %v2079
        %v2098 = vunpack.c.l.b16 %v2045
        %v2099 = vunpack.c.l.b16 %v2046
        %v2100 = vunpack.c.l.b16 %v2047
        %v2101 = vunpack.c.l.b16 %v2048
        %v2102 = vunpack.c.l.b16 %v2049
        %v2103 = vunpack.c.l.b16 %v2050
        %v2104 = vunpack.c.l.b16 %v2051
        %v2105 = vunpack.c.l.b16 %v2052
        %v2106 = vunpack.c.l.b16 %v2053
        %v2107 = vunpack.c.l.b16 %v2054
        %v2108 = vunpack.c.l.b16 %v2055
        %v2109 = vunpack.c.l.b16 %v2056
        %v2110 = vunpack.c.l.b16 %v2057
        %v2111 = vunpack.c.l.b16 %v2058
        %v2112 = vunpack.c.l.b16 %v2059
        %v2113 = vunpack.c.l.b16 %v2060
        %v2114 = vpack.c.b16 %v2099, %v2098
        %v2115 = vpack.c.b16 %v2101, %v2100
        %v2116 = vpack.c.b16 %v2103, %v2102
        %v2117 = vpack.c.b16 %v2105, %v2104
        %v2118 = vpack.c.b16 %v2107, %v2106
        %v2119 = vpack.c.b16 %v2109, %v2108
        %v2120 = vpack.c.b16 %v2111, %v2110
        %v2121 = vpack.c.b16 %v2113, %v2112
        %2130 = vmatprep.subr.bf16.mxu0 0
        %2131 = vmatpush1.bf16.msra.mxu0 %v2114
        %2132 = vmatprep.subr.bf16.mxu0 0
        %2133 = vmatpush1.bf16.msra.mxu0 %v2115
        %2134 = vmatprep.subr.bf16.mxu0 0
        %2135 = vmatpush1.bf16.msra.mxu0 %v2116
        %2136 = vmatprep.subr.bf16.mxu0 0
        %2137 = vmatpush1.bf16.msra.mxu0 %v2117
        %2138 = vmatprep.subr.bf16.mxu0 0
        %2139 = vmatpush1.bf16.msra.mxu0 %v2118
        %2140 = vmatprep.subr.bf16.mxu0 0
        %2141 = vmatpush1.bf16.msra.mxu0 %v2119
        %2142 = vmatprep.subr.bf16.mxu0 0
        %2143 = vmatpush1.bf16.msra.mxu0 %v2120
        %2144 = vmatprep.subr.bf16.mxu0 0
        %2145 = vmatpush1.bf16.msra.mxu0 %v2121
        %2146 = vmatprep.subr.bf16.mxu0 0
        %2147 = vmatpush1.bf16.msra.mxu0 0
        %2148 = vmatprep.subr.bf16.mxu0 0
        %2149 = vmatpush1.bf16.msra.mxu0 0
        %2150 = vmatprep.subr.bf16.mxu0 0
        %2151 = vmatpush1.bf16.msra.mxu0 0
        %2152 = vmatprep.subr.bf16.mxu0 0
        %2153 = vmatpush1.bf16.msra.mxu0 0
        %2154 = vmatprep.subr.bf16.mxu0 0
        %2155 = vmatpush1.bf16.msra.mxu0 0
        %2156 = vmatprep.subr.bf16.mxu0 0
        %2157 = vmatpush1.bf16.msra.mxu0 0
        %2158 = vmatprep.subr.bf16.mxu0 0
        %2159 = vmatpush1.bf16.msra.mxu0 0
        %2160 = vmatprep.subr.bf16.mxu0 0
        %2161 = vmatpush1.bf16.msra.mxu0 0
        %2162 = vmatprep.mubr.bf16.mxu0 0
        %2163 = vmatmul.mubr.bf16.gmra.mrb[0].mxu0 %v2080
        %v2164 = vpop.f32.mrb[0].mxu0
        %v2165 = vadd.f32 0.0, %v2164
        %v2166 = vpop.f32.mrb[0].mxu0
        %v2167 = vpop.f32.mrb[0].mxu0
        %v2168 = vadd.f32 0.0, %v2167
        %v2169 = vpop.f32.mrb[0].mxu0
        %2170 = vdwg.mxu0
        %v2171 = vadd.f32 %v2041, %v2165
        %v2172 = vadd.f32 %v2042, %v2168
        %s2173 = scalar_lea.vmem [#allocation3], 896
        %v2174 = vld [vmem:[%s2173] sm:$0xf]
        %v2175 = vld [vmem:[%s2173 + $0x4] sm:$0xf]
        %v2176 = vld [vmem:[%s2173 + $0x8] sm:$0xf]
        %v2177 = vld [vmem:[%s2173 + $0xc] sm:$0xf]
        %v2178 = vld [vmem:[%s2173 + $0x10] sm:$0xf]
        %v2179 = vld [vmem:[%s2173 + $0x14] sm:$0xf]
        %v2180 = vld [vmem:[%s2173 + $0x18] sm:$0xf]
        %v2181 = vld [vmem:[%s2173 + $0x1c] sm:$0xf]
        %v2182 = vld [vmem:[%s2173 + $0x20] sm:$0xf]
        %v2183 = vld [vmem:[%s2173 + $0x24] sm:$0xf]
        %v2184 = vld [vmem:[%s2173 + $0x28] sm:$0xf]
        %v2185 = vld [vmem:[%s2173 + $0x2c] sm:$0xf]
        %v2186 = vld [vmem:[%s2173 + $0x30] sm:$0xf]
        %v2187 = vld [vmem:[%s2173 + $0x34] sm:$0xf]
        %v2188 = vld [vmem:[%s2173 + $0x38] sm:$0xf]
        %v2189 = vld [vmem:[%s2173 + $0x3c] sm:$0xf]
        %v2190 = vpack.c.b16 %v2062, %v1718
        %v2208 = vunpack.c.l.b16 %v2174
        %v2209 = vunpack.c.l.b16 %v2175
        %v2210 = vunpack.c.l.b16 %v2176
        %v2211 = vunpack.c.l.b16 %v2177
        %v2212 = vunpack.c.l.b16 %v2178
        %v2213 = vunpack.c.l.b16 %v2179
        %v2214 = vunpack.c.l.b16 %v2180
        %v2215 = vunpack.c.l.b16 %v2181
        %v2216 = vunpack.c.l.b16 %v2182
        %v2217 = vunpack.c.l.b16 %v2183
        %v2218 = vunpack.c.l.b16 %v2184
        %v2219 = vunpack.c.l.b16 %v2185
        %v2220 = vunpack.c.l.b16 %v2186
        %v2221 = vunpack.c.l.b16 %v2187
        %v2222 = vunpack.c.l.b16 %v2188
        %v2223 = vunpack.c.l.b16 %v2189
        %v2224 = vpack.c.b16 %v2209, %v2208
        %v2225 = vpack.c.b16 %v2211, %v2210
        %v2226 = vpack.c.b16 %v2213, %v2212
        %v2227 = vpack.c.b16 %v2215, %v2214
        %v2228 = vpack.c.b16 %v2217, %v2216
        %v2229 = vpack.c.b16 %v2219, %v2218
        %v2230 = vpack.c.b16 %v2221, %v2220
        %v2231 = vpack.c.b16 %v2223, %v2222
        %2240 = vmatprep.subr.bf16.mxu0 0
        %2241 = vmatpush1.bf16.msra.mxu0 %v2224
        %2242 = vmatprep.subr.bf16.mxu0 0
        %2243 = vmatpush1.bf16.msra.mxu0 %v2225
        %2244 = vmatprep.subr.bf16.mxu0 0
        %2245 = vmatpush1.bf16.msra.mxu0 %v2226
        %2246 = vmatprep.subr.bf16.mxu0 0
        %2247 = vmatpush1.bf16.msra.mxu0 %v2227
        %2248 = vmatprep.subr.bf16.mxu0 0
        %2249 = vmatpush1.bf16.msra.mxu0 %v2228
        %2250 = vmatprep.subr.bf16.mxu0 0
        %2251 = vmatpush1.bf16.msra.mxu0 %v2229
        %2252 = vmatprep.subr.bf16.mxu0 0
        %2253 = vmatpush1.bf16.msra.mxu0 %v2230
        %2254 = vmatprep.subr.bf16.mxu0 0
        %2255 = vmatpush1.bf16.msra.mxu0 %v2231
        %2256 = vmatprep.subr.bf16.mxu0 0
        %2257 = vmatpush1.bf16.msra.mxu0 0
        %2258 = vmatprep.subr.bf16.mxu0 0
        %2259 = vmatpush1.bf16.msra.mxu0 0
        %2260 = vmatprep.subr.bf16.mxu0 0
        %2261 = vmatpush1.bf16.msra.mxu0 0
        %2262 = vmatprep.subr.bf16.mxu0 0
        %2263 = vmatpush1.bf16.msra.mxu0 0
        %2264 = vmatprep.subr.bf16.mxu0 0
        %2265 = vmatpush1.bf16.msra.mxu0 0
        %2266 = vmatprep.subr.bf16.mxu0 0
        %2267 = vmatpush1.bf16.msra.mxu0 0
        %2268 = vmatprep.subr.bf16.mxu0 0
        %2269 = vmatpush1.bf16.msra.mxu0 0
        %2270 = vmatprep.subr.bf16.mxu0 0
        %2271 = vmatpush1.bf16.msra.mxu0 0
        %2272 = vmatprep.mubr.bf16.mxu0 0
        %2273 = vmatmul.mubr.bf16.gmra.mrb[0].mxu0 %v2190
        %v2274 = vpop.f32.mrb[0].mxu0
        %v2275 = vadd.f32 0.0, %v2274
        %v2276 = vpop.f32.mrb[0].mxu0
        %v2277 = vpop.f32.mrb[0].mxu0
        %v2278 = vadd.f32 0.0, %v2277
        %v2279 = vpop.f32.mrb[0].mxu0
        %2280 = vdwg.mxu0
        %v2281 = vadd.f32 %v2171, %v2275
        %v2282 = vadd.f32 %v2172, %v2278
        %s2283 = scalar_lea.vmem %s2, 2
        %v2284 = vld [vmem:[%s2283] sm:$0x1]
        %v2286 = vlaneseq
        %v2287 = vshrl.u32 %v2286, 7
        %v2288 = vsub.s32 0, %v2287
        %v2289 = vrot.slane %v2284, %v2288
        %v2291 = vadd.f32 %v2281, %v2289
        %v2292 = vadd.f32 %v2282, %v2289
        %v2293 = vmax.f32 %v2291, 0.0
        %v2294 = vmax.f32 %v2292, 0.0
        %2295 = vst [vmem:[%s202] sm:$0xff] %v2293
        %2296 = vst [vmem:[%s202 + $0x8] sm:$0xff] %v2294
        %s2297 = sand.u32 %s110, 1
        %s2298 = scalar_lea.sflag [#allocation5], %s2297
        %s2299 = sand.u32 %s110, 1
        %s2300 = smul.addr %s2299, 16
        %s2301 = scalar_lea.vmem [#allocation6], %s2300
        // Predicated region
        $region37: #{tpu_custom_call.1} parent=31 // pred_check
          %p2302 = pneg %p120
        $region38: #{tpu_custom_call.1} parent=31 // pred_check_branch
          %2304 = sbr.rel (%p2302) target = $region40
        $region39: #{tpu_custom_call.1} parent=31 // pred_region
          %s2305 = smul.u32 2, %s23
          %s2307 = ssub.s32 256, 256
          %2308 = vsyncadd %s2298, %s2307
          %s2309 = smul.addr %s22, 6
          %s2310 = sadd.s32 %s2305, %s2309
          %s2311 = smul.addr %s2310, 128
          %s2312 = scalar_lea.hbm %s3, %s2311
          %s2313 = sshll.u32 %s2301, 4
          %s2314 = int_to_ptr.vmem [resolvable:$true] %s2313
          %2319 = dma.vmem_to_hbm [thread:$0]  %s2314, 256, %s2312, %s2298, 128, 128, 8
        $region40: #{tpu_custom_call.1} parent=31 // pred_fallthru
          _
      $region32: #{tpu_custom_call.1} parent=5 // pred_fallthru
        _
      %p2320 = scmp.le.s32.totalorder 2, %s13
      // Predicated region
      $region41: #{tpu_custom_call.1} parent=5 // pred_check
        %p2321 = pneg %p2320
      $region42: #{tpu_custom_call.1} parent=5 // pred_check_branch
        %2323 = sbr.rel (%p2321) target = $region44
      $region43: #{tpu_custom_call.1} parent=5 // pred_region
        %s2324 = ssub.s32 %s13, 2
        // Predicated region
        $region45: #{tpu_custom_call.1} parent=43 // pred_check
          %p2325 = pneg %p126
        $region46: #{tpu_custom_call.1} parent=43 // pred_check_branch
          %2327 = sbr.rel (%p2325) target = $region48
        $region47: #{tpu_custom_call.1} parent=43 // pred_region
          %s2328 = sand.u32 %s111, 1
          %s2329 = scalar_lea.sflag [#allocation5], %s2328
          %s2330 = sand.u32 %s111, 1
          %s2331 = smul.addr %s2330, 16
          %s2332 = scalar_lea.vmem [#allocation6], %s2331
          %2333 = dma.done %s2329, 256
        $region48: #{tpu_custom_call.1} parent=43 // pred_fallthru
          _
      $region44: #{tpu_custom_call.1} parent=5 // pred_fallthru
        _
    $region6: #{tpu_custom_call.1} parent=1 // loop_footer
      %s17 = sadd.s32 1, %s13
    $region7: #{tpu_custom_call.1} parent=1 // loop_footer_branch
      %12 = sbr.rel target = $region3
    $region8: #{tpu_custom_call.1} parent=1 // loop_exit
      _
    %2334 = vsyncpa [#allocation4], 1
    %s2335 = scalar_lea.sflag [#allocation4], 1
    %2336 = vsyncpa %s2335, 1
    %2337 = vsyncpa [#allocation5], 1
    %s2338 = scalar_lea.sflag [#allocation5], 1
    %2339 = vsyncpa %s2338, 1

// kernel: tpu_custom_call.1
$region0: #{tpu_custom_call.1}
  #allocation0 [shape = 'u32[]', space=smem, size = 0x4, offset = 0x4, fixed_abs, tag = 'smem constant byte address 0x4 - core index']
  #allocation1 [shape = 'u32[144,128]{1,0:T(1,128)}', space=vmem, size = 0x12000, scoped, tag = 'internal scratch']
  #allocation2 [shape = 'bf16[52,128]{1,0:T(8,128)(2,1)}', space=vmem, size = 0x3800, scoped, tag = 'scratch operand']
  %s0 = inlined_call_operand.vmem [shape: bf16[2,3,28,128], index: 0, kind: input, shape index: {}]
  %s1 = inlined_call_operand.hbm [shape: bf16[3,5,128,128], index: 1, kind: input, shape index: {}]
  %s2 = inlined_call_operand.vmem [shape: f32[3,1,128], index: 2, kind: input, shape index: {}]
  %s3 = inlined_call_operand.hbm [shape: f32[2,48,128], index: 3, kind: output, shape index: {}]
  %s4 = sld [smem:[#allocation0]]
  $region49: #{tpu_custom_call.1} parent=0
    _
  %s6 = ssub.s32 1, %s4
  %s7 = scalar_select 0, %s6, %s4
  $region1: #{tpu_custom_call.1} parent=0
    #allocation3 [shape = 'u8[491520]{0}', space=vmem, size = 0x78000, scoped, tag = 'input window, operand 1, single buffered']
    #allocation4 [shape = 's32[2]{0}', space=sflag, size = 0x8, scoped, tag = 'scoped memory for tpu_custom_call.1']
    #allocation5 [shape = 's32[2]{0}', space=sflag, size = 0x8, scoped, tag = 'scoped memory for tpu_custom_call.1']
    #allocation6 [shape = 'u8[16384]{0}', space=vmem, size = 0x4000, scoped, tag = 'output window, operand 0']
    %8 = vsyncpa [#allocation4], 0
    %9 = vsyncpa [#allocation5], 0
    %s10 = scalar_lea.sflag [#allocation5], 1
    %11 = vsyncpa %s10, 0
    loop: start=0, step=1, limit=8
    $region2: #{tpu_custom_call.1} parent=1 // loop_pre_header
      _
    $region3: #{tpu_custom_call.1} parent=1 // loop_header
      %s13 = sphi 0, %s17
      %p14 = scmp.ge.s32.totalorder %s13, 8
      %s20 = sphi 0, %s32
      %s21 = sphi 0, %s28
      %s22 = sphi 0, %s20
      %s23 = sphi 0, %s21
      %s24 = sphi 0, %s22
      %s25 = sphi 0, %s23
      %s37 = sphi 0, %s39
      %s40 = sphi 0, %s37
      %s41 = sphi 0, %s40
      %s57 = sphi 0, %s41
      %s61 = sphi 0, %s61
      %s63 = sphi 0, %s61
      %s64 = sphi 0, %s63
      %s78 = sphi 0, %s64
      %s82 = sphi 0, %s82
      %s84 = sphi 0, %s82
      %s85 = sphi 0, %s84
      %s99 = sphi 0, %s85
      %s107 = sphi 0, %s109
      %s110 = sphi 0, %s107
      %s111 = sphi 0, %s110
      %s127 = sphi 0, %s111
    $region4: #{tpu_custom_call.1} parent=1 // loop_header_branch
      %16 = sbr.rel (%p14) target = $region8
    $region5: #{tpu_custom_call.1} parent=1 // loop_body
      %s18 = ssub.s32 %s13, 1
      %s19 = ssub.s32 %s13, 2
      %s26 = sadd.s32 1, %s21
      %p27 = scmp.ge.s32.totalorder %s26, 3
      %s28 = scalar_select %p27, 0, %s26
      %s29 = sadd.s32 1, %s20
      %s30 = scalar_select %p27, %s29, %s20
      %p31 = scmp.ge.s32.totalorder %s30, 2
      %s32 = scalar_select %p31, 0, %s30
      %s33 = ssub.s32 %s20, %s32
      %s34 = ssub.s32 %s21, %s28
      %s35 = sor.u32 %s33, %s34
      %p36 = scmp.eq.s32.totalorder %s35, 0
      %s38 = sadd.s32 %s37, 1
      %s39 = scalar_select %p36, %s37, %s38
      %p42 = pneg %p36
      %p43 = scmp.eq.s32.totalorder %s13, 5
      %p44 = por %p42, %p43
      %p45 = scmp.ne.s32.totalorder %s37, %s40
      %p46 = scmp.eq.s32.totalorder %s13, 0
      %p47 = por %p45, %p46
      %p48 = scmp.ne.s32.totalorder %s37, %s40
      %p49 = scmp.eq.s32.totalorder %s18, 5
      %p50 = por %p48, %p49
      %p51 = scmp.ne.s32.totalorder %s40, %s41
      %p52 = scmp.eq.s32.totalorder %s18, 0
      %p53 = por %p51, %p52
      %p54 = scmp.ne.s32.totalorder %s40, %s41
      %p55 = scmp.eq.s32.totalorder %s19, 5
      %p56 = por %p54, %p55
      %p58 = scmp.ne.s32.totalorder %s41, %s57
      %p59 = scmp.eq.s32.totalorder %s19, 0
      %p60 = por %p58, %p59
      %s62 = sadd.s32 %s61, 1
      %p65 = scmp.eq.s32.totalorder %s13, 5
      %p66 = scmp.ne.s32.totalorder %s61, %s63
      %p67 = scmp.eq.s32.totalorder %s13, 0
      %p68 = por %p66, %p67
      %p69 = scmp.ne.s32.totalorder %s61, %s63
      %p70 = scmp.eq.s32.totalorder %s18, 5
      %p71 = por %p69, %p70
      %p72 = scmp.ne.s32.totalorder %s63, %s64
      %p73 = scmp.eq.s32.totalorder %s18, 0
      %p74 = por %p72, %p73
      %p75 = scmp.ne.s32.totalorder %s63, %s64
      %p76 = scmp.eq.s32.totalorder %s19, 5
      %p77 = por %p75, %p76
      %p79 = scmp.ne.s32.totalorder %s64, %s78
      %p80 = scmp.eq.s32.totalorder %s19, 0
      %p81 = por %p79, %p80
      %s83 = sadd.s32 %s82, 1
      %p86 = scmp.eq.s32.totalorder %s13, 5
      %p87 = scmp.ne.s32.totalorder %s82, %s84
      %p88 = scmp.eq.s32.totalorder %s13, 0
      %p89 = por %p87, %p88
      %p90 = scmp.ne.s32.totalorder %s82, %s84
      %p91 = scmp.eq.s32.totalorder %s18, 5
      %p92 = por %p90, %p91
      %p93 = scmp.ne.s32.totalorder %s84, %s85
      %p94 = scmp.eq.s32.totalorder %s18, 0
      %p95 = por %p93, %p94
      %p96 = scmp.ne.s32.totalorder %s84, %s85
      %p97 = scmp.eq.s32.totalorder %s19, 5
      %p98 = por %p96, %p97
      %p100 = scmp.ne.s32.totalorder %s85, %s99
      %p101 = scmp.eq.s32.totalorder %s19, 0
      %p102 = por %p100, %p101
      %s103 = ssub.s32 %s20, %s32
      %s104 = ssub.s32 %s21, %s28
      %s105 = sor.u32 %s103, %s104
      %p106 = scmp.eq.s32.totalorder %s105, 0
      %s108 = sadd.s32 %s107, 1
      %s109 = scalar_select %p106, %s107, %s108
      %p112 = pneg %p106
      %p113 = scmp.eq.s32.totalorder %s13, 5
      %p114 = por %p112, %p113
      %p115 = scmp.ne.s32.totalorder %s107, %s110
      %p116 = scmp.eq.s32.totalorder %s13, 0
      %p117 = por %p115, %p116
      %p118 = scmp.ne.s32.totalorder %s107, %s110
      %p119 = scmp.eq.s32.totalorder %s18, 5
      %p120 = por %p118, %p119
      %p121 = scmp.ne.s32.totalorder %s110, %s111
      %p122 = scmp.eq.s32.totalorder %s18, 0
      %p123 = por %p121, %p122
      %p124 = scmp.ne.s32.totalorder %s110, %s111
      %p125 = scmp.eq.s32.totalorder %s19, 5
      %p126 = por %p124, %p125
      %p128 = scmp.ne.s32.totalorder %s111, %s127
      %p129 = scmp.eq.s32.totalorder %s19, 0
      %p130 = por %p128, %p129
      %p131 = scmp.le.s32.totalorder 1, %s13
      %p132 = scmp.lt.s32.totalorder %s13, 7
      %p133 = pnand %p131, %p132
      %p134 = pneg %p133
      // Predicated region
      $region9: #{tpu_custom_call.1} parent=5 // pred_check
        _
      $region10: #{tpu_custom_call.1} parent=5 // pred_check_branch
        %136 = sbr.rel (%p133) target = $region12
      $region11: #{tpu_custom_call.1} parent=5 // pred_region
        %s137 = ssub.s32 %s13, 1
        // Predicated region
        $region13: #{tpu_custom_call.1} parent=11 // pred_check
          %p138 = pneg %p74
        $region14: #{tpu_custom_call.1} parent=11 // pred_check_branch
          %140 = sbr.rel (%p138) target = $region16
        $region15: #{tpu_custom_call.1} parent=11 // pred_region
          %s142 = ssub.s32 15360, 15360
          %143 = vsyncadd [#allocation4], %s142
          %s144 = sshll.u32 [#allocation3], 4
          %s145 = int_to_ptr.vmem [resolvable:$true] %s144
          %150 = dma.hbm_to_vmem [thread:$0]  %s1, 15360, %s145, [#allocation4], 64, 64, 4
        $region16: #{tpu_custom_call.1} parent=11 // pred_fallthru
          _
        // Predicated region
        $region17: #{tpu_custom_call.1} parent=11 // pred_check
          %p151 = pneg %p95
        $region18: #{tpu_custom_call.1} parent=11 // pred_check_branch
          %153 = sbr.rel (%p151) target = $region20
        $region19: #{tpu_custom_call.1} parent=11 // pred_region
          _
        $region20: #{tpu_custom_call.1} parent=11 // pred_fallthru
          _
      $region12: #{tpu_custom_call.1} parent=5 // pred_fallthru
        _
      %p154 = scmp.lt.s32.totalorder %s13, 6
      // Predicated region
      $region21: #{tpu_custom_call.1} parent=5 // pred_check
        %p155 = pneg %p154
      $region22: #{tpu_custom_call.1} parent=5 // pred_check_branch
        %157 = sbr.rel (%p155) target = $region24
      $region23: #{tpu_custom_call.1} parent=5 // pred_region
        // Predicated region
        $region25: #{tpu_custom_call.1} parent=23 // pred_check
          %p158 = pneg %p47
        $region26: #{tpu_custom_call.1} parent=23 // pred_check_branch
          %160 = sbr.rel (%p158) target = $region28
        $region27: #{tpu_custom_call.1} parent=23 // pred_region
          %p161 = scmp.lt.s32.totalorder %s20, 1
          %s162 = scalar_select %p161, %s20, 1
          %p163 = scmp.lt.s32.totalorder %s21, 2
          %s164 = scalar_select %p163, %s21, 2
          %s165 = smul.addr %s164, 4
          %s166 = smul.addr %s162, 12
          %s167 = sadd.s32 %s165, %s166
          %s168 = smul.addr %s167, 4
          %s169 = scalar_lea.vmem %s0, %s168
        $region28: #{tpu_custom_call.1} parent=23 // pred_fallthru
          _
      $region24: #{tpu_custom_call.1} parent=5 // pred_fallthru
        _
      %p170 = scmp.le.s32.totalorder 1, %s13
      %p171 = scmp.lt.s32.totalorder %s13, 7
      %p172 = pnand %p170, %p171
      %p173 = pneg %p172
      // Predicated region
      $region29: #{tpu_custom_call.1} parent=5 // pred_check
        _
      $region30: #{tpu_custom_call.1} parent=5 // pred_check_branch
        %175 = sbr.rel (%p172) target = $region32
      $region31: #{tpu_custom_call.1} parent=5 // pred_region
        %s176 = ssub.s32 %s13, 1
        // Predicated region
        $region33: #{tpu_custom_call.1} parent=31 // pred_check
          %p177 = pneg %p74
        $region34: #{tpu_custom_call.1} parent=31 // pred_check_branch
          %179 = sbr.rel (%p177) target = $region36
        $region35: #{tpu_custom_call.1} parent=31 // pred_region
          %180 = dma.done [#allocation4], 15360
        $region36: #{tpu_custom_call.1} parent=31 // pred_fallthru
          _
        %p181 = scmp.lt.s32.totalorder %s22, 1
        %s182 = scalar_select %p181, %s22, 1
        %p183 = scmp.lt.s32.totalorder %s23, 2
        %s184 = scalar_select %p183, %s23, 2
        %s185 = smul.addr %s184, 4
        %s186 = smul.addr %s182, 12
        %s187 = sadd.s32 %s185, %s186
        %s188 = smul.addr %s187, 4
        %s189 = scalar_lea.vmem %s0, %s188
        %p190 = pneg %p53
        %p191 = pneg %p50
        %p192 = pneg %p74
        %p193 = pneg %p71
        %p194 = pneg %p95
        %p195 = pneg %p92
        %p196 = pneg %p123
        %p197 = pneg %p120
        %s198 = sand.u32 %s110, 1
        %s199 = scalar_lea.sflag [#allocation5], %s198
        %s200 = sand.u32 %s110, 1
        %s201 = smul.addr %s200, 16
        %s202 = scalar_lea.vmem [#allocation6], %s201
        %p203 = scmp.lt.s32.totalorder %s22, 1
        %s204 = scalar_select %p203, %s22, 1
        %p205 = scmp.lt.s32.totalorder %s23, 2
        %s206 = scalar_select %p205, %s23, 2
        %s207 = smul.addr %s206, 4
        %s208 = smul.addr %s204, 12
        %s209 = sadd.s32 %s207, %s208
        %s210 = smul.addr %s209, 4
        %s211 = scalar_lea.vmem %s0, %s210
        %s212 = smul.u32 2, %s23
        %214 = vst [vmem:[#allocation2 + $0x4] sm:$0x8] 0
        %215 = vst [vmem:[#allocation2 + $0x14] sm:$0x4] 0
        %v216 = vld [vmem:[%s211] sm:$0xf]
        %v217 = vld [vmem:[%s211 + $0x4] sm:$0xf]
        %v218 = vld [vmem:[%s211 + $0x8] sm:$0xf]
        %v219 = vld [vmem:[%s211 + $0xc] sm:$0x3]
        %220 = vst [vmem:[#allocation2 + $0x8] sm:$0xf] %v216
        %221 = vst [vmem:[#allocation2 + $0xc] sm:$0xf] %v217
        %222 = vst [vmem:[#allocation2 + $0x10] sm:$0xf] %v218
        %223 = vst [vmem:[#allocation2 + $0x14] sm:$0x3] %v219
        %v224 = vlaneseq
        %v225 = vshrl.u32 %v224, 7
        %v226 = vadd.s32 %v225, 8
        %v227 = vadd.s32 %v225, 16
        %v228 = vadd.s32 %v225, 24
        %s229 = smul.u32 %s23, 16
        %s230 = ssub.s32 %s229, 6
        %v231 = vstv %s230
        %v232 = vadd.s32 %v225, %v231
        %v233 = vadd.s32 %v226, %v231
        %v234 = vadd.s32 %v227, %v231
        %v235 = vadd.s32 %v228, %v231
        %vm236 = vcmp.ge.s32.totalorder %v232, 0
        %vm237 = vcmp.ge.s32.totalorder %v233, 0
        %vm238 = vcmp.ge.s32.totalorder %v234, 0
        %vm239 = vcmp.ge.s32.totalorder %v235, 0
        %vm240 = vcmp.lt.s32.totalorder %v232, 40
        %vm241 = vcmp.lt.s32.totalorder %v233, 40
        %vm242 = vcmp.lt.s32.totalorder %v234, 40
        %vm243 = vcmp.lt.s32.totalorder %v235, 40
        %vm244 = vmand %vm236, %vm240
        %vm245 = vmand %vm237, %vm241
        %vm246 = vmand %vm238, %vm242
        %vm247 = vmand %vm239, %vm243
        %v248 = vld [vmem:[#allocation2 + $0x4] sm:$0x8]
        %v249 = vld [vmem:[#allocation2 + $0x8] sm:$0xf]
        %v250 = vld [vmem:[#allocation2 + $0xc] sm:$0xf]
        %v251 = vld [vmem:[#allocation2 + $0x10] sm:$0xf]
        %v252 = vld [vmem:[#allocation2 + $0x14] sm:$0x1]
        %v253 = vld [vmem:[#allocation3] sm:$0xf]
        %v254 = vld [vmem:[#allocation3 + $0x4] sm:$0xf]
        %v255 = vld [vmem:[#allocation3 + $0x8] sm:$0xf]
        %v256 = vld [vmem:[#allocation3 + $0xc] sm:$0xf]
        %v257 = vld [vmem:[#allocation3 + $0x10] sm:$0xf]
        %v258 = vld [vmem:[#allocation3 + $0x14] sm:$0xf]
        %v259 = vld [vmem:[#allocation3 + $0x18] sm:$0xf]
        %v260 = vld [vmem:[#allocation3 + $0x1c] sm:$0xf]
        %v261 = vld [vmem:[#allocation3 + $0x20] sm:$0xf]
        %v262 = vld [vmem:[#allocation3 + $0x24] sm:$0xf]
        %v263 = vld [vmem:[#allocation3 + $0x28] sm:$0xf]
        %v264 = vld [vmem:[#allocation3 + $0x2c] sm:$0xf]
        %v265 = vld [vmem:[#allocation3 + $0x30] sm:$0xf]
        %v266 = vld [vmem:[#allocation3 + $0x34] sm:$0xf]
        %v267 = vld [vmem:[#allocation3 + $0x38] sm:$0xf]
        %v268 = vld [vmem:[#allocation3 + $0x3c] sm:$0xf]
        %v269 = vld [vmem:[#allocation2 + $0x14] sm:$0x3]
        %s270 = scalar_lea.vmem [#allocation3], 64
        %v271 = vld [vmem:[%s270] sm:$0xf]
        %v272 = vld [vmem:[%s270 + $0x4] sm:$0xf]
        %v273 = vld [vmem:[%s270 + $0x8] sm:$0xf]
        %v274 = vld [vmem:[%s270 + $0xc] sm:$0xf]
        %v275 = vld [vmem:[%s270 + $0x10] sm:$0xf]
        %v276 = vld [vmem:[%s270 + $0x14] sm:$0xf]
        %v277 = vld [vmem:[%s270 + $0x18] sm:$0xf]
        %v278 = vld [vmem:[%s270 + $0x1c] sm:$0xf]
        %v279 = vld [vmem:[%s270 + $0x20] sm:$0xf]
        %v280 = vld [vmem:[%s270 + $0x24] sm:$0xf]
        %v281 = vld [vmem:[%s270 + $0x28] sm:$0xf]
        %v282 = vld [vmem:[%s270 + $0x2c] sm:$0xf]
        %v283 = vld [vmem:[%s270 + $0x30] sm:$0xf]
        %v284 = vld [vmem:[%s270 + $0x34] sm:$0xf]
        %v285 = vld [vmem:[%s270 + $0x38] sm:$0xf]
        %v286 = vld [vmem:[%s270 + $0x3c] sm:$0xf]
        %v292 = vunpack.c.l.b16 %v248
        %v293 = vunpack.c.l.b16 %v249
        %v294 = vunpack.c.l.b16 %v250
        %v295 = vunpack.c.l.b16 %v251
        %v296 = vunpack.c.l.b16 %v269
        %v297 = vpack.c.b16 %v293, %v292
        %v298 = vpack.c.b16 %v295, %v294
        %v299 = vpack.c.b16 %v296, %v296
        %vm300 = vsmask.f32 4352
        %v302 = vshrl.u32 %v297, 16
        %v304 = vrot.slane %v302, 3
        %v305 = vshll.u32 %v297, 16
        %v307 = vrot.slane %v305, 4
        %v308 = vor.u32 %v304, %v307
        %v310 = vshrl.u32 %v298, 16
        %v312 = vrot.slane %v310, 3
        %v313 = vshll.u32 %v298, 16
        %v315 = vrot.slane %v313, 4
        %v316 = vor.u32 %v312, %v315
        %v317 = vsel %vm300, %v308, %v316
        %v319 = vshrl.u32 %v299, 16
        %v321 = vrot.slane %v319, 3
        %v322 = vshll.u32 %v299, 16
        %v324 = vrot.slane %v322, 4
        %v325 = vor.u32 %v321, %v324
        %v326 = vsel %vm300, %v316, %v325
        %v345 = vunpack.c.l.b16 %v271
        %v346 = vunpack.c.l.b16 %v272
        %v347 = vunpack.c.l.b16 %v273
        %v348 = vunpack.c.l.b16 %v274
        %v349 = vunpack.c.l.b16 %v275
        %v350 = vunpack.c.l.b16 %v276
        %v351 = vunpack.c.l.b16 %v277
        %v352 = vunpack.c.l.b16 %v278
        %v353 = vunpack.c.l.b16 %v279
        %v354 = vunpack.c.l.b16 %v280
        %v355 = vunpack.c.l.b16 %v281
        %v356 = vunpack.c.l.b16 %v282
        %v357 = vunpack.c.l.b16 %v283
        %v358 = vunpack.c.l.b16 %v284
        %v359 = vunpack.c.l.b16 %v285
        %v360 = vunpack.c.l.b16 %v286
        %v361 = vpack.c.b16 %v346, %v345
        %v362 = vpack.c.b16 %v348, %v347
        %v363 = vpack.c.b16 %v350, %v349
        %v364 = vpack.c.b16 %v352, %v351
        %v365 = vpack.c.b16 %v354, %v353
        %v366 = vpack.c.b16 %v356, %v355
        %v367 = vpack.c.b16 %v358, %v357
        %v368 = vpack.c.b16 %v360, %v359
        %377 = vmatprep.subr.bf16.mxu0 0
        %378 = vmatpush1.bf16.msra.mxu0 %v361
        %379 = vmatprep.subr.bf16.mxu0 0
        %380 = vmatpush1.bf16.msra.mxu0 %v362
        %381 = vmatprep.subr.bf16.mxu0 0
        %382 = vmatpush1.bf16.msra.mxu0 %v363
        %383 = vmatprep.subr.bf16.mxu0 0
        %384 = vmatpush1.bf16.msra.mxu0 %v364
        %385 = vmatprep.subr.bf16.mxu0 0
        %386 = vmatpush1.bf16.msra.mxu0 %v365
        %387 = vmatprep.subr.bf16.mxu0 0
        %388 = vmatpush1.bf16.msra.mxu0 %v366
        %389 = vmatprep.subr.bf16.mxu0 0
        %390 = vmatpush1.bf16.msra.mxu0 %v367
        %391 = vmatprep.subr.bf16.mxu0 0
        %392 = vmatpush1.bf16.msra.mxu0 %v368
        %393 = vmatprep.subr.bf16.mxu0 0
        %394 = vmatpush1.bf16.msra.mxu0 0
        %395 = vmatprep.subr.bf16.mxu0 0
        %396 = vmatpush1.bf16.msra.mxu0 0
        %397 = vmatprep.subr.bf16.mxu0 0
        %398 = vmatpush1.bf16.msra.mxu0 0
        %399 = vmatprep.subr.bf16.mxu0 0
        %400 = vmatpush1.bf16.msra.mxu0 0
        %401 = vmatprep.subr.bf16.mxu0 0
        %402 = vmatpush1.bf16.msra.mxu0 0
        %403 = vmatprep.subr.bf16.mxu0 0
        %404 = vmatpush1.bf16.msra.mxu0 0
        %405 = vmatprep.subr.bf16.mxu0 0
        %406 = vmatpush1.bf16.msra.mxu0 0
        %407 = vmatprep.subr.bf16.mxu0 0
        %408 = vmatpush1.bf16.msra.mxu0 0
        %409 = vmatprep.mubr.bf16.mxu0 0
        %410 = vmatmul.mubr.bf16.gmra.mrb[0].mxu0 %v317
        %v411 = vpop.f32.mrb[0].mxu0
        %v412 = vadd.f32 0.0, %v411
        %v413 = vpop.f32.mrb[0].mxu0
        %v414 = vpop.f32.mrb[0].mxu0
        %v415 = vadd.f32 0.0, %v414
        %v416 = vpop.f32.mrb[0].mxu0
        %417 = vmatprep.mubr.bf16.mxu0 0
        %418 = vmatmul.mubr.bf16.gmra.mrb[0].mxu0 %v326
        %v419 = vpop.f32.mrb[0].mxu0
        %v420 = vadd.f32 0.0, %v419
        %v421 = vpop.f32.mrb[0].mxu0
        %v422 = vpop.f32.mrb[0].mxu0
        %v423 = vadd.f32 0.0, %v422
        %v424 = vpop.f32.mrb[0].mxu0
        %425 = vdwg.mxu0
        %v427 = vunpack.c.l.b16 %v252
        %v428 = vpack.c.b16 %v427, %v427
        %vm429 = vcmask 1044480
        %v430 = vrot.slane %v297, 3
        %v431 = vrot.slane %v298, 3
        %v432 = vsel %vm429, %v430, %v431
        %v433 = vrot.slane %v428, 3
        %v434 = vsel %vm429, %v431, %v433
        %v453 = vunpack.c.l.b16 %v253
        %v454 = vunpack.c.l.b16 %v254
        %v455 = vunpack.c.l.b16 %v255
        %v456 = vunpack.c.l.b16 %v256
        %v457 = vunpack.c.l.b16 %v257
        %v458 = vunpack.c.l.b16 %v258
        %v459 = vunpack.c.l.b16 %v259
        %v460 = vunpack.c.l.b16 %v260
        %v461 = vunpack.c.l.b16 %v261
        %v462 = vunpack.c.l.b16 %v262
        %v463 = vunpack.c.l.b16 %v263
        %v464 = vunpack.c.l.b16 %v264
        %v465 = vunpack.c.l.b16 %v265
        %v466 = vunpack.c.l.b16 %v266
        %v467 = vunpack.c.l.b16 %v267
        %v468 = vunpack.c.l.b16 %v268
        %v469 = vpack.c.b16 %v454, %v453
        %v470 = vpack.c.b16 %v456, %v455
        %v471 = vpack.c.b16 %v458, %v457
        %v472 = vpack.c.b16 %v460, %v459
        %v473 = vpack.c.b16 %v462, %v461
        %v474 = vpack.c.b16 %v464, %v463
        %v475 = vpack.c.b16 %v466, %v465
        %v476 = vpack.c.b16 %v468, %v467
        %485 = vmatprep.subr.bf16.mxu0 0
        %486 = vmatpush1.bf16.msra.mxu0 %v469
        %487 = vmatprep.subr.bf16.mxu0 0
        %488 = vmatpush1.bf16.msra.mxu0 %v470
        %489 = vmatprep.subr.bf16.mxu0 0
        %490 = vmatpush1.bf16.msra.mxu0 %v471
        %491 = vmatprep.subr.bf16.mxu0 0
        %492 = vmatpush1.bf16.msra.mxu0 %v472
        %493 = vmatprep.subr.bf16.mxu0 0
        %494 = vmatpush1.bf16.msra.mxu0 %v473
        %495 = vmatprep.subr.bf16.mxu0 0
        %496 = vmatpush1.bf16.msra.mxu0 %v474
        %497 = vmatprep.subr.bf16.mxu0 0
        %498 = vmatpush1.bf16.msra.mxu0 %v475
        %499 = vmatprep.subr.bf16.mxu0 0
        %500 = vmatpush1.bf16.msra.mxu0 %v476
        %501 = vmatprep.subr.bf16.mxu0 0
        %502 = vmatpush1.bf16.msra.mxu0 0
        %503 = vmatprep.subr.bf16.mxu0 0
        %504 = vmatpush1.bf16.msra.mxu0 0
        %505 = vmatprep.subr.bf16.mxu0 0
        %506 = vmatpush1.bf16.msra.mxu0 0
        %507 = vmatprep.subr.bf16.mxu0 0
        %508 = vmatpush1.bf16.msra.mxu0 0
        %509 = vmatprep.subr.bf16.mxu0 0
        %510 = vmatpush1.bf16.msra.mxu0 0
        %511 = vmatprep.subr.bf16.mxu0 0
        %512 = vmatpush1.bf16.msra.mxu0 0
        %513 = vmatprep.subr.bf16.mxu0 0
        %514 = vmatpush1.bf16.msra.mxu0 0
        %515 = vmatprep.subr.bf16.mxu0 0
        %516 = vmatpush1.bf16.msra.mxu0 0
        %517 = vmatprep.mubr.bf16.mxu0 0
        %518 = vmatmul.mubr.bf16.gmra.mrb[0].mxu0 %v432
        %v519 = vpop.f32.mrb[0].mxu0
        %v520 = vadd.f32 %v412, %v519
        %v521 = vpop.f32.mrb[0].mxu0
        %v522 = vpop.f32.mrb[0].mxu0
        %v523 = vadd.f32 %v415, %v522
        %v524 = vpop.f32.mrb[0].mxu0
        %525 = vmatprep.mubr.bf16.mxu0 0
        %526 = vmatmul.mubr.bf16.gmra.mrb[0].mxu0 %v434
        %v527 = vpop.f32.mrb[0].mxu0
        %v528 = vadd.f32 %v420, %v527
        %v529 = vpop.f32.mrb[0].mxu0
        %v530 = vpop.f32.mrb[0].mxu0
        %v531 = vadd.f32 %v423, %v530
        %v532 = vpop.f32.mrb[0].mxu0
        %533 = vdwg.mxu0
        %s534 = scalar_lea.vmem [#allocation3], 128
        %v535 = vld [vmem:[%s534] sm:$0xf]
        %v536 = vld [vmem:[%s534 + $0x4] sm:$0xf]
        %v537 = vld [vmem:[%s534 + $0x8] sm:$0xf]
        %v538 = vld [vmem:[%s534 + $0xc] sm:$0xf]
        %v539 = vld [vmem:[%s534 + $0x10] sm:$0xf]
        %v540 = vld [vmem:[%s534 + $0x14] sm:$0xf]
        %v541 = vld [vmem:[%s534 + $0x18] sm:$0xf]
        %v542 = vld [vmem:[%s534 + $0x1c] sm:$0xf]
        %v543 = vld [vmem:[%s534 + $0x20] sm:$0xf]
        %v544 = vld [vmem:[%s534 + $0x24] sm:$0xf]
        %v545 = vld [vmem:[%s534 + $0x28] sm:$0xf]
        %v546 = vld [vmem:[%s534 + $0x2c] sm:$0xf]
        %v547 = vld [vmem:[%s534 + $0x30] sm:$0xf]
        %v548 = vld [vmem:[%s534 + $0x34] sm:$0xf]
        %v549 = vld [vmem:[%s534 + $0x38] sm:$0xf]
        %v550 = vld [vmem:[%s534 + $0x3c] sm:$0xf]
        %v551 = vpack.c.b16 %v294, %v293
        %v552 = vpack.c.b16 %v296, %v295
        %v571 = vunpack.c.l.b16 %v535
        %v572 = vunpack.c.l.b16 %v536
        %v573 = vunpack.c.l.b16 %v537
        %v574 = vunpack.c.l.b16 %v538
        %v575 = vunpack.c.l.b16 %v539
        %v576 = vunpack.c.l.b16 %v540
        %v577 = vunpack.c.l.b16 %v541
        %v578 = vunpack.c.l.b16 %v542
        %v579 = vunpack.c.l.b16 %v543
        %v580 = vunpack.c.l.b16 %v544
        %v581 = vunpack.c.l.b16 %v545
        %v582 = vunpack.c.l.b16 %v546
        %v583 = vunpack.c.l.b16 %v547
        %v584 = vunpack.c.l.b16 %v548
        %v585 = vunpack.c.l.b16 %v549
        %v586 = vunpack.c.l.b16 %v550
        %v587 = vpack.c.b16 %v572, %v571
        %v588 = vpack.c.b16 %v574, %v573
        %v589 = vpack.c.b16 %v576, %v575
        %v590 = vpack.c.b16 %v578, %v577
        %v591 = vpack.c.b16 %v580, %v579
        %v592 = vpack.c.b16 %v582, %v581
        %v593 = vpack.c.b16 %v584, %v583
        %v594 = vpack.c.b16 %v586, %v585
        %603 = vmatprep.subr.bf16.mxu0 0
        %604 = vmatpush1.bf16.msra.mxu0 %v587
        %605 = vmatprep.subr.bf16.mxu0 0
        %606 = vmatpush1.bf16.msra.mxu0 %v588
        %607 = vmatprep.subr.bf16.mxu0 0
        %608 = vmatpush1.bf16.msra.mxu0 %v589
        %609 = vmatprep.subr.bf16.mxu0 0
        %610 = vmatpush1.bf16.msra.mxu0 %v590
        %611 = vmatprep.subr.bf16.mxu0 0
        %612 = vmatpush1.bf16.msra.mxu0 %v591
        %613 = vmatprep.subr.bf16.mxu0 0
        %614 = vmatpush1.bf16.msra.mxu0 %v592
        %615 = vmatprep.subr.bf16.mxu0 0
        %616 = vmatpush1.bf16.msra.mxu0 %v593
        %617 = vmatprep.subr.bf16.mxu0 0
        %618 = vmatpush1.bf16.msra.mxu0 %v594
        %619 = vmatprep.subr.bf16.mxu0 0
        %620 = vmatpush1.bf16.msra.mxu0 0
        %621 = vmatprep.subr.bf16.mxu0 0
        %622 = vmatpush1.bf16.msra.mxu0 0
        %623 = vmatprep.subr.bf16.mxu0 0
        %624 = vmatpush1.bf16.msra.mxu0 0
        %625 = vmatprep.subr.bf16.mxu0 0
        %626 = vmatpush1.bf16.msra.mxu0 0
        %627 = vmatprep.subr.bf16.mxu0 0
        %628 = vmatpush1.bf16.msra.mxu0 0
        %629 = vmatprep.subr.bf16.mxu0 0
        %630 = vmatpush1.bf16.msra.mxu0 0
        %631 = vmatprep.subr.bf16.mxu0 0
        %632 = vmatpush1.bf16.msra.mxu0 0
        %633 = vmatprep.subr.bf16.mxu0 0
        %634 = vmatpush1.bf16.msra.mxu0 0
        %635 = vmatprep.mubr.bf16.mxu0 0
        %636 = vmatmul.mubr.bf16.gmra.mrb[0].mxu0 %v551
        %v637 = vpop.f32.mrb[0].mxu0
        %v638 = vadd.f32 0.0, %v637
        %v639 = vpop.f32.mrb[0].mxu0
        %v640 = vpop.f32.mrb[0].mxu0
        %v641 = vadd.f32 0.0, %v640
        %v642 = vpop.f32.mrb[0].mxu0
        %643 = vmatprep.mubr.bf16.mxu0 0
        %644 = vmatmul.mubr.bf16.gmra.mrb[0].mxu0 %v552
        %v645 = vpop.f32.mrb[0].mxu0
        %v646 = vadd.f32 0.0, %v645
        %v647 = vpop.f32.mrb[0].mxu0
        %v648 = vpop.f32.mrb[0].mxu0
        %v649 = vadd.f32 0.0, %v648
        %v650 = vpop.f32.mrb[0].mxu0
        %651 = vdwg.mxu0
        %v652 = vadd.f32 %v520, %v638
        %v653 = vadd.f32 %v523, %v641
        %v654 = vadd.f32 %v528, %v646
        %v655 = vadd.f32 %v531, %v649
        %v656 = vld [vmem:[#allocation2 + $0x14] sm:$0x7]
        %s657 = scalar_lea.vmem [#allocation3], 192
        %v658 = vld [vmem:[%s657] sm:$0xf]
        %v659 = vld [vmem:[%s657 + $0x4] sm:$0xf]
        %v660 = vld [vmem:[%s657 + $0x8] sm:$0xf]
        %v661 = vld [vmem:[%s657 + $0xc] sm:$0xf]
        %v662 = vld [vmem:[%s657 + $0x10] sm:$0xf]
        %v663 = vld [vmem:[%s657 + $0x14] sm:$0xf]
        %v664 = vld [vmem:[%s657 + $0x18] sm:$0xf]
        %v665 = vld [vmem:[%s657 + $0x1c] sm:$0xf]
        %v666 = vld [vmem:[%s657 + $0x20] sm:$0xf]
        %v667 = vld [vmem:[%s657 + $0x24] sm:$0xf]
        %v668 = vld [vmem:[%s657 + $0x28] sm:$0xf]
        %v669 = vld [vmem:[%s657 + $0x2c] sm:$0xf]
        %v670 = vld [vmem:[%s657 + $0x30] sm:$0xf]
        %v671 = vld [vmem:[%s657 + $0x34] sm:$0xf]
        %v672 = vld [vmem:[%s657 + $0x38] sm:$0xf]
        %v673 = vld [vmem:[%s657 + $0x3c] sm:$0xf]
        %v675 = vunpack.c.l.b16 %v656
        %v676 = vpack.c.b16 %v675, %v295
        %vm677 = vsmask.f32 7424
        %v679 = vshrl.u32 %v551, 16
        %v681 = vshll.u32 %v551, 16
        %v683 = vrot.slane %v681, 1
        %v684 = vor.u32 %v679, %v683
        %v686 = vshll.u32 %v676, 16
        %v688 = vrot.slane %v686, 1
        %v689 = vsel %vm677, %v684, %v688
        %v690 = vshrl.u32 %v676, 16
        %v692 = vor.u32 %v690, %v688
        %v711 = vunpack.c.l.b16 %v658
        %v712 = vunpack.c.l.b16 %v659
        %v713 = vunpack.c.l.b16 %v660
        %v714 = vunpack.c.l.b16 %v661
        %v715 = vunpack.c.l.b16 %v662
        %v716 = vunpack.c.l.b16 %v663
        %v717 = vunpack.c.l.b16 %v664
        %v718 = vunpack.c.l.b16 %v665
        %v719 = vunpack.c.l.b16 %v666
        %v720 = vunpack.c.l.b16 %v667
        %v721 = vunpack.c.l.b16 %v668
        %v722 = vunpack.c.l.b16 %v669
        %v723 = vunpack.c.l.b16 %v670
        %v724 = vunpack.c.l.b16 %v671
        %v725 = vunpack.c.l.b16 %v672
        %v726 = vunpack.c.l.b16 %v673
        %v727 = vpack.c.b16 %v712, %v711
        %v728 = vpack.c.b16 %v714, %v713
        %v729 = vpack.c.b16 %v716, %v715
        %v730 = vpack.c.b16 %v718, %v717
        %v731 = vpack.c.b16 %v720, %v719
        %v732 = vpack.c.b16 %v722, %v721
        %v733 = vpack.c.b16 %v724, %v723
        %v734 = vpack.c.b16 %v726, %v725
        %743 = vmatprep.subr.bf16.mxu0 0
        %744 = vmatpush1.bf16.msra.mxu0 %v727
        %745 = vmatprep.subr.bf16.mxu0 0
        %746 = vmatpush1.bf16.msra.mxu0 %v728
        %747 = vmatprep.subr.bf16.mxu0 0
        %748 = vmatpush1.bf16.msra.mxu0 %v729
        %749 = vmatprep.subr.bf16.mxu0 0
        %750 = vmatpush1.bf16.msra.mxu0 %v730
        %751 = vmatprep.subr.bf16.mxu0 0
        %752 = vmatpush1.bf16.msra.mxu0 %v731
        %753 = vmatprep.subr.bf16.mxu0 0
        %754 = vmatpush1.bf16.msra.mxu0 %v732
        %755 = vmatprep.subr.bf16.mxu0 0
        %756 = vmatpush1.bf16.msra.mxu0 %v733
        %757 = vmatprep.subr.bf16.mxu0 0
        %758 = vmatpush1.bf16.msra.mxu0 %v734
        %759 = vmatprep.subr.bf16.mxu0 0
        %760 = vmatpush1.bf16.msra.mxu0 0
        %761 = vmatprep.subr.bf16.mxu0 0
        %762 = vmatpush1.bf16.msra.mxu0 0
        %763 = vmatprep.subr.bf16.mxu0 0
        %764 = vmatpush1.bf16.msra.mxu0 0
        %765 = vmatprep.subr.bf16.mxu0 0
        %766 = vmatpush1.bf16.msra.mxu0 0
        %767 = vmatprep.subr.bf16.mxu0 0
        %768 = vmatpush1.bf16.msra.mxu0 0
        %769 = vmatprep.subr.bf16.mxu0 0
        %770 = vmatpush1.bf16.msra.mxu0 0
        %771 = vmatprep.subr.bf16.mxu0 0
        %772 = vmatpush1.bf16.msra.mxu0 0
        %773 = vmatprep.subr.bf16.mxu0 0
        %774 = vmatpush1.bf16.msra.mxu0 0
        %775 = vmatprep.mubr.bf16.mxu0 0
        %776 = vmatmul.mubr.bf16.gmra.mrb[0].mxu0 %v689
        %v777 = vpop.f32.mrb[0].mxu0
        %v778 = vadd.f32 0.0, %v777
        %v779 = vpop.f32.mrb[0].mxu0
        %v780 = vpop.f32.mrb[0].mxu0
        %v781 = vadd.f32 0.0, %v780
        %v782 = vpop.f32.mrb[0].mxu0
        %783 = vmatprep.mubr.bf16.mxu0 0
        %784 = vmatmul.mubr.bf16.gmra.mrb[0].mxu0 %v692
        %v785 = vpop.f32.mrb[0].mxu0
        %v786 = vadd.f32 0.0, %v785
        %v787 = vpop.f32.mrb[0].mxu0
        %v788 = vpop.f32.mrb[0].mxu0
        %v789 = vadd.f32 0.0, %v788
        %v790 = vpop.f32.mrb[0].mxu0
        %791 = vdwg.mxu0
        %v792 = vadd.f32 %v652, %v778
        %v793 = vadd.f32 %v653, %v781
        %v794 = vadd.f32 %v654, %v786
        %v795 = vadd.f32 %v655, %v789
        %v796 = vld [vmem:[#allocation2 + $0x8] sm:$0xe]
        %s797 = scalar_lea.vmem [#allocation3], 256
        %v798 = vld [vmem:[%s797] sm:$0xf]
        %v799 = vld [vmem:[%s797 + $0x4] sm:$0xf]
        %v800 = vld [vmem:[%s797 + $0x8] sm:$0xf]
        %v801 = vld [vmem:[%s797 + $0xc] sm:$0xf]
        %v802 = vld [vmem:[%s797 + $0x10] sm:$0xf]
        %v803 = vld [vmem:[%s797 + $0x14] sm:$0xf]
        %v804 = vld [vmem:[%s797 + $0x18] sm:$0xf]
        %v805 = vld [vmem:[%s797 + $0x1c] sm:$0xf]
        %v806 = vld [vmem:[%s797 + $0x20] sm:$0xf]
        %v807 = vld [vmem:[%s797 + $0x24] sm:$0xf]
        %v808 = vld [vmem:[%s797 + $0x28] sm:$0xf]
        %v809 = vld [vmem:[%s797 + $0x2c] sm:$0xf]
        %v810 = vld [vmem:[%s797 + $0x30] sm:$0xf]
        %v811 = vld [vmem:[%s797 + $0x34] sm:$0xf]
        %v812 = vld [vmem:[%s797 + $0x38] sm:$0xf]
        %v813 = vld [vmem:[%s797 + $0x3c] sm:$0xf]
        %v815 = vunpack.c.l.b16 %v796
        %v816 = vpack.c.b16 %v294, %v815
        %vm817 = vcmask 1046528
        %v818 = vrot.slane %v816, 1
        %v819 = vrot.slane %v676, 1
        %v820 = vsel %vm817, %v818, %v819
        %v839 = vunpack.c.l.b16 %v798
        %v840 = vunpack.c.l.b16 %v799
        %v841 = vunpack.c.l.b16 %v800
        %v842 = vunpack.c.l.b16 %v801
        %v843 = vunpack.c.l.b16 %v802
        %v844 = vunpack.c.l.b16 %v803
        %v845 = vunpack.c.l.b16 %v804
        %v846 = vunpack.c.l.b16 %v805
        %v847 = vunpack.c.l.b16 %v806
        %v848 = vunpack.c.l.b16 %v807
        %v849 = vunpack.c.l.b16 %v808
        %v850 = vunpack.c.l.b16 %v809
        %v851 = vunpack.c.l.b16 %v810
        %v852 = vunpack.c.l.b16 %v811
        %v853 = vunpack.c.l.b16 %v812
        %v854 = vunpack.c.l.b16 %v813
        %v855 = vpack.c.b16 %v840, %v839
        %v856 = vpack.c.b16 %v842, %v841
        %v857 = vpack.c.b16 %v844, %v843
        %v858 = vpack.c.b16 %v846, %v845
        %v859 = vpack.c.b16 %v848, %v847
        %v860 = vpack.c.b16 %v850, %v849
        %v861 = vpack.c.b16 %v852, %v851
        %v862 = vpack.c.b16 %v854, %v853
        %871 = vmatprep.subr.bf16.mxu0 0
        %872 = vmatpush1.bf16.msra.mxu0 %v855
        %873 = vmatprep.subr.bf16.mxu0 0
        %874 = vmatpush1.bf16.msra.mxu0 %v856
        %875 = vmatprep.subr.bf16.mxu0 0
        %876 = vmatpush1.bf16.msra.mxu0 %v857
        %877 = vmatprep.subr.bf16.mxu0 0
        %878 = vmatpush1.bf16.msra.mxu0 %v858
        %879 = vmatprep.subr.bf16.mxu0 0
        %880 = vmatpush1.bf16.msra.mxu0 %v859
        %881 = vmatprep.subr.bf16.mxu0 0
        %882 = vmatpush1.bf16.msra.mxu0 %v860
        %883 = vmatprep.subr.bf16.mxu0 0
        %884 = vmatpush1.bf16.msra.mxu0 %v861
        %885 = vmatprep.subr.bf16.mxu0 0
        %886 = vmatpush1.bf16.msra.mxu0 %v862
        %887 = vmatprep.subr.bf16.mxu0 0
        %888 = vmatpush1.bf16.msra.mxu0 0
        %889 = vmatprep.subr.bf16.mxu0 0
        %890 = vmatpush1.bf16.msra.mxu0 0
        %891 = vmatprep.subr.bf16.mxu0 0
        %892 = vmatpush1.bf16.msra.mxu0 0
        %893 = vmatprep.subr.bf16.mxu0 0
        %894 = vmatpush1.bf16.msra.mxu0 0
        %895 = vmatprep.subr.bf16.mxu0 0
        %896 = vmatpush1.bf16.msra.mxu0 0
        %897 = vmatprep.subr.bf16.mxu0 0
        %898 = vmatpush1.bf16.msra.mxu0 0
        %899 = vmatprep.subr.bf16.mxu0 0
        %900 = vmatpush1.bf16.msra.mxu0 0
        %901 = vmatprep.subr.bf16.mxu0 0
        %902 = vmatpush1.bf16.msra.mxu0 0
        %903 = vmatprep.mubr.bf16.mxu0 0
        %904 = vmatmul.mubr.bf16.gmra.mrb[0].mxu0 %v820
        %v905 = vpop.f32.mrb[0].mxu0
        %v906 = vadd.f32 0.0, %v905
        %v907 = vpop.f32.mrb[0].mxu0
        %v908 = vpop.f32.mrb[0].mxu0
        %v909 = vadd.f32 0.0, %v908
        %v910 = vpop.f32.mrb[0].mxu0
        %911 = vmatprep.mubr.bf16.mxu0 0
        %912 = vmatmul.mubr.bf16.gmra.mrb[0].mxu0 %v819
        %v913 = vpop.f32.mrb[0].mxu0
        %v914 = vadd.f32 0.0, %v913
        %v915 = vpop.f32.mrb[0].mxu0
        %v916 = vpop.f32.mrb[0].mxu0
        %v917 = vadd.f32 0.0, %v916
        %v918 = vpop.f32.mrb[0].mxu0
        %919 = vdwg.mxu0
        %v920 = vadd.f32 %v792, %v906
        %v921 = vadd.f32 %v793, %v909
        %v922 = vadd.f32 %v794, %v914
        %v923 = vadd.f32 %v795, %v917
        %v924 = vld [vmem:[%s2] sm:$0x1]
        %v926 = vlaneseq
        %v927 = vshrl.u32 %v926, 7
        %v928 = vsub.s32 0, %v927
        %v929 = vrot.slane %v924, %v928
        %v931 = vadd.f32 %v920, %v929
        %v932 = vadd.f32 %v921, %v929
        %v933 = vadd.f32 %v922, %v929
        %v934 = vadd.f32 %v923, %v929
        %v935 = vmax.f32 %v931, 0.0
        %v936 = vmax.f32 %v932, 0.0
        %v937 = vmax.f32 %v933, 0.0
        %v938 = vmax.f32 %v934, 0.0
        %v939 = vsel %vm244, %v935, 0.0
        %v940 = vsel %vm245, %v936, 0.0
        %v941 = vsel %vm246, %v937, 0.0
        %v942 = vsel %vm247, %v938, 0.0
        %v943 = vpack.c.bf16 %v940, %v939
        %v944 = vpack.c.bf16 %v942, %v941
        %v947 = vunpack.c.l.b16 %v943
        %v948 = vunpack.c.h.b16 %v943
        %v949 = vunpack.c.l.b16 %v944
        %v950 = vunpack.c.h.b16 %v944
        %v951 = vpack.c.b16 %v947, %v947
        %v952 = vpack.c.b16 %v948, %v948
        %v953 = vpack.c.b16 %v949, %v949
        %v954 = vpack.c.b16 %v950, %v950
        %959 = vst [vmem:[#allocation2 + $0x8] sm:$0xf] %v951
        %960 = vst [vmem:[#allocation2 + $0xc] sm:$0xf] %v952
        %961 = vst [vmem:[#allocation2 + $0x10] sm:$0xf] %v953
        %962 = vst [vmem:[#allocation2 + $0x14] sm:$0x3] %v954
        %v963 = vld [vmem:[#allocation2 + $0x4] sm:$0x8]
        %v964 = vld [vmem:[#allocation2 + $0x8] sm:$0xf]
        %v965 = vld [vmem:[#allocation2 + $0xc] sm:$0xf]
        %v966 = vld [vmem:[#allocation2 + $0x10] sm:$0xf]
        %v967 = vld [vmem:[#allocation2 + $0x14] sm:$0x1]
        %s968 = scalar_lea.vmem [#allocation3], 320
        %v969 = vld [vmem:[%s968] sm:$0xf]
        %v970 = vld [vmem:[%s968 + $0x4] sm:$0xf]
        %v971 = vld [vmem:[%s968 + $0x8] sm:$0xf]
        %v972 = vld [vmem:[%s968 + $0xc] sm:$0xf]
        %v973 = vld [vmem:[%s968 + $0x10] sm:$0xf]
        %v974 = vld [vmem:[%s968 + $0x14] sm:$0xf]
        %v975 = vld [vmem:[%s968 + $0x18] sm:$0xf]
        %v976 = vld [vmem:[%s968 + $0x1c] sm:$0xf]
        %v977 = vld [vmem:[%s968 + $0x20] sm:$0xf]
        %v978 = vld [vmem:[%s968 + $0x24] sm:$0xf]
        %v979 = vld [vmem:[%s968 + $0x28] sm:$0xf]
        %v980 = vld [vmem:[%s968 + $0x2c] sm:$0xf]
        %v981 = vld [vmem:[%s968 + $0x30] sm:$0xf]
        %v982 = vld [vmem:[%s968 + $0x34] sm:$0xf]
        %v983 = vld [vmem:[%s968 + $0x38] sm:$0xf]
        %v984 = vld [vmem:[%s968 + $0x3c] sm:$0xf]
        %v985 = vld [vmem:[#allocation2 + $0x14] sm:$0x3]
        %s986 = scalar_lea.vmem [#allocation3], 384
        %v987 = vld [vmem:[%s986] sm:$0xf]
        %v988 = vld [vmem:[%s986 + $0x4] sm:$0xf]
        %v989 = vld [vmem:[%s986 + $0x8] sm:$0xf]
        %v990 = vld [vmem:[%s986 + $0xc] sm:$0xf]
        %v991 = vld [vmem:[%s986 + $0x10] sm:$0xf]
        %v992 = vld [vmem:[%s986 + $0x14] sm:$0xf]
        %v993 = vld [vmem:[%s986 + $0x18] sm:$0xf]
        %v994 = vld [vmem:[%s986 + $0x1c] sm:$0xf]
        %v995 = vld [vmem:[%s986 + $0x20] sm:$0xf]
        %v996 = vld [vmem:[%s986 + $0x24] sm:$0xf]
        %v997 = vld [vmem:[%s986 + $0x28] sm:$0xf]
        %v998 = vld [vmem:[%s986 + $0x2c] sm:$0xf]
        %v999 = vld [vmem:[%s986 + $0x30] sm:$0xf]
        %v1000 = vld [vmem:[%s986 + $0x34] sm:$0xf]
        %v1001 = vld [vmem:[%s986 + $0x38] sm:$0xf]
        %v1002 = vld [vmem:[%s986 + $0x3c] sm:$0xf]
        %v1008 = vunpack.c.l.b16 %v963
        %v1009 = vunpack.c.l.b16 %v964
        %v1010 = vunpack.c.l.b16 %v965
        %v1011 = vunpack.c.l.b16 %v966
        %v1012 = vunpack.c.l.b16 %v985
        %v1013 = vpack.c.b16 %v1009, %v1008
        %v1014 = vpack.c.b16 %v1011, %v1010
        %v1015 = vpack.c.b16 %v1012, %v1012
        %v1017 = vshrl.u32 %v1013, 16
        %v1019 = vrot.slane %v1017, 3
        %v1020 = vshll.u32 %v1013, 16
        %v1022 = vrot.slane %v1020, 4
        %v1023 = vor.u32 %v1019, %v1022
        %v1025 = vshrl.u32 %v1014, 16
        %v1027 = vrot.slane %v1025, 3
        %v1028 = vshll.u32 %v1014, 16
        %v1030 = vrot.slane %v1028, 4
        %v1031 = vor.u32 %v1027, %v1030
        %v1032 = vsel %vm300, %v1023, %v1031
        %v1034 = vshrl.u32 %v1015, 16
        %v1036 = vrot.slane %v1034, 3
        %v1037 = vshll.u32 %v1015, 16
        %v1039 = vrot.slane %v1037, 4
        %v1040 = vor.u32 %v1036, %v1039
        %v1041 = vsel %vm300, %v1031, %v1040
        %v1060 = vunpack.c.l.b16 %v987
        %v1061 = vunpack.c.l.b16 %v988
        %v1062 = vunpack.c.l.b16 %v989
        %v1063 = vunpack.c.l.b16 %v990
        %v1064 = vunpack.c.l.b16 %v991
        %v1065 = vunpack.c.l.b16 %v992
        %v1066 = vunpack.c.l.b16 %v993
        %v1067 = vunpack.c.l.b16 %v994
        %v1068 = vunpack.c.l.b16 %v995
        %v1069 = vunpack.c.l.b16 %v996
        %v1070 = vunpack.c.l.b16 %v997
        %v1071 = vunpack.c.l.b16 %v998
        %v1072 = vunpack.c.l.b16 %v999
        %v1073 = vunpack.c.l.b16 %v1000
        %v1074 = vunpack.c.l.b16 %v1001
        %v1075 = vunpack.c.l.b16 %v1002
        %v1076 = vpack.c.b16 %v1061, %v1060
        %v1077 = vpack.c.b16 %v1063, %v1062
        %v1078 = vpack.c.b16 %v1065, %v1064
        %v1079 = vpack.c.b16 %v1067, %v1066
        %v1080 = vpack.c.b16 %v1069, %v1068
        %v1081 = vpack.c.b16 %v1071, %v1070
        %v1082 = vpack.c.b16 %v1073, %v1072
        %v1083 = vpack.c.b16 %v1075, %v1074
        %1092 = vmatprep.subr.bf16.mxu0 0
        %1093 = vmatpush1.bf16.msra.mxu0 %v1076
        %1094 = vmatprep.subr.bf16.mxu0 0
        %1095 = vmatpush1.bf16.msra.mxu0 %v1077
        %1096 = vmatprep.subr.bf16.mxu0 0
        %1097 = vmatpush1.bf16.msra.mxu0 %v1078
        %1098 = vmatprep.subr.bf16.mxu0 0
        %1099 = vmatpush1.bf16.msra.mxu0 %v1079
        %1100 = vmatprep.subr.bf16.mxu0 0
        %1101 = vmatpush1.bf16.msra.mxu0 %v1080
        %1102 = vmatprep.subr.bf16.mxu0 0
        %1103 = vmatpush1.bf16.msra.mxu0 %v1081
        %1104 = vmatprep.subr.bf16.mxu0 0
        %1105 = vmatpush1.bf16.msra.mxu0 %v1082
        %1106 = vmatprep.subr.bf16.mxu0 0
        %1107 = vmatpush1.bf16.msra.mxu0 %v1083
        %1108 = vmatprep.subr.bf16.mxu0 0
        %1109 = vmatpush1.bf16.msra.mxu0 0
        %1110 = vmatprep.subr.bf16.mxu0 0
        %1111 = vmatpush1.bf16.msra.mxu0 0
        %1112 = vmatprep.subr.bf16.mxu0 0
        %1113 = vmatpush1.bf16.msra.mxu0 0
        %1114 = vmatprep.subr.bf16.mxu0 0
        %1115 = vmatpush1.bf16.msra.mxu0 0
        %1116 = vmatprep.subr.bf16.mxu0 0
        %1117 = vmatpush1.bf16.msra.mxu0 0
        %1118 = vmatprep.subr.bf16.mxu0 0
        %1119 = vmatpush1.bf16.msra.mxu0 0
        %1120 = vmatprep.subr.bf16.mxu0 0
        %1121 = vmatpush1.bf16.msra.mxu0 0
        %1122 = vmatprep.subr.bf16.mxu0 0
        %1123 = vmatpush1.bf16.msra.mxu0 0
        %1124 = vmatprep.mubr.bf16.mxu0 0
        %1125 = vmatmul.mubr.bf16.gmra.mrb[0].mxu0 %v1032
        %v1126 = vpop.f32.mrb[0].mxu0
        %v1127 = vadd.f32 0.0, %v1126
        %v1128 = vpop.f32.mrb[0].mxu0
        %v1129 = vpop.f32.mrb[0].mxu0
        %v1130 = vadd.f32 0.0, %v1129
        %v1131 = vpop.f32.mrb[0].mxu0
        %1132 = vmatprep.mubr.bf16.mxu0 0
        %1133 = vmatmul.mubr.bf16.gmra.mrb[0].mxu0 %v1041
        %v1134 = vpop.f32.mrb[0].mxu0
        %v1135 = vadd.f32 0.0, %v1134
        %v1136 = vpop.f32.mrb[0].mxu0
        %v1137 = vpop.f32.mrb[0].mxu0
        %v1138 = vadd.f32 0.0, %v1137
        %v1139 = vpop.f32.mrb[0].mxu0
        %1140 = vdwg.mxu0
        %v1142 = vunpack.c.l.b16 %v967
        %v1143 = vpack.c.b16 %v1142, %v1142
        %v1144 = vrot.slane %v1013, 3
        %v1145 = vrot.slane %v1014, 3
        %v1146 = vsel %vm429, %v1144, %v1145
        %v1147 = vrot.slane %v1143, 3
        %v1148 = vsel %vm429, %v1145, %v1147
        %v1167 = vunpack.c.l.b16 %v969
        %v1168 = vunpack.c.l.b16 %v970
        %v1169 = vunpack.c.l.b16 %v971
        %v1170 = vunpack.c.l.b16 %v972
        %v1171 = vunpack.c.l.b16 %v973
        %v1172 = vunpack.c.l.b16 %v974
        %v1173 = vunpack.c.l.b16 %v975
        %v1174 = vunpack.c.l.b16 %v976
        %v1175 = vunpack.c.l.b16 %v977
        %v1176 = vunpack.c.l.b16 %v978
        %v1177 = vunpack.c.l.b16 %v979
        %v1178 = vunpack.c.l.b16 %v980
        %v1179 = vunpack.c.l.b16 %v981
        %v1180 = vunpack.c.l.b16 %v982
        %v1181 = vunpack.c.l.b16 %v983
        %v1182 = vunpack.c.l.b16 %v984
        %v1183 = vpack.c.b16 %v1168, %v1167
        %v1184 = vpack.c.b16 %v1170, %v1169
        %v1185 = vpack.c.b16 %v1172, %v1171
        %v1186 = vpack.c.b16 %v1174, %v1173
        %v1187 = vpack.c.b16 %v1176, %v1175
        %v1188 = vpack.c.b16 %v1178, %v1177
        %v1189 = vpack.c.b16 %v1180, %v1179
        %v1190 = vpack.c.b16 %v1182, %v1181
        %1199 = vmatprep.subr.bf16.mxu0 0
        %1200 = vmatpush1.bf16.msra.mxu0 %v1183
        %1201 = vmatprep.subr.bf16.mxu0 0
        %1202 = vmatpush1.bf16.msra.mxu0 %v1184
        %1203 = vmatprep.subr.bf16.mxu0 0
        %1204 = vmatpush1.bf16.msra.mxu0 %v1185
        %1205 = vmatprep.subr.bf16.mxu0 0
        %1206 = vmatpush1.bf16.msra.mxu0 %v1186
        %1207 = vmatprep.subr.bf16.mxu0 0
        %1208 = vmatpush1.bf16.msra.mxu0 %v1187
        %1209 = vmatprep.subr.bf16.mxu0 0
        %1210 = vmatpush1.bf16.msra.mxu0 %v1188
        %1211 = vmatprep.subr.bf16.mxu0 0
        %1212 = vmatpush1.bf16.msra.mxu0 %v1189
        %1213 = vmatprep.subr.bf16.mxu0 0
        %1214 = vmatpush1.bf16.msra.mxu0 %v1190
        %1215 = vmatprep.subr.bf16.mxu0 0
        %1216 = vmatpush1.bf16.msra.mxu0 0
        %1217 = vmatprep.subr.bf16.mxu0 0
        %1218 = vmatpush1.bf16.msra.mxu0 0
        %1219 = vmatprep.subr.bf16.mxu0 0
        %1220 = vmatpush1.bf16.msra.mxu0 0
        %1221 = vmatprep.subr.bf16.mxu0 0
        %1222 = vmatpush1.bf16.msra.mxu0 0
        %1223 = vmatprep.subr.bf16.mxu0 0
        %1224 = vmatpush1.bf16.msra.mxu0 0
        %1225 = vmatprep.subr.bf16.mxu0 0
        %1226 = vmatpush1.bf16.msra.mxu0 0
        %1227 = vmatprep.subr.bf16.mxu0 0
        %1228 = vmatpush1.bf16.msra.mxu0 0
        %1229 = vmatprep.subr.bf16.mxu0 0
        %1230 = vmatpush1.bf16.msra.mxu0 0
        %1231 = vmatprep.mubr.bf16.mxu0 0
        %1232 = vmatmul.mubr.bf16.gmra.mrb[0].mxu0 %v1146
        %v1233 = vpop.f32.mrb[0].mxu0
        %v1234 = vadd.f32 %v1127, %v1233
        %v1235 = vpop.f32.mrb[0].mxu0
        %v1236 = vpop.f32.mrb[0].mxu0
        %v1237 = vadd.f32 %v1130, %v1236
        %v1238 = vpop.f32.mrb[0].mxu0
        %1239 = vmatprep.mubr.bf16.mxu0 0
        %1240 = vmatmul.mubr.bf16.gmra.mrb[0].mxu0 %v1148
        %v1241 = vpop.f32.mrb[0].mxu0
        %v1242 = vadd.f32 %v1135, %v1241
        %v1243 = vpop.f32.mrb[0].mxu0
        %v1244 = vpop.f32.mrb[0].mxu0
        %v1245 = vadd.f32 %v1138, %v1244
        %v1246 = vpop.f32.mrb[0].mxu0
        %1247 = vdwg.mxu0
        %s1248 = scalar_lea.vmem [#allocation3], 448
        %v1249 = vld [vmem:[%s1248] sm:$0xf]
        %v1250 = vld [vmem:[%s1248 + $0x4] sm:$0xf]
        %v1251 = vld [vmem:[%s1248 + $0x8] sm:$0xf]
        %v1252 = vld [vmem:[%s1248 + $0xc] sm:$0xf]
        %v1253 = vld [vmem:[%s1248 + $0x10] sm:$0xf]
        %v1254 = vld [vmem:[%s1248 + $0x14] sm:$0xf]
        %v1255 = vld [vmem:[%s1248 + $0x18] sm:$0xf]
        %v1256 = vld [vmem:[%s1248 + $0x1c] sm:$0xf]
        %v1257 = vld [vmem:[%s1248 + $0x20] sm:$0xf]
        %v1258 = vld [vmem:[%s1248 + $0x24] sm:$0xf]
        %v1259 = vld [vmem:[%s1248 + $0x28] sm:$0xf]
        %v1260 = vld [vmem:[%s1248 + $0x2c] sm:$0xf]
        %v1261 = vld [vmem:[%s1248 + $0x30] sm:$0xf]
        %v1262 = vld [vmem:[%s1248 + $0x34] sm:$0xf]
        %v1263 = vld [vmem:[%s1248 + $0x38] sm:$0xf]
        %v1264 = vld [vmem:[%s1248 + $0x3c] sm:$0xf]
        %v1265 = vpack.c.b16 %v1010, %v1009
        %v1266 = vpack.c.b16 %v1012, %v1011
        %v1285 = vunpack.c.l.b16 %v1249
        %v1286 = vunpack.c.l.b16 %v1250
        %v1287 = vunpack.c.l.b16 %v1251
        %v1288 = vunpack.c.l.b16 %v1252
        %v1289 = vunpack.c.l.b16 %v1253
        %v1290 = vunpack.c.l.b16 %v1254
        %v1291 = vunpack.c.l.b16 %v1255
        %v1292 = vunpack.c.l.b16 %v1256
        %v1293 = vunpack.c.l.b16 %v1257
        %v1294 = vunpack.c.l.b16 %v1258
        %v1295 = vunpack.c.l.b16 %v1259
        %v1296 = vunpack.c.l.b16 %v1260
        %v1297 = vunpack.c.l.b16 %v1261
        %v1298 = vunpack.c.l.b16 %v1262
        %v1299 = vunpack.c.l.b16 %v1263
        %v1300 = vunpack.c.l.b16 %v1264
        %v1301 = vpack.c.b16 %v1286, %v1285
        %v1302 = vpack.c.b16 %v1288, %v1287
        %v1303 = vpack.c.b16 %v1290, %v1289
        %v1304 = vpack.c.b16 %v1292, %v1291
        %v1305 = vpack.c.b16 %v1294, %v1293
        %v1306 = vpack.c.b16 %v1296, %v1295
        %v1307 = vpack.c.b16 %v1298, %v1297
        %v1308 = vpack.c.b16 %v1300, %v1299
        %1317 = vmatprep.subr.bf16.mxu0 0
        %1318 = vmatpush1.bf16.msra.mxu0 %v1301
        %1319 = vmatprep.subr.bf16.mxu0 0
        %1320 = vmatpush1.bf16.msra.mxu0 %v1302
        %1321 = vmatprep.subr.bf16.mxu0 0
        %1322 = vmatpush1.bf16.msra.mxu0 %v1303
        %1323 = vmatprep.subr.bf16.mxu0 0
        %1324 = vmatpush1.bf16.msra.mxu0 %v1304
        %1325 = vmatprep.subr.bf16.mxu0 0
        %1326 = vmatpush1.bf16.msra.mxu0 %v1305
        %1327 = vmatprep.subr.bf16.mxu0 0
        %1328 = vmatpush1.bf16.msra.mxu0 %v1306
        %1329 = vmatprep.subr.bf16.mxu0 0
        %1330 = vmatpush1.bf16.msra.mxu0 %v1307
        %1331 = vmatprep.subr.bf16.mxu0 0
        %1332 = vmatpush1.bf16.msra.mxu0 %v1308
        %1333 = vmatprep.subr.bf16.mxu0 0
        %1334 = vmatpush1.bf16.msra.mxu0 0
        %1335 = vmatprep.subr.bf16.mxu0 0
        %1336 = vmatpush1.bf16.msra.mxu0 0
        %1337 = vmatprep.subr.bf16.mxu0 0
        %1338 = vmatpush1.bf16.msra.mxu0 0
        %1339 = vmatprep.subr.bf16.mxu0 0
        %1340 = vmatpush1.bf16.msra.mxu0 0
        %1341 = vmatprep.subr.bf16.mxu0 0
        %1342 = vmatpush1.bf16.msra.mxu0 0
        %1343 = vmatprep.subr.bf16.mxu0 0
        %1344 = vmatpush1.bf16.msra.mxu0 0
        %1345 = vmatprep.subr.bf16.mxu0 0
        %1346 = vmatpush1.bf16.msra.mxu0 0
        %1347 = vmatprep.subr.bf16.mxu0 0
        %1348 = vmatpush1.bf16.msra.mxu0 0
        %1349 = vmatprep.mubr.bf16.mxu0 0
        %1350 = vmatmul.mubr.bf16.gmra.mrb[0].mxu0 %v1265
        %v1351 = vpop.f32.mrb[0].mxu0
        %v1352 = vadd.f32 0.0, %v1351
        %v1353 = vpop.f32.mrb[0].mxu0
        %v1354 = vpop.f32.mrb[0].mxu0
        %v1355 = vadd.f32 0.0, %v1354
        %v1356 = vpop.f32.mrb[0].mxu0
        %1357 = vmatprep.mubr.bf16.mxu0 0
        %1358 = vmatmul.mubr.bf16.gmra.mrb[0].mxu0 %v1266
        %v1359 = vpop.f32.mrb[0].mxu0
        %v1360 = vadd.f32 0.0, %v1359
        %v1361 = vpop.f32.mrb[0].mxu0
        %v1362 = vpop.f32.mrb[0].mxu0
        %v1363 = vadd.f32 0.0, %v1362
        %v1364 = vpop.f32.mrb[0].mxu0
        %1365 = vdwg.mxu0
        %v1366 = vadd.f32 %v1234, %v1352
        %v1367 = vadd.f32 %v1237, %v1355
        %v1368 = vadd.f32 %v1242, %v1360
        %v1369 = vadd.f32 %v1245, %v1363
        %v1370 = vld [vmem:[#allocation2 + $0x14] sm:$0x7]
        %s1371 = scalar_lea.vmem [#allocation3], 512
        %v1372 = vld [vmem:[%s1371] sm:$0xf]
        %v1373 = vld [vmem:[%s1371 + $0x4] sm:$0xf]
        %v1374 = vld [vmem:[%s1371 + $0x8] sm:$0xf]
        %v1375 = vld [vmem:[%s1371 + $0xc] sm:$0xf]
        %v1376 = vld [vmem:[%s1371 + $0x10] sm:$0xf]
        %v1377 = vld [vmem:[%s1371 + $0x14] sm:$0xf]
        %v1378 = vld [vmem:[%s1371 + $0x18] sm:$0xf]
        %v1379 = vld [vmem:[%s1371 + $0x1c] sm:$0xf]
        %v1380 = vld [vmem:[%s1371 + $0x20] sm:$0xf]
        %v1381 = vld [vmem:[%s1371 + $0x24] sm:$0xf]
        %v1382 = vld [vmem:[%s1371 + $0x28] sm:$0xf]
        %v1383 = vld [vmem:[%s1371 + $0x2c] sm:$0xf]
        %v1384 = vld [vmem:[%s1371 + $0x30] sm:$0xf]
        %v1385 = vld [vmem:[%s1371 + $0x34] sm:$0xf]
        %v1386 = vld [vmem:[%s1371 + $0x38] sm:$0xf]
        %v1387 = vld [vmem:[%s1371 + $0x3c] sm:$0xf]
        %v1389 = vunpack.c.l.b16 %v1370
        %v1390 = vpack.c.b16 %v1389, %v1011
        %v1392 = vshrl.u32 %v1265, 16
        %v1394 = vshll.u32 %v1265, 16
        %v1396 = vrot.slane %v1394, 1
        %v1397 = vor.u32 %v1392, %v1396
        %v1399 = vshll.u32 %v1390, 16
        %v1401 = vrot.slane %v1399, 1
        %v1402 = vsel %vm677, %v1397, %v1401
        %v1403 = vshrl.u32 %v1390, 16
        %v1405 = vor.u32 %v1403, %v1401
        %v1424 = vunpack.c.l.b16 %v1372
        %v1425 = vunpack.c.l.b16 %v1373
        %v1426 = vunpack.c.l.b16 %v1374
        %v1427 = vunpack.c.l.b16 %v1375
        %v1428 = vunpack.c.l.b16 %v1376
        %v1429 = vunpack.c.l.b16 %v1377
        %v1430 = vunpack.c.l.b16 %v1378
        %v1431 = vunpack.c.l.b16 %v1379
        %v1432 = vunpack.c.l.b16 %v1380
        %v1433 = vunpack.c.l.b16 %v1381
        %v1434 = vunpack.c.l.b16 %v1382
        %v1435 = vunpack.c.l.b16 %v1383
        %v1436 = vunpack.c.l.b16 %v1384
        %v1437 = vunpack.c.l.b16 %v1385
        %v1438 = vunpack.c.l.b16 %v1386
        %v1439 = vunpack.c.l.b16 %v1387
        %v1440 = vpack.c.b16 %v1425, %v1424
        %v1441 = vpack.c.b16 %v1427, %v1426
        %v1442 = vpack.c.b16 %v1429, %v1428
        %v1443 = vpack.c.b16 %v1431, %v1430
        %v1444 = vpack.c.b16 %v1433, %v1432
        %v1445 = vpack.c.b16 %v1435, %v1434
        %v1446 = vpack.c.b16 %v1437, %v1436
        %v1447 = vpack.c.b16 %v1439, %v1438
        %1456 = vmatprep.subr.bf16.mxu0 0
        %1457 = vmatpush1.bf16.msra.mxu0 %v1440
        %1458 = vmatprep.subr.bf16.mxu0 0
        %1459 = vmatpush1.bf16.msra.mxu0 %v1441
        %1460 = vmatprep.subr.bf16.mxu0 0
        %1461 = vmatpush1.bf16.msra.mxu0 %v1442
        %1462 = vmatprep.subr.bf16.mxu0 0
        %1463 = vmatpush1.bf16.msra.mxu0 %v1443
        %1464 = vmatprep.subr.bf16.mxu0 0
        %1465 = vmatpush1.bf16.msra.mxu0 %v1444
        %1466 = vmatprep.subr.bf16.mxu0 0
        %1467 = vmatpush1.bf16.msra.mxu0 %v1445
        %1468 = vmatprep.subr.bf16.mxu0 0
        %1469 = vmatpush1.bf16.msra.mxu0 %v1446
        %1470 = vmatprep.subr.bf16.mxu0 0
        %1471 = vmatpush1.bf16.msra.mxu0 %v1447
        %1472 = vmatprep.subr.bf16.mxu0 0
        %1473 = vmatpush1.bf16.msra.mxu0 0
        %1474 = vmatprep.subr.bf16.mxu0 0
        %1475 = vmatpush1.bf16.msra.mxu0 0
        %1476 = vmatprep.subr.bf16.mxu0 0
        %1477 = vmatpush1.bf16.msra.mxu0 0
        %1478 = vmatprep.subr.bf16.mxu0 0
        %1479 = vmatpush1.bf16.msra.mxu0 0
        %1480 = vmatprep.subr.bf16.mxu0 0
        %1481 = vmatpush1.bf16.msra.mxu0 0
        %1482 = vmatprep.subr.bf16.mxu0 0
        %1483 = vmatpush1.bf16.msra.mxu0 0
        %1484 = vmatprep.subr.bf16.mxu0 0
        %1485 = vmatpush1.bf16.msra.mxu0 0
        %1486 = vmatprep.subr.bf16.mxu0 0
        %1487 = vmatpush1.bf16.msra.mxu0 0
        %1488 = vmatprep.mubr.bf16.mxu0 0
        %1489 = vmatmul.mubr.bf16.gmra.mrb[0].mxu0 %v1402
        %v1490 = vpop.f32.mrb[0].mxu0
        %v1491 = vadd.f32 0.0, %v1490
        %v1492 = vpop.f32.mrb[0].mxu0
        %v1493 = vpop.f32.mrb[0].mxu0
        %v1494 = vadd.f32 0.0, %v1493
        %v1495 = vpop.f32.mrb[0].mxu0
        %1496 = vmatprep.mubr.bf16.mxu0 0
        %1497 = vmatmul.mubr.bf16.gmra.mrb[0].mxu0 %v1405
        %v1498 = vpop.f32.mrb[0].mxu0
        %v1499 = vadd.f32 0.0, %v1498
        %v1500 = vpop.f32.mrb[0].mxu0
        %v1501 = vpop.f32.mrb[0].mxu0
        %v1502 = vadd.f32 0.0, %v1501
        %v1503 = vpop.f32.mrb[0].mxu0
        %1504 = vdwg.mxu0
        %v1505 = vadd.f32 %v1366, %v1491
        %v1506 = vadd.f32 %v1367, %v1494
        %v1507 = vadd.f32 %v1368, %v1499
        %v1508 = vadd.f32 %v1369, %v1502
        %v1509 = vld [vmem:[#allocation2 + $0x8] sm:$0xe]
        %s1510 = scalar_lea.vmem [#allocation3], 576
        %v1511 = vld [vmem:[%s1510] sm:$0xf]
        %v1512 = vld [vmem:[%s1510 + $0x4] sm:$0xf]
        %v1513 = vld [vmem:[%s1510 + $0x8] sm:$0xf]
        %v1514 = vld [vmem:[%s1510 + $0xc] sm:$0xf]
        %v1515 = vld [vmem:[%s1510 + $0x10] sm:$0xf]
        %v1516 = vld [vmem:[%s1510 + $0x14] sm:$0xf]
        %v1517 = vld [vmem:[%s1510 + $0x18] sm:$0xf]
        %v1518 = vld [vmem:[%s1510 + $0x1c] sm:$0xf]
        %v1519 = vld [vmem:[%s1510 + $0x20] sm:$0xf]
        %v1520 = vld [vmem:[%s1510 + $0x24] sm:$0xf]
        %v1521 = vld [vmem:[%s1510 + $0x28] sm:$0xf]
        %v1522 = vld [vmem:[%s1510 + $0x2c] sm:$0xf]
        %v1523 = vld [vmem:[%s1510 + $0x30] sm:$0xf]
        %v1524 = vld [vmem:[%s1510 + $0x34] sm:$0xf]
        %v1525 = vld [vmem:[%s1510 + $0x38] sm:$0xf]
        %v1526 = vld [vmem:[%s1510 + $0x3c] sm:$0xf]
        %v1528 = vunpack.c.l.b16 %v1509
        %v1529 = vpack.c.b16 %v1010, %v1528
        %v1530 = vrot.slane %v1529, 1
        %v1531 = vrot.slane %v1390, 1
        %v1532 = vsel %vm817, %v1530, %v1531
        %v1551 = vunpack.c.l.b16 %v1511
        %v1552 = vunpack.c.l.b16 %v1512
        %v1553 = vunpack.c.l.b16 %v1513
        %v1554 = vunpack.c.l.b16 %v1514
        %v1555 = vunpack.c.l.b16 %v1515
        %v1556 = vunpack.c.l.b16 %v1516
        %v1557 = vunpack.c.l.b16 %v1517
        %v1558 = vunpack.c.l.b16 %v1518
        %v1559 = vunpack.c.l.b16 %v1519
        %v1560 = vunpack.c.l.b16 %v1520
        %v1561 = vunpack.c.l.b16 %v1521
        %v1562 = vunpack.c.l.b16 %v1522
        %v1563 = vunpack.c.l.b16 %v1523
        %v1564 = vunpack.c.l.b16 %v1524
        %v1565 = vunpack.c.l.b16 %v1525
        %v1566 = vunpack.c.l.b16 %v1526
        %v1567 = vpack.c.b16 %v1552, %v1551
        %v1568 = vpack.c.b16 %v1554, %v1553
        %v1569 = vpack.c.b16 %v1556, %v1555
        %v1570 = vpack.c.b16 %v1558, %v1557
        %v1571 = vpack.c.b16 %v1560, %v1559
        %v1572 = vpack.c.b16 %v1562, %v1561
        %v1573 = vpack.c.b16 %v1564, %v1563
        %v1574 = vpack.c.b16 %v1566, %v1565
        %1583 = vmatprep.subr.bf16.mxu0 0
        %1584 = vmatpush1.bf16.msra.mxu0 %v1567
        %1585 = vmatprep.subr.bf16.mxu0 0
        %1586 = vmatpush1.bf16.msra.mxu0 %v1568
        %1587 = vmatprep.subr.bf16.mxu0 0
        %1588 = vmatpush1.bf16.msra.mxu0 %v1569
        %1589 = vmatprep.subr.bf16.mxu0 0
        %1590 = vmatpush1.bf16.msra.mxu0 %v1570
        %1591 = vmatprep.subr.bf16.mxu0 0
        %1592 = vmatpush1.bf16.msra.mxu0 %v1571
        %1593 = vmatprep.subr.bf16.mxu0 0
        %1594 = vmatpush1.bf16.msra.mxu0 %v1572
        %1595 = vmatprep.subr.bf16.mxu0 0
        %1596 = vmatpush1.bf16.msra.mxu0 %v1573
        %1597 = vmatprep.subr.bf16.mxu0 0
        %1598 = vmatpush1.bf16.msra.mxu0 %v1574
        %1599 = vmatprep.subr.bf16.mxu0 0
        %1600 = vmatpush1.bf16.msra.mxu0 0
        %1601 = vmatprep.subr.bf16.mxu0 0
        %1602 = vmatpush1.bf16.msra.mxu0 0
        %1603 = vmatprep.subr.bf16.mxu0 0
        %1604 = vmatpush1.bf16.msra.mxu0 0
        %1605 = vmatprep.subr.bf16.mxu0 0
        %1606 = vmatpush1.bf16.msra.mxu0 0
        %1607 = vmatprep.subr.bf16.mxu0 0
        %1608 = vmatpush1.bf16.msra.mxu0 0
        %1609 = vmatprep.subr.bf16.mxu0 0
        %1610 = vmatpush1.bf16.msra.mxu0 0
        %1611 = vmatprep.subr.bf16.mxu0 0
        %1612 = vmatpush1.bf16.msra.mxu0 0
        %1613 = vmatprep.subr.bf16.mxu0 0
        %1614 = vmatpush1.bf16.msra.mxu0 0
        %1615 = vmatprep.mubr.bf16.mxu0 0
        %1616 = vmatmul.mubr.bf16.gmra.mrb[0].mxu0 %v1532
        %v1617 = vpop.f32.mrb[0].mxu0
        %v1618 = vadd.f32 0.0, %v1617
        %v1619 = vpop.f32.mrb[0].mxu0
        %v1620 = vpop.f32.mrb[0].mxu0
        %v1621 = vadd.f32 0.0, %v1620
        %v1622 = vpop.f32.mrb[0].mxu0
        %1623 = vmatprep.mubr.bf16.mxu0 0
        %1624 = vmatmul.mubr.bf16.gmra.mrb[0].mxu0 %v1531
        %v1625 = vpop.f32.mrb[0].mxu0
        %v1626 = vadd.f32 0.0, %v1625
        %v1627 = vpop.f32.mrb[0].mxu0
        %v1628 = vpop.f32.mrb[0].mxu0
        %v1629 = vadd.f32 0.0, %v1628
        %v1630 = vpop.f32.mrb[0].mxu0
        %1631 = vdwg.mxu0
        %v1632 = vadd.f32 %v1505, %v1618
        %v1633 = vadd.f32 %v1506, %v1621
        %v1634 = vadd.f32 %v1507, %v1626
        %v1635 = vadd.f32 %v1508, %v1629
        %s1636 = scalar_lea.vmem %s2, 1
        %v1637 = vld [vmem:[%s1636] sm:$0x1]
        %v1639 = vlaneseq
        %v1640 = vshrl.u32 %v1639, 7
        %v1641 = vsub.s32 0, %v1640
        %v1642 = vrot.slane %v1637, %v1641
        %v1644 = vadd.f32 %v1632, %v1642
        %v1645 = vadd.f32 %v1633, %v1642
        %v1646 = vadd.f32 %v1634, %v1642
        %v1647 = vadd.f32 %v1635, %v1642
        %v1648 = vmax.f32 %v1644, 0.0
        %v1649 = vmax.f32 %v1645, 0.0
        %v1650 = vmax.f32 %v1646, 0.0
        %v1651 = vmax.f32 %v1647, 0.0
        %v1652 = vsel %vm244, %v1648, 0.0
        %v1653 = vsel %vm245, %v1649, 0.0
        %v1654 = vsel %vm246, %v1650, 0.0
        %v1655 = vsel %vm247, %v1651, 0.0
        %v1656 = vpack.c.bf16 %v1653, %v1652
        %v1657 = vpack.c.bf16 %v1655, %v1654
        %v1660 = vunpack.c.l.b16 %v1656
        %v1661 = vunpack.c.h.b16 %v1656
        %v1662 = vunpack.c.l.b16 %v1657
        %v1663 = vunpack.c.h.b16 %v1657
        %v1664 = vpack.c.b16 %v1660, %v1660
        %v1665 = vpack.c.b16 %v1661, %v1661
        %v1666 = vpack.c.b16 %v1662, %v1662
        %v1667 = vpack.c.b16 %v1663, %v1663
        %1672 = vst [vmem:[#allocation2 + $0x8] sm:$0xf] %v1664
        %1673 = vst [vmem:[#allocation2 + $0xc] sm:$0xf] %v1665
        %1674 = vst [vmem:[#allocation2 + $0x10] sm:$0xf] %v1666
        %1675 = vst [vmem:[#allocation2 + $0x14] sm:$0x3] %v1667
        %v1676 = vld [vmem:[#allocation2 + $0x8] sm:$0xc]
        %v1677 = vld [vmem:[#allocation2 + $0xc] sm:$0xf]
        %v1678 = vld [vmem:[#allocation2 + $0x10] sm:$0x3]
        %s1679 = scalar_lea.vmem [#allocation3], 640
        %v1680 = vld [vmem:[%s1679] sm:$0xf]
        %v1681 = vld [vmem:[%s1679 + $0x4] sm:$0xf]
        %v1682 = vld [vmem:[%s1679 + $0x8] sm:$0xf]
        %v1683 = vld [vmem:[%s1679 + $0xc] sm:$0xf]
        %v1684 = vld [vmem:[%s1679 + $0x10] sm:$0xf]
        %v1685 = vld [vmem:[%s1679 + $0x14] sm:$0xf]
        %v1686 = vld [vmem:[%s1679 + $0x18] sm:$0xf]
        %v1687 = vld [vmem:[%s1679 + $0x1c] sm:$0xf]
        %v1688 = vld [vmem:[%s1679 + $0x20] sm:$0xf]
        %v1689 = vld [vmem:[%s1679 + $0x24] sm:$0xf]
        %v1690 = vld [vmem:[%s1679 + $0x28] sm:$0xf]
        %v1691 = vld [vmem:[%s1679 + $0x2c] sm:$0xf]
        %v1692 = vld [vmem:[%s1679 + $0x30] sm:$0xf]
        %v1693 = vld [vmem:[%s1679 + $0x34] sm:$0xf]
        %v1694 = vld [vmem:[%s1679 + $0x38] sm:$0xf]
        %v1695 = vld [vmem:[%s1679 + $0x3c] sm:$0xf]
        %v1696 = vld [vmem:[#allocation2 + $0x10] sm:$0x7]
        %s1697 = scalar_lea.vmem [#allocation3], 704
        %v1698 = vld [vmem:[%s1697] sm:$0xf]
        %v1699 = vld [vmem:[%s1697 + $0x4] sm:$0xf]
        %v1700 = vld [vmem:[%s1697 + $0x8] sm:$0xf]
        %v1701 = vld [vmem:[%s1697 + $0xc] sm:$0xf]
        %v1702 = vld [vmem:[%s1697 + $0x10] sm:$0xf]
        %v1703 = vld [vmem:[%s1697 + $0x14] sm:$0xf]
        %v1704 = vld [vmem:[%s1697 + $0x18] sm:$0xf]
        %v1705 = vld [vmem:[%s1697 + $0x1c] sm:$0xf]
        %v1706 = vld [vmem:[%s1697 + $0x20] sm:$0xf]
        %v1707 = vld [vmem:[%s1697 + $0x24] sm:$0xf]
        %v1708 = vld [vmem:[%s1697 + $0x28] sm:$0xf]
        %v1709 = vld [vmem:[%s1697 + $0x2c] sm:$0xf]
        %v1710 = vld [vmem:[%s1697 + $0x30] sm:$0xf]
        %v1711 = vld [vmem:[%s1697 + $0x34] sm:$0xf]
        %v1712 = vld [vmem:[%s1697 + $0x38] sm:$0xf]
        %v1713 = vld [vmem:[%s1697 + $0x3c] sm:$0xf]
        %v1717 = vunpack.c.l.b16 %v1676
        %v1718 = vunpack.c.l.b16 %v1677
        %v1719 = vunpack.c.l.b16 %v1696
        %v1720 = vpack.c.b16 %v1718, %v1717
        %v1721 = vpack.c.b16 %v1719, %v1719
        %vm1722 = vsmask.f32 5376
        %v1724 = vshrl.u32 %v1720, 16
        %v1726 = vrot.slane %v1724, 2
        %v1727 = vshll.u32 %v1720, 16
        %v1729 = vrot.slane %v1727, 3
        %v1730 = vor.u32 %v1726, %v1729
        %v1732 = vshrl.u32 %v1721, 16
        %v1734 = vrot.slane %v1732, 2
        %v1735 = vshll.u32 %v1721, 16
        %v1737 = vrot.slane %v1735, 3
        %v1738 = vor.u32 %v1734, %v1737
        %v1739 = vsel %vm1722, %v1730, %v1738
        %v1757 = vunpack.c.l.b16 %v1698
        %v1758 = vunpack.c.l.b16 %v1699
        %v1759 = vunpack.c.l.b16 %v1700
        %v1760 = vunpack.c.l.b16 %v1701
        %v1761 = vunpack.c.l.b16 %v1702
        %v1762 = vunpack.c.l.b16 %v1703
        %v1763 = vunpack.c.l.b16 %v1704
        %v1764 = vunpack.c.l.b16 %v1705
        %v1765 = vunpack.c.l.b16 %v1706
        %v1766 = vunpack.c.l.b16 %v1707
        %v1767 = vunpack.c.l.b16 %v1708
        %v1768 = vunpack.c.l.b16 %v1709
        %v1769 = vunpack.c.l.b16 %v1710
        %v1770 = vunpack.c.l.b16 %v1711
        %v1771 = vunpack.c.l.b16 %v1712
        %v1772 = vunpack.c.l.b16 %v1713
        %v1773 = vpack.c.b16 %v1758, %v1757
        %v1774 = vpack.c.b16 %v1760, %v1759
        %v1775 = vpack.c.b16 %v1762, %v1761
        %v1776 = vpack.c.b16 %v1764, %v1763
        %v1777 = vpack.c.b16 %v1766, %v1765
        %v1778 = vpack.c.b16 %v1768, %v1767
        %v1779 = vpack.c.b16 %v1770, %v1769
        %v1780 = vpack.c.b16 %v1772, %v1771
        %1789 = vmatprep.subr.bf16.mxu0 0
        %1790 = vmatpush1.bf16.msra.mxu0 %v1773
        %1791 = vmatprep.subr.bf16.mxu0 0
        %1792 = vmatpush1.bf16.msra.mxu0 %v1774
        %1793 = vmatprep.subr.bf16.mxu0 0
        %1794 = vmatpush1.bf16.msra.mxu0 %v1775
        %1795 = vmatprep.subr.bf16.mxu0 0
        %1796 = vmatpush1.bf16.msra.mxu0 %v1776
        %1797 = vmatprep.subr.bf16.mxu0 0
        %1798 = vmatpush1.bf16.msra.mxu0 %v1777
        %1799 = vmatprep.subr.bf16.mxu0 0
        %1800 = vmatpush1.bf16.msra.mxu0 %v1778
        %1801 = vmatprep.subr.bf16.mxu0 0
        %1802 = vmatpush1.bf16.msra.mxu0 %v1779
        %1803 = vmatprep.subr.bf16.mxu0 0
        %1804 = vmatpush1.bf16.msra.mxu0 %v1780
        %1805 = vmatprep.subr.bf16.mxu0 0
        %1806 = vmatpush1.bf16.msra.mxu0 0
        %1807 = vmatprep.subr.bf16.mxu0 0
        %1808 = vmatpush1.bf16.msra.mxu0 0
        %1809 = vmatprep.subr.bf16.mxu0 0
        %1810 = vmatpush1.bf16.msra.mxu0 0
        %1811 = vmatprep.subr.bf16.mxu0 0
        %1812 = vmatpush1.bf16.msra.mxu0 0
        %1813 = vmatprep.subr.bf16.mxu0 0
        %1814 = vmatpush1.bf16.msra.mxu0 0
        %1815 = vmatprep.subr.bf16.mxu0 0
        %1816 = vmatpush1.bf16.msra.mxu0 0
        %1817 = vmatprep.subr.bf16.mxu0 0
        %1818 = vmatpush1.bf16.msra.mxu0 0
        %1819 = vmatprep.subr.bf16.mxu0 0
        %1820 = vmatpush1.bf16.msra.mxu0 0
        %1821 = vmatprep.mubr.bf16.mxu0 0
        %1822 = vmatmul.mubr.bf16.gmra.mrb[0].mxu0 %v1739
        %v1823 = vpop.f32.mrb[0].mxu0
        %v1824 = vadd.f32 0.0, %v1823
        %v1825 = vpop.f32.mrb[0].mxu0
        %v1826 = vpop.f32.mrb[0].mxu0
        %v1827 = vadd.f32 0.0, %v1826
        %v1828 = vpop.f32.mrb[0].mxu0
        %1829 = vdwg.mxu0
        %v1831 = vunpack.c.l.b16 %v1678
        %v1832 = vpack.c.b16 %v1831, %v1831
        %vm1833 = vcmask 1045504
        %v1834 = vrot.slane %v1720, 2
        %v1835 = vrot.slane %v1832, 2
        %v1836 = vsel %vm1833, %v1834, %v1835
        %v1854 = vunpack.c.l.b16 %v1680
        %v1855 = vunpack.c.l.b16 %v1681
        %v1856 = vunpack.c.l.b16 %v1682
        %v1857 = vunpack.c.l.b16 %v1683
        %v1858 = vunpack.c.l.b16 %v1684
        %v1859 = vunpack.c.l.b16 %v1685
        %v1860 = vunpack.c.l.b16 %v1686
        %v1861 = vunpack.c.l.b16 %v1687
        %v1862 = vunpack.c.l.b16 %v1688
        %v1863 = vunpack.c.l.b16 %v1689
        %v1864 = vunpack.c.l.b16 %v1690
        %v1865 = vunpack.c.l.b16 %v1691
        %v1866 = vunpack.c.l.b16 %v1692
        %v1867 = vunpack.c.l.b16 %v1693
        %v1868 = vunpack.c.l.b16 %v1694
        %v1869 = vunpack.c.l.b16 %v1695
        %v1870 = vpack.c.b16 %v1855, %v1854
        %v1871 = vpack.c.b16 %v1857, %v1856
        %v1872 = vpack.c.b16 %v1859, %v1858
        %v1873 = vpack.c.b16 %v1861, %v1860
        %v1874 = vpack.c.b16 %v1863, %v1862
        %v1875 = vpack.c.b16 %v1865, %v1864
        %v1876 = vpack.c.b16 %v1867, %v1866
        %v1877 = vpack.c.b16 %v1869, %v1868
        %1886 = vmatprep.subr.bf16.mxu0 0
        %1887 = vmatpush1.bf16.msra.mxu0 %v1870
        %1888 = vmatprep.subr.bf16.mxu0 0
        %1889 = vmatpush1.bf16.msra.mxu0 %v1871
        %1890 = vmatprep.subr.bf16.mxu0 0
        %1891 = vmatpush1.bf16.msra.mxu0 %v1872
        %1892 = vmatprep.subr.bf16.mxu0 0
        %1893 = vmatpush1.bf16.msra.mxu0 %v1873
        %1894 = vmatprep.subr.bf16.mxu0 0
        %1895 = vmatpush1.bf16.msra.mxu0 %v1874
        %1896 = vmatprep.subr.bf16.mxu0 0
        %1897 = vmatpush1.bf16.msra.mxu0 %v1875
        %1898 = vmatprep.subr.bf16.mxu0 0
        %1899 = vmatpush1.bf16.msra.mxu0 %v1876
        %1900 = vmatprep.subr.bf16.mxu0 0
        %1901 = vmatpush1.bf16.msra.mxu0 %v1877
        %1902 = vmatprep.subr.bf16.mxu0 0
        %1903 = vmatpush1.bf16.msra.mxu0 0
        %1904 = vmatprep.subr.bf16.mxu0 0
        %1905 = vmatpush1.bf16.msra.mxu0 0
        %1906 = vmatprep.subr.bf16.mxu0 0
        %1907 = vmatpush1.bf16.msra.mxu0 0
        %1908 = vmatprep.subr.bf16.mxu0 0
        %1909 = vmatpush1.bf16.msra.mxu0 0
        %1910 = vmatprep.subr.bf16.mxu0 0
        %1911 = vmatpush1.bf16.msra.mxu0 0
        %1912 = vmatprep.subr.bf16.mxu0 0
        %1913 = vmatpush1.bf16.msra.mxu0 0
        %1914 = vmatprep.subr.bf16.mxu0 0
        %1915 = vmatpush1.bf16.msra.mxu0 0
        %1916 = vmatprep.subr.bf16.mxu0 0
        %1917 = vmatpush1.bf16.msra.mxu0 0
        %1918 = vmatprep.mubr.bf16.mxu0 0
        %1919 = vmatmul.mubr.bf16.gmra.mrb[0].mxu0 %v1836
        %v1920 = vpop.f32.mrb[0].mxu0
        %v1921 = vadd.f32 %v1824, %v1920
        %v1922 = vpop.f32.mrb[0].mxu0
        %v1923 = vpop.f32.mrb[0].mxu0
        %v1924 = vadd.f32 %v1827, %v1923
        %v1925 = vpop.f32.mrb[0].mxu0
        %1926 = vdwg.mxu0
        %v1927 = vld [vmem:[#allocation2 + $0x8] sm:$0x8]
        %s1928 = scalar_lea.vmem [#allocation3], 768
        %v1929 = vld [vmem:[%s1928] sm:$0xf]
        %v1930 = vld [vmem:[%s1928 + $0x4] sm:$0xf]
        %v1931 = vld [vmem:[%s1928 + $0x8] sm:$0xf]
        %v1932 = vld [vmem:[%s1928 + $0xc] sm:$0xf]
        %v1933 = vld [vmem:[%s1928 + $0x10] sm:$0xf]
        %v1934 = vld [vmem:[%s1928 + $0x14] sm:$0xf]
        %v1935 = vld [vmem:[%s1928 + $0x18] sm:$0xf]
        %v1936 = vld [vmem:[%s1928 + $0x1c] sm:$0xf]
        %v1937 = vld [vmem:[%s1928 + $0x20] sm:$0xf]
        %v1938 = vld [vmem:[%s1928 + $0x24] sm:$0xf]
        %v1939 = vld [vmem:[%s1928 + $0x28] sm:$0xf]
        %v1940 = vld [vmem:[%s1928 + $0x2c] sm:$0xf]
        %v1941 = vld [vmem:[%s1928 + $0x30] sm:$0xf]
        %v1942 = vld [vmem:[%s1928 + $0x34] sm:$0xf]
        %v1943 = vld [vmem:[%s1928 + $0x38] sm:$0xf]
        %v1944 = vld [vmem:[%s1928 + $0x3c] sm:$0xf]
        %v1946 = vunpack.c.l.b16 %v1927
        %v1947 = vpack.c.b16 %v1718, %v1946
        %v1948 = vrot.slane %v1947, 3
        %v1949 = vrot.slane %v1721, 3
        %v1950 = vsel %vm429, %v1948, %v1949
        %v1968 = vunpack.c.l.b16 %v1929
        %v1969 = vunpack.c.l.b16 %v1930
        %v1970 = vunpack.c.l.b16 %v1931
        %v1971 = vunpack.c.l.b16 %v1932
        %v1972 = vunpack.c.l.b16 %v1933
        %v1973 = vunpack.c.l.b16 %v1934
        %v1974 = vunpack.c.l.b16 %v1935
        %v1975 = vunpack.c.l.b16 %v1936
        %v1976 = vunpack.c.l.b16 %v1937
        %v1977 = vunpack.c.l.b16 %v1938
        %v1978 = vunpack.c.l.b16 %v1939
        %v1979 = vunpack.c.l.b16 %v1940
        %v1980 = vunpack.c.l.b16 %v1941
        %v1981 = vunpack.c.l.b16 %v1942
        %v1982 = vunpack.c.l.b16 %v1943
        %v1983 = vunpack.c.l.b16 %v1944
        %v1984 = vpack.c.b16 %v1969, %v1968
        %v1985 = vpack.c.b16 %v1971, %v1970
        %v1986 = vpack.c.b16 %v1973, %v1972
        %v1987 = vpack.c.b16 %v1975, %v1974
        %v1988 = vpack.c.b16 %v1977, %v1976
        %v1989 = vpack.c.b16 %v1979, %v1978
        %v1990 = vpack.c.b16 %v1981, %v1980
        %v1991 = vpack.c.b16 %v1983, %v1982
        %2000 = vmatprep.subr.bf16.mxu0 0
        %2001 = vmatpush1.bf16.msra.mxu0 %v1984
        %2002 = vmatprep.subr.bf16.mxu0 0
        %2003 = vmatpush1.bf16.msra.mxu0 %v1985
        %2004 = vmatprep.subr.bf16.mxu0 0
        %2005 = vmatpush1.bf16.msra.mxu0 %v1986
        %2006 = vmatprep.subr.bf16.mxu0 0
        %2007 = vmatpush1.bf16.msra.mxu0 %v1987
        %2008 = vmatprep.subr.bf16.mxu0 0
        %2009 = vmatpush1.bf16.msra.mxu0 %v1988
        %2010 = vmatprep.subr.bf16.mxu0 0
        %2011 = vmatpush1.bf16.msra.mxu0 %v1989
        %2012 = vmatprep.subr.bf16.mxu0 0
        %2013 = vmatpush1.bf16.msra.mxu0 %v1990
        %2014 = vmatprep.subr.bf16.mxu0 0
        %2015 = vmatpush1.bf16.msra.mxu0 %v1991
        %2016 = vmatprep.subr.bf16.mxu0 0
        %2017 = vmatpush1.bf16.msra.mxu0 0
        %2018 = vmatprep.subr.bf16.mxu0 0
        %2019 = vmatpush1.bf16.msra.mxu0 0
        %2020 = vmatprep.subr.bf16.mxu0 0
        %2021 = vmatpush1.bf16.msra.mxu0 0
        %2022 = vmatprep.subr.bf16.mxu0 0
        %2023 = vmatpush1.bf16.msra.mxu0 0
        %2024 = vmatprep.subr.bf16.mxu0 0
        %2025 = vmatpush1.bf16.msra.mxu0 0
        %2026 = vmatprep.subr.bf16.mxu0 0
        %2027 = vmatpush1.bf16.msra.mxu0 0
        %2028 = vmatprep.subr.bf16.mxu0 0
        %2029 = vmatpush1.bf16.msra.mxu0 0
        %2030 = vmatprep.subr.bf16.mxu0 0
        %2031 = vmatpush1.bf16.msra.mxu0 0
        %2032 = vmatprep.mubr.bf16.mxu0 0
        %2033 = vmatmul.mubr.bf16.gmra.mrb[0].mxu0 %v1950
        %v2034 = vpop.f32.mrb[0].mxu0
        %v2035 = vadd.f32 0.0, %v2034
        %v2036 = vpop.f32.mrb[0].mxu0
        %v2037 = vpop.f32.mrb[0].mxu0
        %v2038 = vadd.f32 0.0, %v2037
        %v2039 = vpop.f32.mrb[0].mxu0
        %2040 = vdwg.mxu0
        %v2041 = vadd.f32 %v1921, %v2035
        %v2042 = vadd.f32 %v1924, %v2038
        %v2043 = vld [vmem:[#allocation2 + $0x10] sm:$0xf]
        %s2044 = scalar_lea.vmem [#allocation3], 832
        %v2045 = vld [vmem:[%s2044] sm:$0xf]
        %v2046 = vld [vmem:[%s2044 + $0x4] sm:$0xf]
        %v2047 = vld [vmem:[%s2044 + $0x8] sm:$0xf]
        %v2048 = vld [vmem:[%s2044 + $0xc] sm:$0xf]
        %v2049 = vld [vmem:[%s2044 + $0x10] sm:$0xf]
        %v2050 = vld [vmem:[%s2044 + $0x14] sm:$0xf]
        %v2051 = vld [vmem:[%s2044 + $0x18] sm:$0xf]
        %v2052 = vld [vmem:[%s2044 + $0x1c] sm:$0xf]
        %v2053 = vld [vmem:[%s2044 + $0x20] sm:$0xf]
        %v2054 = vld [vmem:[%s2044 + $0x24] sm:$0xf]
        %v2055 = vld [vmem:[%s2044 + $0x28] sm:$0xf]
        %v2056 = vld [vmem:[%s2044 + $0x2c] sm:$0xf]
        %v2057 = vld [vmem:[%s2044 + $0x30] sm:$0xf]
        %v2058 = vld [vmem:[%s2044 + $0x34] sm:$0xf]
        %v2059 = vld [vmem:[%s2044 + $0x38] sm:$0xf]
        %v2060 = vld [vmem:[%s2044 + $0x3c] sm:$0xf]
        %v2062 = vunpack.c.l.b16 %v2043
        %v2063 = vpack.c.b16 %v2062, %v2062
        %v2065 = vshrl.u32 %v1947, 16
        %v2067 = vrot.slane %v2065, 3
        %v2068 = vshll.u32 %v1947, 16
        %v2070 = vrot.slane %v2068, 4
        %v2071 = vor.u32 %v2067, %v2070
        %v2073 = vshrl.u32 %v2063, 16
        %v2075 = vrot.slane %v2073, 3
        %v2076 = vshll.u32 %v2063, 16
        %v2078 = vrot.slane %v2076, 4
        %v2079 = vor.u32 %v2075, %v2078
        %v2080 = vsel %vm300, %v2071, %v2079
        %v2098 = vunpack.c.l.b16 %v2045
        %v2099 = vunpack.c.l.b16 %v2046
        %v2100 = vunpack.c.l.b16 %v2047
        %v2101 = vunpack.c.l.b16 %v2048
        %v2102 = vunpack.c.l.b16 %v2049
        %v2103 = vunpack.c.l.b16 %v2050
        %v2104 = vunpack.c.l.b16 %v2051
        %v2105 = vunpack.c.l.b16 %v2052
        %v2106 = vunpack.c.l.b16 %v2053
        %v2107 = vunpack.c.l.b16 %v2054
        %v2108 = vunpack.c.l.b16 %v2055
        %v2109 = vunpack.c.l.b16 %v2056
        %v2110 = vunpack.c.l.b16 %v2057
        %v2111 = vunpack.c.l.b16 %v2058
        %v2112 = vunpack.c.l.b16 %v2059
        %v2113 = vunpack.c.l.b16 %v2060
        %v2114 = vpack.c.b16 %v2099, %v2098
        %v2115 = vpack.c.b16 %v2101, %v2100
        %v2116 = vpack.c.b16 %v2103, %v2102
        %v2117 = vpack.c.b16 %v2105, %v2104
        %v2118 = vpack.c.b16 %v2107, %v2106
        %v2119 = vpack.c.b16 %v2109, %v2108
        %v2120 = vpack.c.b16 %v2111, %v2110
        %v2121 = vpack.c.b16 %v2113, %v2112
        %2130 = vmatprep.subr.bf16.mxu0 0
        %2131 = vmatpush1.bf16.msra.mxu0 %v2114
        %2132 = vmatprep.subr.bf16.mxu0 0
        %2133 = vmatpush1.bf16.msra.mxu0 %v2115
        %2134 = vmatprep.subr.bf16.mxu0 0
        %2135 = vmatpush1.bf16.msra.mxu0 %v2116
        %2136 = vmatprep.subr.bf16.mxu0 0
        %2137 = vmatpush1.bf16.msra.mxu0 %v2117
        %2138 = vmatprep.subr.bf16.mxu0 0
        %2139 = vmatpush1.bf16.msra.mxu0 %v2118
        %2140 = vmatprep.subr.bf16.mxu0 0
        %2141 = vmatpush1.bf16.msra.mxu0 %v2119
        %2142 = vmatprep.subr.bf16.mxu0 0
        %2143 = vmatpush1.bf16.msra.mxu0 %v2120
        %2144 = vmatprep.subr.bf16.mxu0 0
        %2145 = vmatpush1.bf16.msra.mxu0 %v2121
        %2146 = vmatprep.subr.bf16.mxu0 0
        %2147 = vmatpush1.bf16.msra.mxu0 0
        %2148 = vmatprep.subr.bf16.mxu0 0
        %2149 = vmatpush1.bf16.msra.mxu0 0
        %2150 = vmatprep.subr.bf16.mxu0 0
        %2151 = vmatpush1.bf16.msra.mxu0 0
        %2152 = vmatprep.subr.bf16.mxu0 0
        %2153 = vmatpush1.bf16.msra.mxu0 0
        %2154 = vmatprep.subr.bf16.mxu0 0
        %2155 = vmatpush1.bf16.msra.mxu0 0
        %2156 = vmatprep.subr.bf16.mxu0 0
        %2157 = vmatpush1.bf16.msra.mxu0 0
        %2158 = vmatprep.subr.bf16.mxu0 0
        %2159 = vmatpush1.bf16.msra.mxu0 0
        %2160 = vmatprep.subr.bf16.mxu0 0
        %2161 = vmatpush1.bf16.msra.mxu0 0
        %2162 = vmatprep.mubr.bf16.mxu0 0
        %2163 = vmatmul.mubr.bf16.gmra.mrb[0].mxu0 %v2080
        %v2164 = vpop.f32.mrb[0].mxu0
        %v2165 = vadd.f32 0.0, %v2164
        %v2166 = vpop.f32.mrb[0].mxu0
        %v2167 = vpop.f32.mrb[0].mxu0
        %v2168 = vadd.f32 0.0, %v2167
        %v2169 = vpop.f32.mrb[0].mxu0
        %2170 = vdwg.mxu0
        %v2171 = vadd.f32 %v2041, %v2165
        %v2172 = vadd.f32 %v2042, %v2168
        %s2173 = scalar_lea.vmem [#allocation3], 896
        %v2174 = vld [vmem:[%s2173] sm:$0xf]
        %v2175 = vld [vmem:[%s2173 + $0x4] sm:$0xf]
        %v2176 = vld [vmem:[%s2173 + $0x8] sm:$0xf]
        %v2177 = vld [vmem:[%s2173 + $0xc] sm:$0xf]
        %v2178 = vld [vmem:[%s2173 + $0x10] sm:$0xf]
        %v2179 = vld [vmem:[%s2173 + $0x14] sm:$0xf]
        %v2180 = vld [vmem:[%s2173 + $0x18] sm:$0xf]
        %v2181 = vld [vmem:[%s2173 + $0x1c] sm:$0xf]
        %v2182 = vld [vmem:[%s2173 + $0x20] sm:$0xf]
        %v2183 = vld [vmem:[%s2173 + $0x24] sm:$0xf]
        %v2184 = vld [vmem:[%s2173 + $0x28] sm:$0xf]
        %v2185 = vld [vmem:[%s2173 + $0x2c] sm:$0xf]
        %v2186 = vld [vmem:[%s2173 + $0x30] sm:$0xf]
        %v2187 = vld [vmem:[%s2173 + $0x34] sm:$0xf]
        %v2188 = vld [vmem:[%s2173 + $0x38] sm:$0xf]
        %v2189 = vld [vmem:[%s2173 + $0x3c] sm:$0xf]
        %v2190 = vpack.c.b16 %v2062, %v1718
        %v2208 = vunpack.c.l.b16 %v2174
        %v2209 = vunpack.c.l.b16 %v2175
        %v2210 = vunpack.c.l.b16 %v2176
        %v2211 = vunpack.c.l.b16 %v2177
        %v2212 = vunpack.c.l.b16 %v2178
        %v2213 = vunpack.c.l.b16 %v2179
        %v2214 = vunpack.c.l.b16 %v2180
        %v2215 = vunpack.c.l.b16 %v2181
        %v2216 = vunpack.c.l.b16 %v2182
        %v2217 = vunpack.c.l.b16 %v2183
        %v2218 = vunpack.c.l.b16 %v2184
        %v2219 = vunpack.c.l.b16 %v2185
        %v2220 = vunpack.c.l.b16 %v2186
        %v2221 = vunpack.c.l.b16 %v2187
        %v2222 = vunpack.c.l.b16 %v2188
        %v2223 = vunpack.c.l.b16 %v2189
        %v2224 = vpack.c.b16 %v2209, %v2208
        %v2225 = vpack.c.b16 %v2211, %v2210
        %v2226 = vpack.c.b16 %v2213, %v2212
        %v2227 = vpack.c.b16 %v2215, %v2214
        %v2228 = vpack.c.b16 %v2217, %v2216
        %v2229 = vpack.c.b16 %v2219, %v2218
        %v2230 = vpack.c.b16 %v2221, %v2220
        %v2231 = vpack.c.b16 %v2223, %v2222
        %2240 = vmatprep.subr.bf16.mxu0 0
        %2241 = vmatpush1.bf16.msra.mxu0 %v2224
        %2242 = vmatprep.subr.bf16.mxu0 0
        %2243 = vmatpush1.bf16.msra.mxu0 %v2225
        %2244 = vmatprep.subr.bf16.mxu0 0
        %2245 = vmatpush1.bf16.msra.mxu0 %v2226
        %2246 = vmatprep.subr.bf16.mxu0 0
        %2247 = vmatpush1.bf16.msra.mxu0 %v2227
        %2248 = vmatprep.subr.bf16.mxu0 0
        %2249 = vmatpush1.bf16.msra.mxu0 %v2228
        %2250 = vmatprep.subr.bf16.mxu0 0
        %2251 = vmatpush1.bf16.msra.mxu0 %v2229
        %2252 = vmatprep.subr.bf16.mxu0 0
        %2253 = vmatpush1.bf16.msra.mxu0 %v2230
        %2254 = vmatprep.subr.bf16.mxu0 0
        %2255 = vmatpush1.bf16.msra.mxu0 %v2231
        %2256 = vmatprep.subr.bf16.mxu0 0
        %2257 = vmatpush1.bf16.msra.mxu0 0
        %2258 = vmatprep.subr.bf16.mxu0 0
        %2259 = vmatpush1.bf16.msra.mxu0 0
        %2260 = vmatprep.subr.bf16.mxu0 0
        %2261 = vmatpush1.bf16.msra.mxu0 0
        %2262 = vmatprep.subr.bf16.mxu0 0
        %2263 = vmatpush1.bf16.msra.mxu0 0
        %2264 = vmatprep.subr.bf16.mxu0 0
        %2265 = vmatpush1.bf16.msra.mxu0 0
        %2266 = vmatprep.subr.bf16.mxu0 0
        %2267 = vmatpush1.bf16.msra.mxu0 0
        %2268 = vmatprep.subr.bf16.mxu0 0
        %2269 = vmatpush1.bf16.msra.mxu0 0
        %2270 = vmatprep.subr.bf16.mxu0 0
        %2271 = vmatpush1.bf16.msra.mxu0 0
        %2272 = vmatprep.mubr.bf16.mxu0 0
        %2273 = vmatmul.mubr.bf16.gmra.mrb[0].mxu0 %v2190
        %v2274 = vpop.f32.mrb[0].mxu0
        %v2275 = vadd.f32 0.0, %v2274
        %v2276 = vpop.f32.mrb[0].mxu0
        %v2277 = vpop.f32.mrb[0].mxu0
        %v2278 = vadd.f32 0.0, %v2277
        %v2279 = vpop.f32.mrb[0].mxu0
        %2280 = vdwg.mxu0
        %v2281 = vadd.f32 %v2171, %v2275
        %v2282 = vadd.f32 %v2172, %v2278
        %s2283 = scalar_lea.vmem %s2, 2
        %v2284 = vld [vmem:[%s2283] sm:$0x1]
        %v2286 = vlaneseq
        %v2287 = vshrl.u32 %v2286, 7
        %v2288 = vsub.s32 0, %v2287
        %v2289 = vrot.slane %v2284, %v2288
        %v2291 = vadd.f32 %v2281, %v2289
        %v2292 = vadd.f32 %v2282, %v2289
        %v2293 = vmax.f32 %v2291, 0.0
        %v2294 = vmax.f32 %v2292, 0.0
        %2295 = vst [vmem:[%s202] sm:$0xff] %v2293
        %2296 = vst [vmem:[%s202 + $0x8] sm:$0xff] %v2294
        %s2297 = sand.u32 %s110, 1
        %s2298 = scalar_lea.sflag [#allocation5], %s2297
        %s2299 = sand.u32 %s110, 1
        %s2300 = smul.addr %s2299, 16
        %s2301 = scalar_lea.vmem [#allocation6], %s2300
        // Predicated region
        $region37: #{tpu_custom_call.1} parent=31 // pred_check
          %p2302 = pneg %p120
        $region38: #{tpu_custom_call.1} parent=31 // pred_check_branch
          %2304 = sbr.rel (%p2302) target = $region40
        $region39: #{tpu_custom_call.1} parent=31 // pred_region
          %s2305 = smul.u32 2, %s23
          %s2307 = ssub.s32 256, 256
          %2308 = vsyncadd %s2298, %s2307
          %s2309 = smul.addr %s22, 6
          %s2310 = sadd.s32 %s2305, %s2309
          %s2311 = smul.addr %s2310, 128
          %s2312 = scalar_lea.hbm %s3, %s2311
          %s2313 = sshll.u32 %s2301, 4
          %s2314 = int_to_ptr.vmem [resolvable:$true] %s2313
          %2319 = dma.vmem_to_hbm [thread:$0]  %s2314, 256, %s2312, %s2298, 128, 128, 8
        $region40: #{tpu_custom_call.1} parent=31 // pred_fallthru
          _
      $region32: #{tpu_custom_call.1} parent=5 // pred_fallthru
        _
      %p2320 = scmp.le.s32.totalorder 2, %s13
      // Predicated region
      $region41: #{tpu_custom_call.1} parent=5 // pred_check
        %p2321 = pneg %p2320
      $region42: #{tpu_custom_call.1} parent=5 // pred_check_branch
        %2323 = sbr.rel (%p2321) target = $region44
      $region43: #{tpu_custom_call.1} parent=5 // pred_region
        %s2324 = ssub.s32 %s13, 2
        // Predicated region
        $region45: #{tpu_custom_call.1} parent=43 // pred_check
          %p2325 = pneg %p126
        $region46: #{tpu_custom_call.1} parent=43 // pred_check_branch
          %2327 = sbr.rel (%p2325) target = $region48
        $region47: #{tpu_custom_call.1} parent=43 // pred_region
          %s2328 = sand.u32 %s111, 1
          %s2329 = scalar_lea.sflag [#allocation5], %s2328
          %s2330 = sand.u32 %s111, 1
          %s2331 = smul.addr %s2330, 16
          %s2332 = scalar_lea.vmem [#allocation6], %s2331
          %2333 = dma.done %s2329, 256
        $region48: #{tpu_custom_call.1} parent=43 // pred_fallthru
          _
      $region44: #{tpu_custom_call.1} parent=5 // pred_fallthru
        _
    $region6: #{tpu_custom_call.1} parent=1 // loop_footer
      %s17 = sadd.s32 1, %s13
    $region7: #{tpu_custom_call.1} parent=1 // loop_footer_branch
      %12 = sbr.rel target = $region3
    $region8: #{tpu_custom_call.1} parent=1 // loop_exit
      _
    %2334 = vsyncpa [#allocation4], 1
    %s2335 = scalar_lea.sflag [#allocation4], 1
    %2336 = vsyncpa %s2335, 1
    %2337 = vsyncpa [#allocation5], 1
    %s2338 = scalar_lea.sflag [#allocation5], 1
    %2339 = vsyncpa %s2338, 1

</llo_original>
